<compile_context>
chip_gen: v5e
topology: v5e:2x2
jax: 0.10.0
libtpu: 0.0.40
codegen_flags: <defaults>
</compile_context>

<pallas_src>
import math

import jax
import jax.numpy as jnp
from jax.experimental import pallas as pl
from jax.experimental.pallas import tpu as pltpu

# ---------------- model config (small, consistent with the module) -----------
BATCH = 2
SEQ = 8
HIDDEN = 32
NUM_HEADS = 4
HEAD_DIM = HIDDEN // NUM_HEADS
INTERMEDIATE = 64
NUM_LAYERS = 4
VOCAB = 128
MAX_POS = 16
TYPE_VOCAB = 2
PAD_ID = 0
NUM_MEM_BLOCKS = 2
BLOCK_CAPACITY = 8
MEM_SLOTS = NUM_MEM_BLOCKS * BLOCK_CAPACITY
KEY_DIM = 16
VALUE_DIM = 16
LN_EPS = 1e-12

PROJ_WIDTH = 3 * HIDDEN + KEY_DIM          # packed Q|K|V|memory-query width
BS = BATCH * SEQ                           # tokens per call
BNS = BATCH * NUM_HEADS * SEQ              # sublane-stacked (batch, head) rows
OFF_BLOCK = -1e9                           # kills cross-(batch,head) scores


# ------------------------------ kernel helpers --------------------------------
def _layer_norm(x, gamma, beta):
    mu = jnp.mean(x, axis=-1, keepdims=True)
    var = jnp.mean((x - mu) ** 2, axis=-1, keepdims=True)
    return (x - mu) * jax.lax.rsqrt(var + LN_EPS) * gamma + beta


def _softmax_rows(s):
    s = s - jnp.max(s, axis=-1, keepdims=True)
    p = jnp.exp(s)
    d = jnp.sum(p, axis=-1, keepdims=True)
    r = pl.reciprocal(d, approx=True)      # EUP slot
    r = r * (2.0 - d * r)                  # one Newton step -> exact-divide accuracy
    return p * r


def _stack_heads(t):
    """(B*S, H) with heads along lanes -> (B*NH*S, HD) stacked along sublanes."""
    blocks = []
    for b in range(BATCH):
        for h in range(NUM_HEADS):
            blocks.append(t[b * SEQ:(b + 1) * SEQ,
                            h * HEAD_DIM:(h + 1) * HEAD_DIM])
    return jnp.concatenate(blocks, axis=0)


def _unstack_ctx(ctx_s):
    """(B*NH*S, HD) sublane-stacked contexts -> lane-packed (B*S, H)."""
    rows = []
    for b in range(BATCH):
        heads = [ctx_s[(b * NUM_HEADS + h) * SEQ:(b * NUM_HEADS + h + 1) * SEQ, :]
                 for h in range(NUM_HEADS)]
        rows.append(jnp.concatenate(heads, axis=1))
    return jnp.concatenate(rows, axis=0)


# ------------------------------- kernel body -----------------------------------
def quasar_lm_kernel(x_ref, mask_cols_ref,
                     w_fused_ref, b_fused_ref, wo_ref,
                     mkeys_t_ref, mv_wo_ref,
                     w1_ref, b1_ref, w2_ref, vecs_ref,
                     model_vecs_ref, lm_w_ref,
                     out_ref):
    mv = model_vecs_ref[...]                                     # (4, H)
    # embeddings LayerNorm (dropout = identity in eval mode)
    h = _layer_norm(x_ref[...], mv[0:1, :], mv[1:2, :])          # (B*S, H)

    # Hoisted once: additive mask for the head-stacked score slab.  Rows/cols
    # index contiguous (batch, head) blocks of size SEQ; cross-block pairs get
    # -1e9 (exp underflows to exactly 0), on-block pairs get the padding mask.
    row = jax.lax.broadcasted_iota(jnp.int32, (BNS, BNS), 0)
    col = jax.lax.broadcasted_iota(jnp.int32, (BNS, BNS), 1)
    blk_mask = ~(SEQ - 1)
    same_block = (row & blk_mask) == (col & blk_mask)
    mask_slab = jnp.where(same_block, mask_cols_ref[...], OFF_BLOCK)

    for l in range(NUM_LAYERS):                                  # static unroll
        # ---- fused Q|K|V|memory-query projection (scales pre-folded) --------
        proj = jnp.dot(h, w_fused_ref[l],
                       preferred_element_type=jnp.float32) + b_fused_ref[l]
        q = proj[:, 0:HIDDEN]
        k = proj[:, HIDDEN:2 * HIDDEN]
        v = proj[:, 2 * HIDDEN:3 * HIDDEN]
        mq = proj[:, 3 * HIDDEN:3 * HIDDEN + KEY_DIM]

        # ---- attention: all (batch, head) blocks in ONE score matmul --------
        qs = _stack_heads(q)                                     # (BNS, HD)
        ks = _stack_heads(k)
        vs = _stack_heads(v)
        ss = jax.lax.dot_general(qs, ks, (((1,), (1,)), ((), ())),
                                 preferred_element_type=jnp.float32)  # (BNS, BNS)
        p = _softmax_rows(ss + mask_slab)                        # exact per block
        ctx = _unstack_ctx(
            jnp.dot(p, vs, preferred_element_type=jnp.float32))  # (B*S, H)
        attn_out = jnp.dot(ctx, wo_ref[l],
                           preferred_element_type=jnp.float32)

        # ---- ParameterMemoryBank (keys pre-transposed, vals@Wout pre-folded) -
        ms = jnp.dot(mq, mkeys_t_ref[l], preferred_element_type=jnp.float32)
        mem_out = jnp.dot(_softmax_rows(ms), mv_wo_ref[l],
                          preferred_element_type=jnp.float32)

        # ---- combine + LiquidMLP + residual LayerNorm ------------------------
        vecs = vecs_ref[l]                                       # (4, H)
        combined = attn_out + mem_out + vecs[0:1, :]             # + (bo + bmo)
        h1 = jnp.dot(combined, w1_ref[l],
                     preferred_element_type=jnp.float32) + b1_ref[l]
        # TODO(synk): PyTorch nn.GELU defaults to exact erf; tanh-GELU is used
        # here (and in the reference below) for clean Mosaic lowering.
        h1 = jax.nn.gelu(h1, approximate=True)
        mlp_out = jnp.dot(h1, w2_ref[l],
                          preferred_element_type=jnp.float32) + vecs[1:2, :]
        h = _layer_norm(mlp_out + combined, vecs[2:3, :], vecs[3:4, :])

    # ---- final LayerNorm + tied lm_head (128-lane dense output store) --------
    h = _layer_norm(h, mv[2:3, :], mv[3:4, :])
    out_ref[...] = jnp.dot(h, lm_w_ref[...], preferred_element_type=jnp.float32)


# ------------------------------ weight packing ---------------------------------
def pack_layer_weights(layers):
    """Fold scales / fuse projections / stack all layers along a leading dim."""
    sq = 1.0 / math.sqrt(HEAD_DIM)
    sm = 1.0 / math.sqrt(KEY_DIM)

    def stack(fn):
        return jnp.stack([fn(p) for p in layers], axis=0)

    w_fused = stack(lambda p: jnp.concatenate(
        [p["wq"] * sq, p["wk"], p["wv"], p["wmq"] * sm], axis=1))       # (L,H,112)
    b_fused = stack(lambda p: jnp.concatenate(
        [p["bq"] * sq, p["bk"], p["bv"], p["bmq"] * sm], axis=1))       # (L,1,112)
    wo = stack(lambda p: p["wo"])                                       # (L,H,H)
    mkeys_t = stack(lambda p: p["mem_keys"].T)                          # (L,KD,M)
    mv_wo = stack(lambda p: p["mem_vals"] @ p["wmo"])                   # (L,M,H)
    w1 = stack(lambda p: p["w1"])                                       # (L,H,I)
    b1 = stack(lambda p: p["b1"])                                       # (L,1,I)
    w2 = stack(lambda p: p["w2"])                                       # (L,I,H)
    vecs = stack(lambda p: jnp.concatenate(
        [p["bo"] + p["bmo"], p["b2"], p["gamma"], p["beta"]], axis=0))  # (L,4,H)
    return [w_fused, b_fused, wo, mkeys_t, mv_wo, w1, b1, w2, vecs]


def _full_spec(shape):
    if len(shape) == 2:
        return pl.BlockSpec(shape, lambda i: (0, 0))
    return pl.BlockSpec(shape, lambda i: (0, 0, 0))


# --------------------------------- wrapper --------------------------------------
@jax.jit
def quasar_forward(input_ids, params):
    B, S = input_ids.shape
    assert (B, S) == (BATCH, SEQ)

    # ---- embeddings (gathers stay in the JAX wrapper) ---------------------------
    # TODO(synk): word/position/token_type embedding gathers stay in the wrapper;
    # the kernel starts from the summed embeddings.
    we = params["word_emb"]
    emb = (we[input_ids]
           + params["pos_emb"][:S][None, :, :]
           + params["type_emb"][0][None, None, :])
    x2d = emb.reshape(BS, HIDDEN).astype(jnp.float32)

    # additive padding mask (attention_mask=None path of QuasarModel.forward),
    # passed compactly as one row per stacked score column
    attn_add = (1.0 - (input_ids != PAD_ID).astype(jnp.float32)) * -10000.0
    mask_cols = jnp.broadcast_to(attn_add[:, None, :],
                                 (BATCH, NUM_HEADS, SEQ)).reshape(1, BNS)

    layer_w = pack_layer_weights(params["layers"])
    model_vecs = jnp.concatenate([params["emb_ln_g"], params["emb_ln_b"],
                                  params["f_ln_g"], params["f_ln_b"]], axis=0)
    lm_w = we.T.astype(jnp.float32)                    # tied lm_head weight (H, V)

    operands = [x2d, mask_cols] + layer_w + [model_vecs, lm_w]

    logits = pl.pallas_call(
        quasar_lm_kernel,
        out_shape=jax.ShapeDtypeStruct((BS, VOCAB), jnp.float32),
        grid_spec=pltpu.PrefetchScalarGridSpec(
            num_scalar_prefetch=0,
            grid=(1,),                                  # whole model in one step
            in_specs=[_full_spec(op.shape) for op in operands],
            out_specs=_full_spec((BS, VOCAB)),
        ),
        compiler_params=pltpu.CompilerParams(
            dimension_semantics=("arbitrary",),
        ),
    )(*operands)
    return logits.reshape(BATCH, SEQ, VOCAB)


# ----------------------------- pure-JAX reference -------------------------------
def _ln_ref(x, g, b):
    mu = jnp.mean(x, axis=-1, keepdims=True)
    var = jnp.mean((x - mu) ** 2, axis=-1, keepdims=True)
    return (x - mu) * jax.lax.rsqrt(var + LN_EPS) * g + b


def quasar_forward_ref(input_ids, params):
    B, S = input_ids.shape
    we = params["word_emb"]
    emb = (we[input_ids]
           + params["pos_emb"][:S][None, :, :]
           + params["type_emb"][0][None, None, :])
    h = _ln_ref(emb, params["emb_ln_g"][0], params["emb_ln_b"][0])
    attn_add = (1.0 - (input_ids != PAD_ID).astype(jnp.float32)) * -10000.0

    for p in params["layers"]:
        q = h @ p["wq"] + p["bq"][0]
        k = h @ p["wk"] + p["bk"][0]
        v = h @ p["wv"] + p["bv"][0]
        qh = q.reshape(B, S, NUM_HEADS, HEAD_DIM).transpose(0, 2, 1, 3)
        kh = k.reshape(B, S, NUM_HEADS, HEAD_DIM).transpose(0, 2, 1, 3)
        vh = v.reshape(B, S, NUM_HEADS, HEAD_DIM).transpose(0, 2, 1, 3)
        s = jnp.einsum("bhqd,bhkd->bhqk", qh, kh) / math.sqrt(HEAD_DIM)
        s = s + attn_add[:, None, None, :]
        pr = jax.nn.softmax(s, axis=-1)
        ctx = jnp.einsum("bhqk,bhkd->bhqd", pr, vh)
        ctx = ctx.transpose(0, 2, 1, 3).reshape(B, S, HIDDEN)
        attn_out = ctx @ p["wo"] + p["bo"][0]

        mq = h @ p["wmq"] + p["bmq"][0]
        ms = jnp.einsum("bsk,mk->bsm", mq, p["mem_keys"]) / math.sqrt(KEY_DIM)
        mem_out = (jax.nn.softmax(ms, -1) @ p["mem_vals"]) @ p["wmo"] + p["bmo"][0]

        combined = attn_out + mem_out
        h1 = jax.nn.gelu(combined @ p["w1"] + p["b1"][0], approximate=True)
        mlp_out = h1 @ p["w2"] + p["b2"][0]
        h = _ln_ref(mlp_out + combined, p["gamma"][0], p["beta"][0])

    h = _ln_ref(h, params["f_ln_g"][0], params["f_ln_b"][0])
    return h @ we.T


# ----------------------------------- main ----------------------------------------
if __name__ == "__main__":
    key = jax.random.PRNGKey(0)
    kit = iter(jax.random.split(key, 256))

    def init(shape, scale=0.05):
        return (scale * jax.random.normal(next(kit), shape)).astype(jnp.float32)

    def layer_params():
        return {
            "wq": init((HIDDEN, HIDDEN)), "bq": init((1, HIDDEN)),
            "wk": init((HIDDEN, HIDDEN)), "bk": init((1, HIDDEN)),
            "wv": init((HIDDEN, HIDDEN)), "bv": init((1, HIDDEN)),
            "wo": init((HIDDEN, HIDDEN)), "bo": init((1, HIDDEN)),
            "mem_keys": init((MEM_SLOTS, KEY_DIM)),
            "mem_vals": init((MEM_SLOTS, VALUE_DIM)),
            "wmq": init((HIDDEN, KEY_DIM)), "bmq": init((1, KEY_DIM)),
            "wmo": init((VALUE_DIM, HIDDEN)), "bmo": init((1, HIDDEN)),
            "w1": init((HIDDEN, INTERMEDIATE)), "b1": init((1, INTERMEDIATE)),
            "w2": init((INTERMEDIATE, HIDDEN)), "b2": init((1, HIDDEN)),
            "gamma": jnp.ones((1, HIDDEN), jnp.float32),
            "beta": jnp.zeros((1, HIDDEN), jnp.float32),
        }

    params = {
        "word_emb": init((VOCAB, HIDDEN)),
        "pos_emb": init((MAX_POS, HIDDEN)),
        "type_emb": init((TYPE_VOCAB, HIDDEN)),
        "emb_ln_g": jnp.ones((1, HIDDEN), jnp.float32),
        "emb_ln_b": jnp.zeros((1, HIDDEN), jnp.float32),
        "f_ln_g": jnp.ones((1, HIDDEN), jnp.float32),
        "f_ln_b": jnp.zeros((1, HIDDEN), jnp.float32),
        "layers": [layer_params() for _ in range(NUM_LAYERS)],
    }

    input_ids = jax.random.randint(next(kit), (BATCH, SEQ), 1, VOCAB,
                                   dtype=jnp.int32)
    input_ids = input_ids.at[1, SEQ - 2:].set(PAD_ID)   # exercise padding mask

    logits = quasar_forward(input_ids, params)
    logits = jax.block_until_ready(logits)

    ref = quasar_forward_ref(input_ids, params)
    assert logits.shape == (BATCH, SEQ, VOCAB)
    err = float(jnp.max(jnp.abs(logits - ref)))
    assert jnp.allclose(logits, ref, atol=2e-3, rtol=2e-3), (
        f"mismatch: max abs err {err}")
    print("KERNEL_OK")
</pallas_src>

<mosaic_0001>
module attributes {stable_mosaic.version = 11 : i64} {
  func.func @quasar_lm_kernel(%arg0: i32, %arg1: memref<16x32xf32, #tpu.memory_space<vmem>>, %arg2: memref<1x64xf32, #tpu.memory_space<vmem>>, %arg3: memref<4x32x112xf32, #tpu.memory_space<vmem>>, %arg4: memref<4x1x112xf32, #tpu.memory_space<vmem>>, %arg5: memref<4x32x32xf32, #tpu.memory_space<vmem>>, %arg6: memref<4x16x16xf32, #tpu.memory_space<vmem>>, %arg7: memref<4x16x32xf32, #tpu.memory_space<vmem>>, %arg8: memref<4x32x64xf32, #tpu.memory_space<vmem>>, %arg9: memref<4x1x64xf32, #tpu.memory_space<vmem>>, %arg10: memref<4x64x32xf32, #tpu.memory_space<vmem>>, %arg11: memref<4x4x32xf32, #tpu.memory_space<vmem>>, %arg12: memref<4x32xf32, #tpu.memory_space<vmem>>, %arg13: memref<32x128xf32, #tpu.memory_space<vmem>>, %arg14: memref<16x128xf32, #tpu.memory_space<vmem>>) attributes {dimension_semantics = [#tpu.dimension_semantics<arbitrary>], iteration_bounds = array<i64: 1>, scalar_prefetch = 0 : i64, scratch_operands = 0 : i64, tpu.core_type = #tpu.core_type<tc>, window_params = [{pipeline_mode = #tpu.pipeline_mode<synchronous>, transform_indices = @transform_0, window_bounds = array<i64: 16, 32>}, {pipeline_mode = #tpu.pipeline_mode<synchronous>, transform_indices = @transform_1, window_bounds = array<i64: 1, 64>}, {pipeline_mode = #tpu.pipeline_mode<synchronous>, transform_indices = @transform_2, window_bounds = array<i64: 4, 32, 112>}, {pipeline_mode = #tpu.pipeline_mode<synchronous>, transform_indices = @transform_3, window_bounds = array<i64: 4, 1, 112>}, {pipeline_mode = #tpu.pipeline_mode<synchronous>, transform_indices = @transform_4, window_bounds = array<i64: 4, 32, 32>}, {pipeline_mode = #tpu.pipeline_mode<synchronous>, transform_indices = @transform_5, window_bounds = array<i64: 4, 16, 16>}, {pipeline_mode = #tpu.pipeline_mode<synchronous>, transform_indices = @transform_6, window_bounds = array<i64: 4, 16, 32>}, {pipeline_mode = #tpu.pipeline_mode<synchronous>, transform_indices = @transform_7, window_bounds = array<i64: 4, 32, 64>}, {pipeline_mode = #tpu.pipeline_mode<synchronous>, transform_indices = @transform_8, window_bounds = array<i64: 4, 1, 64>}, {pipeline_mode = #tpu.pipeline_mode<synchronous>, transform_indices = @transform_9, window_bounds = array<i64: 4, 64, 32>}, {pipeline_mode = #tpu.pipeline_mode<synchronous>, transform_indices = @transform_10, window_bounds = array<i64: 4, 4, 32>}, {pipeline_mode = #tpu.pipeline_mode<synchronous>, transform_indices = @transform_11, window_bounds = array<i64: 4, 32>}, {pipeline_mode = #tpu.pipeline_mode<synchronous>, transform_indices = @transform_12, window_bounds = array<i64: 32, 128>}, {pipeline_mode = #tpu.pipeline_mode<synchronous>, transform_indices = @transform_13, window_bounds = array<i64: 16, 128>}]} {
    %c0 = arith.constant 0 : index
    %c0_0 = arith.constant 0 : index
    %0 = vector.load %arg12[%c0, %c0_0] : memref<4x32xf32, #tpu.memory_space<vmem>>, vector<4x32xf32>
    %c0_1 = arith.constant 0 : index
    %c0_2 = arith.constant 0 : index
    %1 = vector.load %arg1[%c0_1, %c0_2] : memref<16x32xf32, #tpu.memory_space<vmem>>, vector<16x32xf32>
    %2 = vector.extract_strided_slice %0 {offsets = [0, 0], sizes = [1, 32], strides = [1, 1]} : vector<4x32xf32> to vector<1x32xf32>
    %3 = vector.extract_strided_slice %0 {offsets = [1, 0], sizes = [1, 32], strides = [1, 1]} : vector<4x32xf32> to vector<1x32xf32>
    %cst = arith.constant dense<0.000000e+00> : vector<16xf32>
    %4 = vector.multi_reduction <add>, %1, %cst [1] : vector<16x32xf32> to vector<16xf32>
    %5 = vector.shape_cast %4 : vector<16xf32> to vector<16x1xf32>
    %cst_3 = arith.constant 3.200000e+01 : f32
    %6 = vector.broadcast %cst_3 : f32 to vector<16x1xf32>
    %7 = arith.divf %5, %6 : vector<16x1xf32>
    %8 = vector.broadcast %7 : vector<16x1xf32> to vector<16x32xf32>
    %9 = arith.subf %1, %8 : vector<16x32xf32>
    %10 = arith.mulf %9, %9 : vector<16x32xf32>
    %cst_4 = arith.constant dense<0.000000e+00> : vector<16xf32>
    %11 = vector.multi_reduction <add>, %10, %cst_4 [1] : vector<16x32xf32> to vector<16xf32>
    %12 = vector.shape_cast %11 : vector<16xf32> to vector<16x1xf32>
    %cst_5 = arith.constant 3.200000e+01 : f32
    %13 = vector.broadcast %cst_5 : f32 to vector<16x1xf32>
    %14 = arith.divf %12, %13 : vector<16x1xf32>
    %15 = vector.broadcast %7 : vector<16x1xf32> to vector<16x32xf32>
    %16 = arith.subf %1, %15 : vector<16x32xf32>
    %cst_6 = arith.constant 9.99999996E-13 : f32
    %17 = vector.broadcast %cst_6 : f32 to vector<16x1xf32>
    %18 = arith.addf %14, %17 : vector<16x1xf32>
    %19 = math.rsqrt %18 : vector<16x1xf32>
    %20 = vector.broadcast %19 : vector<16x1xf32> to vector<16x32xf32>
    %21 = arith.mulf %16, %20 : vector<16x32xf32>
    %22 = vector.broadcast %2 : vector<1x32xf32> to vector<16x32xf32>
    %23 = arith.mulf %21, %22 : vector<16x32xf32>
    %24 = vector.broadcast %3 : vector<1x32xf32> to vector<16x32xf32>
    %25 = arith.addf %23, %24 : vector<16x32xf32>
    %26 = tpu.iota {dimensions = array<i32: 0>} : vector<64x64xi32>
    %27 = tpu.iota {dimensions = array<i32: 1>} : vector<64x64xi32>
    %c-8_i32 = arith.constant -8 : i32
    %28 = vector.broadcast %c-8_i32 : i32 to vector<64x64xi32>
    %29 = arith.andi %26, %28 : vector<64x64xi32>
    %c-8_i32_7 = arith.constant -8 : i32
    %30 = vector.broadcast %c-8_i32_7 : i32 to vector<64x64xi32>
    %31 = arith.andi %27, %30 : vector<64x64xi32>
    %32 = arith.cmpi eq, %29, %31 : vector<64x64xi32>
    %c0_8 = arith.constant 0 : index
    %c0_9 = arith.constant 0 : index
    %33 = vector.load %arg2[%c0_8, %c0_9] : memref<1x64xf32, #tpu.memory_space<vmem>>, vector<1x64xf32>
    %cst_10 = arith.constant -1.000000e+09 : f32
    %34 = vector.shape_cast %33 : vector<1x64xf32> to vector<1x64xf32>
    %35 = vector.broadcast %34 : vector<1x64xf32> to vector<64x64xf32>
    %36 = vector.broadcast %cst_10 : f32 to vector<64x64xf32>
    %37 = arith.select %32, %35, %36 : vector<64x64xi1>, vector<64x64xf32>
    %c0_11 = arith.constant 0 : index
    %c0_12 = arith.constant 0 : index
    %c0_13 = arith.constant 0 : index
    %38 = vector.load %arg3[%c0_11, %c0_12, %c0_13] : memref<4x32x112xf32, #tpu.memory_space<vmem>>, vector<1x32x112xf32>
    %39 = vector.shape_cast %38 : vector<1x32x112xf32> to vector<32x112xf32>
    %cst_14 = arith.constant dense<0.000000e+00> : vector<16x112xf32>
    %40 = tpu.matmul %25, %39, %cst_14 {dimension_numbers = #tpu.dot_dimension_numbers<[1], [0], [0], [1], [0, 0, 1, 1], [], []>} : vector<16x32xf32>, vector<32x112xf32>, vector<16x112xf32> -> vector<16x112xf32>
    %c0_15 = arith.constant 0 : index
    %c0_16 = arith.constant 0 : index
    %c0_17 = arith.constant 0 : index
    %41 = vector.load %arg4[%c0_15, %c0_16, %c0_17] : memref<4x1x112xf32, #tpu.memory_space<vmem>>, vector<1x1x112xf32>
    %42 = vector.shape_cast %41 : vector<1x1x112xf32> to vector<1x112xf32>
    %43 = vector.broadcast %42 : vector<1x112xf32> to vector<16x112xf32>
    %44 = arith.addf %40, %43 : vector<16x112xf32>
    %45 = vector.extract_strided_slice %44 {offsets = [0, 0], sizes = [16, 32], strides = [1, 1]} : vector<16x112xf32> to vector<16x32xf32>
    %46 = vector.extract_strided_slice %44 {offsets = [0, 32], sizes = [16, 32], strides = [1, 1]} : vector<16x112xf32> to vector<16x32xf32>
    %47 = vector.extract_strided_slice %44 {offsets = [0, 64], sizes = [16, 32], strides = [1, 1]} : vector<16x112xf32> to vector<16x32xf32>
    %48 = vector.extract_strided_slice %44 {offsets = [0, 96], sizes = [16, 16], strides = [1, 1]} : vector<16x112xf32> to vector<16x16xf32>
    %49 = vector.extract_strided_slice %45 {offsets = [0, 0], sizes = [8, 8], strides = [1, 1]} : vector<16x32xf32> to vector<8x8xf32>
    %50 = vector.extract_strided_slice %45 {offsets = [0, 8], sizes = [8, 8], strides = [1, 1]} : vector<16x32xf32> to vector<8x8xf32>
    %51 = vector.extract_strided_slice %45 {offsets = [0, 16], sizes = [8, 8], strides = [1, 1]} : vector<16x32xf32> to vector<8x8xf32>
    %52 = vector.extract_strided_slice %45 {offsets = [0, 24], sizes = [8, 8], strides = [1, 1]} : vector<16x32xf32> to vector<8x8xf32>
    %53 = vector.extract_strided_slice %45 {offsets = [8, 0], sizes = [8, 8], strides = [1, 1]} : vector<16x32xf32> to vector<8x8xf32>
    %54 = vector.extract_strided_slice %45 {offsets = [8, 8], sizes = [8, 8], strides = [1, 1]} : vector<16x32xf32> to vector<8x8xf32>
    %55 = vector.extract_strided_slice %45 {offsets = [8, 16], sizes = [8, 8], strides = [1, 1]} : vector<16x32xf32> to vector<8x8xf32>
    %56 = vector.extract_strided_slice %45 {offsets = [8, 24], sizes = [8, 8], strides = [1, 1]} : vector<16x32xf32> to vector<8x8xf32>
    %57 = tpu.concatenate %49, %50, %51, %52, %53, %54, %55, %56 in 0 : vector<8x8xf32>, vector<8x8xf32>, vector<8x8xf32>, vector<8x8xf32>, vector<8x8xf32>, vector<8x8xf32>, vector<8x8xf32>, vector<8x8xf32> -> vector<64x8xf32>
    %58 = vector.extract_strided_slice %46 {offsets = [0, 0], sizes = [8, 8], strides = [1, 1]} : vector<16x32xf32> to vector<8x8xf32>
    %59 = vector.extract_strided_slice %46 {offsets = [0, 8], sizes = [8, 8], strides = [1, 1]} : vector<16x32xf32> to vector<8x8xf32>
    %60 = vector.extract_strided_slice %46 {offsets = [0, 16], sizes = [8, 8], strides = [1, 1]} : vector<16x32xf32> to vector<8x8xf32>
    %61 = vector.extract_strided_slice %46 {offsets = [0, 24], sizes = [8, 8], strides = [1, 1]} : vector<16x32xf32> to vector<8x8xf32>
    %62 = vector.extract_strided_slice %46 {offsets = [8, 0], sizes = [8, 8], strides = [1, 1]} : vector<16x32xf32> to vector<8x8xf32>
    %63 = vector.extract_strided_slice %46 {offsets = [8, 8], sizes = [8, 8], strides = [1, 1]} : vector<16x32xf32> to vector<8x8xf32>
    %64 = vector.extract_strided_slice %46 {offsets = [8, 16], sizes = [8, 8], strides = [1, 1]} : vector<16x32xf32> to vector<8x8xf32>
    %65 = vector.extract_strided_slice %46 {offsets = [8, 24], sizes = [8, 8], strides = [1, 1]} : vector<16x32xf32> to vector<8x8xf32>
    %66 = tpu.concatenate %58, %59, %60, %61, %62, %63, %64, %65 in 0 : vector<8x8xf32>, vector<8x8xf32>, vector<8x8xf32>, vector<8x8xf32>, vector<8x8xf32>, vector<8x8xf32>, vector<8x8xf32>, vector<8x8xf32> -> vector<64x8xf32>
    %67 = vector.extract_strided_slice %47 {offsets = [0, 0], sizes = [8, 8], strides = [1, 1]} : vector<16x32xf32> to vector<8x8xf32>
    %68 = vector.extract_strided_slice %47 {offsets = [0, 8], sizes = [8, 8], strides = [1, 1]} : vector<16x32xf32> to vector<8x8xf32>
    %69 = vector.extract_strided_slice %47 {offsets = [0, 16], sizes = [8, 8], strides = [1, 1]} : vector<16x32xf32> to vector<8x8xf32>
    %70 = vector.extract_strided_slice %47 {offsets = [0, 24], sizes = [8, 8], strides = [1, 1]} : vector<16x32xf32> to vector<8x8xf32>
    %71 = vector.extract_strided_slice %47 {offsets = [8, 0], sizes = [8, 8], strides = [1, 1]} : vector<16x32xf32> to vector<8x8xf32>
    %72 = vector.extract_strided_slice %47 {offsets = [8, 8], sizes = [8, 8], strides = [1, 1]} : vector<16x32xf32> to vector<8x8xf32>
    %73 = vector.extract_strided_slice %47 {offsets = [8, 16], sizes = [8, 8], strides = [1, 1]} : vector<16x32xf32> to vector<8x8xf32>
    %74 = vector.extract_strided_slice %47 {offsets = [8, 24], sizes = [8, 8], strides = [1, 1]} : vector<16x32xf32> to vector<8x8xf32>
    %75 = tpu.concatenate %67, %68, %69, %70, %71, %72, %73, %74 in 0 : vector<8x8xf32>, vector<8x8xf32>, vector<8x8xf32>, vector<8x8xf32>, vector<8x8xf32>, vector<8x8xf32>, vector<8x8xf32>, vector<8x8xf32> -> vector<64x8xf32>
    %cst_18 = arith.constant dense<0.000000e+00> : vector<64x64xf32>
    %76 = tpu.matmul %57, %66, %cst_18 {dimension_numbers = #tpu.dot_dimension_numbers<[1], [1], [0], [0], [0, 0, 1, 0], [], []>} : vector<64x8xf32>, vector<64x8xf32>, vector<64x64xf32> -> vector<64x64xf32>
    %77 = arith.addf %76, %37 : vector<64x64xf32>
    %cst_19 = arith.constant dense<0xFF800000> : vector<64xf32>
    %78 = vector.multi_reduction <maximumf>, %77, %cst_19 [1] : vector<64x64xf32> to vector<64xf32>
    %79 = vector.shape_cast %78 : vector<64xf32> to vector<64x1xf32>
    %80 = vector.broadcast %79 : vector<64x1xf32> to vector<64x64xf32>
    %81 = arith.subf %77, %80 : vector<64x64xf32>
    %82 = math.exp %81 : vector<64x64xf32>
    %cst_20 = arith.constant dense<0.000000e+00> : vector<64xf32>
    %83 = vector.multi_reduction <add>, %82, %cst_20 [1] : vector<64x64xf32> to vector<64xf32>
    %84 = vector.shape_cast %83 : vector<64xf32> to vector<64x1xf32>
    %85 = tpu.reciprocal %84 {approx = true} : vector<64x1xf32> -> vector<64x1xf32>
    %86 = arith.mulf %84, %85 : vector<64x1xf32>
    %cst_21 = arith.constant 2.000000e+00 : f32
    %87 = vector.broadcast %cst_21 : f32 to vector<64x1xf32>
    %88 = arith.subf %87, %86 : vector<64x1xf32>
    %89 = arith.mulf %85, %88 : vector<64x1xf32>
    %90 = vector.broadcast %89 : vector<64x1xf32> to vector<64x64xf32>
    %91 = arith.mulf %82, %90 : vector<64x64xf32>
    %cst_22 = arith.constant dense<0.000000e+00> : vector<64x8xf32>
    %92 = tpu.matmul %91, %75, %cst_22 {dimension_numbers = #tpu.dot_dimension_numbers<[1], [0], [0], [1], [0, 0, 1, 1], [], []>} : vector<64x64xf32>, vector<64x8xf32>, vector<64x8xf32> -> vector<64x8xf32>
    %93 = vector.extract_strided_slice %92 {offsets = [0, 0], sizes = [8, 8], strides = [1, 1]} : vector<64x8xf32> to vector<8x8xf32>
    %94 = vector.extract_strided_slice %92 {offsets = [8, 0], sizes = [8, 8], strides = [1, 1]} : vector<64x8xf32> to vector<8x8xf32>
    %95 = vector.extract_strided_slice %92 {offsets = [16, 0], sizes = [8, 8], strides = [1, 1]} : vector<64x8xf32> to vector<8x8xf32>
    %96 = vector.extract_strided_slice %92 {offsets = [24, 0], sizes = [8, 8], strides = [1, 1]} : vector<64x8xf32> to vector<8x8xf32>
    %97 = tpu.concatenate %93, %94, %95, %96 in 1 : vector<8x8xf32>, vector<8x8xf32>, vector<8x8xf32>, vector<8x8xf32> -> vector<8x32xf32>
    %98 = vector.extract_strided_slice %92 {offsets = [32, 0], sizes = [8, 8], strides = [1, 1]} : vector<64x8xf32> to vector<8x8xf32>
    %99 = vector.extract_strided_slice %92 {offsets = [40, 0], sizes = [8, 8], strides = [1, 1]} : vector<64x8xf32> to vector<8x8xf32>
    %100 = vector.extract_strided_slice %92 {offsets = [48, 0], sizes = [8, 8], strides = [1, 1]} : vector<64x8xf32> to vector<8x8xf32>
    %101 = vector.extract_strided_slice %92 {offsets = [56, 0], sizes = [8, 8], strides = [1, 1]} : vector<64x8xf32> to vector<8x8xf32>
    %102 = tpu.concatenate %98, %99, %100, %101 in 1 : vector<8x8xf32>, vector<8x8xf32>, vector<8x8xf32>, vector<8x8xf32> -> vector<8x32xf32>
    %103 = tpu.concatenate %97, %102 in 0 : vector<8x32xf32>, vector<8x32xf32> -> vector<16x32xf32>
    %c0_23 = arith.constant 0 : index
    %c0_24 = arith.constant 0 : index
    %c0_25 = arith.constant 0 : index
    %104 = vector.load %arg5[%c0_23, %c0_24, %c0_25] : memref<4x32x32xf32, #tpu.memory_space<vmem>>, vector<1x32x32xf32>
    %105 = vector.shape_cast %104 : vector<1x32x32xf32> to vector<32x32xf32>
    %cst_26 = arith.constant dense<0.000000e+00> : vector<16x32xf32>
    %106 = tpu.matmul %103, %105, %cst_26 {dimension_numbers = #tpu.dot_dimension_numbers<[1], [0], [0], [1], [0, 0, 1, 1], [], []>} : vector<16x32xf32>, vector<32x32xf32>, vector<16x32xf32> -> vector<16x32xf32>
    %c0_27 = arith.constant 0 : index
    %c0_28 = arith.constant 0 : index
    %c0_29 = arith.constant 0 : index
    %107 = vector.load %arg6[%c0_27, %c0_28, %c0_29] : memref<4x16x16xf32, #tpu.memory_space<vmem>>, vector<1x16x16xf32>
    %108 = vector.shape_cast %107 : vector<1x16x16xf32> to vector<16x16xf32>
    %cst_30 = arith.constant dense<0.000000e+00> : vector<16x16xf32>
    %109 = tpu.matmul %48, %108, %cst_30 {dimension_numbers = #tpu.dot_dimension_numbers<[1], [0], [0], [1], [0, 0, 1, 1], [], []>} : vector<16x16xf32>, vector<16x16xf32>, vector<16x16xf32> -> vector<16x16xf32>
    %cst_31 = arith.constant dense<0xFF800000> : vector<16xf32>
    %110 = vector.multi_reduction <maximumf>, %109, %cst_31 [1] : vector<16x16xf32> to vector<16xf32>
    %111 = vector.shape_cast %110 : vector<16xf32> to vector<16x1xf32>
    %112 = vector.broadcast %111 : vector<16x1xf32> to vector<16x16xf32>
    %113 = arith.subf %109, %112 : vector<16x16xf32>
    %114 = math.exp %113 : vector<16x16xf32>
    %cst_32 = arith.constant dense<0.000000e+00> : vector<16xf32>
    %115 = vector.multi_reduction <add>, %114, %cst_32 [1] : vector<16x16xf32> to vector<16xf32>
    %116 = vector.shape_cast %115 : vector<16xf32> to vector<16x1xf32>
    %117 = tpu.reciprocal %116 {approx = true} : vector<16x1xf32> -> vector<16x1xf32>
    %118 = arith.mulf %116, %117 : vector<16x1xf32>
    %cst_33 = arith.constant 2.000000e+00 : f32
    %119 = vector.broadcast %cst_33 : f32 to vector<16x1xf32>
    %120 = arith.subf %119, %118 : vector<16x1xf32>
    %121 = arith.mulf %117, %120 : vector<16x1xf32>
    %122 = vector.broadcast %121 : vector<16x1xf32> to vector<16x16xf32>
    %123 = arith.mulf %114, %122 : vector<16x16xf32>
    %c0_34 = arith.constant 0 : index
    %c0_35 = arith.constant 0 : index
    %c0_36 = arith.constant 0 : index
    %124 = vector.load %arg7[%c0_34, %c0_35, %c0_36] : memref<4x16x32xf32, #tpu.memory_space<vmem>>, vector<1x16x32xf32>
    %125 = vector.shape_cast %124 : vector<1x16x32xf32> to vector<16x32xf32>
    %cst_37 = arith.constant dense<0.000000e+00> : vector<16x32xf32>
    %126 = tpu.matmul %123, %125, %cst_37 {dimension_numbers = #tpu.dot_dimension_numbers<[1], [0], [0], [1], [0, 0, 1, 1], [], []>} : vector<16x16xf32>, vector<16x32xf32>, vector<16x32xf32> -> vector<16x32xf32>
    %c0_38 = arith.constant 0 : index
    %c0_39 = arith.constant 0 : index
    %c0_40 = arith.constant 0 : index
    %127 = vector.load %arg11[%c0_38, %c0_39, %c0_40] : memref<4x4x32xf32, #tpu.memory_space<vmem>>, vector<1x4x32xf32>
    %128 = vector.shape_cast %127 : vector<1x4x32xf32> to vector<4x32xf32>
    %129 = arith.addf %106, %126 : vector<16x32xf32>
    %130 = vector.extract_strided_slice %128 {offsets = [0, 0], sizes = [1, 32], strides = [1, 1]} : vector<4x32xf32> to vector<1x32xf32>
    %131 = vector.broadcast %130 : vector<1x32xf32> to vector<16x32xf32>
    %132 = arith.addf %129, %131 : vector<16x32xf32>
    %c0_41 = arith.constant 0 : index
    %c0_42 = arith.constant 0 : index
    %c0_43 = arith.constant 0 : index
    %133 = vector.load %arg8[%c0_41, %c0_42, %c0_43] : memref<4x32x64xf32, #tpu.memory_space<vmem>>, vector<1x32x64xf32>
    %134 = vector.shape_cast %133 : vector<1x32x64xf32> to vector<32x64xf32>
    %cst_44 = arith.constant dense<0.000000e+00> : vector<16x64xf32>
    %135 = tpu.matmul %132, %134, %cst_44 {dimension_numbers = #tpu.dot_dimension_numbers<[1], [0], [0], [1], [0, 0, 1, 1], [], []>} : vector<16x32xf32>, vector<32x64xf32>, vector<16x64xf32> -> vector<16x64xf32>
    %c0_45 = arith.constant 0 : index
    %c0_46 = arith.constant 0 : index
    %c0_47 = arith.constant 0 : index
    %136 = vector.load %arg9[%c0_45, %c0_46, %c0_47] : memref<4x1x64xf32, #tpu.memory_space<vmem>>, vector<1x1x64xf32>
    %137 = vector.shape_cast %136 : vector<1x1x64xf32> to vector<1x64xf32>
    %138 = vector.broadcast %137 : vector<1x64xf32> to vector<16x64xf32>
    %139 = arith.addf %135, %138 : vector<16x64xf32>
    %140 = arith.mulf %139, %139 : vector<16x64xf32>
    %141 = arith.mulf %139, %140 : vector<16x64xf32>
    %cst_48 = arith.constant 4.471500e-02 : f32
    %142 = vector.broadcast %cst_48 : f32 to vector<16x64xf32>
    %143 = arith.mulf %142, %141 : vector<16x64xf32>
    %144 = arith.addf %139, %143 : vector<16x64xf32>
    %cst_49 = arith.constant 0.797884583 : f32
    %145 = vector.broadcast %cst_49 : f32 to vector<16x64xf32>
    %146 = arith.mulf %145, %144 : vector<16x64xf32>
    %147 = math.tanh %146 : vector<16x64xf32>
    %cst_50 = arith.constant 1.000000e+00 : f32
    %148 = vector.broadcast %cst_50 : f32 to vector<16x64xf32>
    %149 = arith.addf %148, %147 : vector<16x64xf32>
    %cst_51 = arith.constant 5.000000e-01 : f32
    %150 = vector.broadcast %cst_51 : f32 to vector<16x64xf32>
    %151 = arith.mulf %150, %149 : vector<16x64xf32>
    %152 = arith.mulf %139, %151 : vector<16x64xf32>
    %c0_52 = arith.constant 0 : index
    %c0_53 = arith.constant 0 : index
    %c0_54 = arith.constant 0 : index
    %153 = vector.load %arg10[%c0_52, %c0_53, %c0_54] : memref<4x64x32xf32, #tpu.memory_space<vmem>>, vector<1x64x32xf32>
    %154 = vector.shape_cast %153 : vector<1x64x32xf32> to vector<64x32xf32>
    %cst_55 = arith.constant dense<0.000000e+00> : vector<16x32xf32>
    %155 = tpu.matmul %152, %154, %cst_55 {dimension_numbers = #tpu.dot_dimension_numbers<[1], [0], [0], [1], [0, 0, 1, 1], [], []>} : vector<16x64xf32>, vector<64x32xf32>, vector<16x32xf32> -> vector<16x32xf32>
    %156 = vector.extract_strided_slice %128 {offsets = [1, 0], sizes = [1, 32], strides = [1, 1]} : vector<4x32xf32> to vector<1x32xf32>
    %157 = vector.broadcast %156 : vector<1x32xf32> to vector<16x32xf32>
    %158 = arith.addf %155, %157 : vector<16x32xf32>
    %159 = arith.addf %158, %132 : vector<16x32xf32>
    %160 = vector.extract_strided_slice %128 {offsets = [2, 0], sizes = [1, 32], strides = [1, 1]} : vector<4x32xf32> to vector<1x32xf32>
    %161 = vector.extract_strided_slice %128 {offsets = [3, 0], sizes = [1, 32], strides = [1, 1]} : vector<4x32xf32> to vector<1x32xf32>
    %cst_56 = arith.constant dense<0.000000e+00> : vector<16xf32>
    %162 = vector.multi_reduction <add>, %159, %cst_56 [1] : vector<16x32xf32> to vector<16xf32>
    %163 = vector.shape_cast %162 : vector<16xf32> to vector<16x1xf32>
    %cst_57 = arith.constant 3.200000e+01 : f32
    %164 = vector.broadcast %cst_57 : f32 to vector<16x1xf32>
    %165 = arith.divf %163, %164 : vector<16x1xf32>
    %166 = vector.broadcast %165 : vector<16x1xf32> to vector<16x32xf32>
    %167 = arith.subf %159, %166 : vector<16x32xf32>
    %168 = arith.mulf %167, %167 : vector<16x32xf32>
    %cst_58 = arith.constant dense<0.000000e+00> : vector<16xf32>
    %169 = vector.multi_reduction <add>, %168, %cst_58 [1] : vector<16x32xf32> to vector<16xf32>
    %170 = vector.shape_cast %169 : vector<16xf32> to vector<16x1xf32>
    %cst_59 = arith.constant 3.200000e+01 : f32
    %171 = vector.broadcast %cst_59 : f32 to vector<16x1xf32>
    %172 = arith.divf %170, %171 : vector<16x1xf32>
    %173 = vector.broadcast %165 : vector<16x1xf32> to vector<16x32xf32>
    %174 = arith.subf %159, %173 : vector<16x32xf32>
    %cst_60 = arith.constant 9.99999996E-13 : f32
    %175 = vector.broadcast %cst_60 : f32 to vector<16x1xf32>
    %176 = arith.addf %172, %175 : vector<16x1xf32>
    %177 = math.rsqrt %176 : vector<16x1xf32>
    %178 = vector.broadcast %177 : vector<16x1xf32> to vector<16x32xf32>
    %179 = arith.mulf %174, %178 : vector<16x32xf32>
    %180 = vector.broadcast %160 : vector<1x32xf32> to vector<16x32xf32>
    %181 = arith.mulf %179, %180 : vector<16x32xf32>
    %182 = vector.broadcast %161 : vector<1x32xf32> to vector<16x32xf32>
    %183 = arith.addf %181, %182 : vector<16x32xf32>
    %c1 = arith.constant 1 : index
    %c0_61 = arith.constant 0 : index
    %c0_62 = arith.constant 0 : index
    %184 = vector.load %arg3[%c1, %c0_61, %c0_62] : memref<4x32x112xf32, #tpu.memory_space<vmem>>, vector<1x32x112xf32>
    %185 = vector.shape_cast %184 : vector<1x32x112xf32> to vector<32x112xf32>
    %cst_63 = arith.constant dense<0.000000e+00> : vector<16x112xf32>
    %186 = tpu.matmul %183, %185, %cst_63 {dimension_numbers = #tpu.dot_dimension_numbers<[1], [0], [0], [1], [0, 0, 1, 1], [], []>} : vector<16x32xf32>, vector<32x112xf32>, vector<16x112xf32> -> vector<16x112xf32>
    %c1_64 = arith.constant 1 : index
    %c0_65 = arith.constant 0 : index
    %c0_66 = arith.constant 0 : index
    %187 = vector.load %arg4[%c1_64, %c0_65, %c0_66] : memref<4x1x112xf32, #tpu.memory_space<vmem>>, vector<1x1x112xf32>
    %188 = vector.shape_cast %187 : vector<1x1x112xf32> to vector<1x112xf32>
    %189 = vector.broadcast %188 : vector<1x112xf32> to vector<16x112xf32>
    %190 = arith.addf %186, %189 : vector<16x112xf32>
    %191 = vector.extract_strided_slice %190 {offsets = [0, 0], sizes = [16, 32], strides = [1, 1]} : vector<16x112xf32> to vector<16x32xf32>
    %192 = vector.extract_strided_slice %190 {offsets = [0, 32], sizes = [16, 32], strides = [1, 1]} : vector<16x112xf32> to vector<16x32xf32>
    %193 = vector.extract_strided_slice %190 {offsets = [0, 64], sizes = [16, 32], strides = [1, 1]} : vector<16x112xf32> to vector<16x32xf32>
    %194 = vector.extract_strided_slice %190 {offsets = [0, 96], sizes = [16, 16], strides = [1, 1]} : vector<16x112xf32> to vector<16x16xf32>
    %195 = vector.extract_strided_slice %191 {offsets = [0, 0], sizes = [8, 8], strides = [1, 1]} : vector<16x32xf32> to vector<8x8xf32>
    %196 = vector.extract_strided_slice %191 {offsets = [0, 8], sizes = [8, 8], strides = [1, 1]} : vector<16x32xf32> to vector<8x8xf32>
    %197 = vector.extract_strided_slice %191 {offsets = [0, 16], sizes = [8, 8], strides = [1, 1]} : vector<16x32xf32> to vector<8x8xf32>
    %198 = vector.extract_strided_slice %191 {offsets = [0, 24], sizes = [8, 8], strides = [1, 1]} : vector<16x32xf32> to vector<8x8xf32>
    %199 = vector.extract_strided_slice %191 {offsets = [8, 0], sizes = [8, 8], strides = [1, 1]} : vector<16x32xf32> to vector<8x8xf32>
    %200 = vector.extract_strided_slice %191 {offsets = [8, 8], sizes = [8, 8], strides = [1, 1]} : vector<16x32xf32> to vector<8x8xf32>
    %201 = vector.extract_strided_slice %191 {offsets = [8, 16], sizes = [8, 8], strides = [1, 1]} : vector<16x32xf32> to vector<8x8xf32>
    %202 = vector.extract_strided_slice %191 {offsets = [8, 24], sizes = [8, 8], strides = [1, 1]} : vector<16x32xf32> to vector<8x8xf32>
    %203 = tpu.concatenate %195, %196, %197, %198, %199, %200, %201, %202 in 0 : vector<8x8xf32>, vector<8x8xf32>, vector<8x8xf32>, vector<8x8xf32>, vector<8x8xf32>, vector<8x8xf32>, vector<8x8xf32>, vector<8x8xf32> -> vector<64x8xf32>
    %204 = vector.extract_strided_slice %192 {offsets = [0, 0], sizes = [8, 8], strides = [1, 1]} : vector<16x32xf32> to vector<8x8xf32>
    %205 = vector.extract_strided_slice %192 {offsets = [0, 8], sizes = [8, 8], strides = [1, 1]} : vector<16x32xf32> to vector<8x8xf32>
    %206 = vector.extract_strided_slice %192 {offsets = [0, 16], sizes = [8, 8], strides = [1, 1]} : vector<16x32xf32> to vector<8x8xf32>
    %207 = vector.extract_strided_slice %192 {offsets = [0, 24], sizes = [8, 8], strides = [1, 1]} : vector<16x32xf32> to vector<8x8xf32>
    %208 = vector.extract_strided_slice %192 {offsets = [8, 0], sizes = [8, 8], strides = [1, 1]} : vector<16x32xf32> to vector<8x8xf32>
    %209 = vector.extract_strided_slice %192 {offsets = [8, 8], sizes = [8, 8], strides = [1, 1]} : vector<16x32xf32> to vector<8x8xf32>
    %210 = vector.extract_strided_slice %192 {offsets = [8, 16], sizes = [8, 8], strides = [1, 1]} : vector<16x32xf32> to vector<8x8xf32>
    %211 = vector.extract_strided_slice %192 {offsets = [8, 24], sizes = [8, 8], strides = [1, 1]} : vector<16x32xf32> to vector<8x8xf32>
    %212 = tpu.concatenate %204, %205, %206, %207, %208, %209, %210, %211 in 0 : vector<8x8xf32>, vector<8x8xf32>, vector<8x8xf32>, vector<8x8xf32>, vector<8x8xf32>, vector<8x8xf32>, vector<8x8xf32>, vector<8x8xf32> -> vector<64x8xf32>
    %213 = vector.extract_strided_slice %193 {offsets = [0, 0], sizes = [8, 8], strides = [1, 1]} : vector<16x32xf32> to vector<8x8xf32>
    %214 = vector.extract_strided_slice %193 {offsets = [0, 8], sizes = [8, 8], strides = [1, 1]} : vector<16x32xf32> to vector<8x8xf32>
    %215 = vector.extract_strided_slice %193 {offsets = [0, 16], sizes = [8, 8], strides = [1, 1]} : vector<16x32xf32> to vector<8x8xf32>
    %216 = vector.extract_strided_slice %193 {offsets = [0, 24], sizes = [8, 8], strides = [1, 1]} : vector<16x32xf32> to vector<8x8xf32>
    %217 = vector.extract_strided_slice %193 {offsets = [8, 0], sizes = [8, 8], strides = [1, 1]} : vector<16x32xf32> to vector<8x8xf32>
    %218 = vector.extract_strided_slice %193 {offsets = [8, 8], sizes = [8, 8], strides = [1, 1]} : vector<16x32xf32> to vector<8x8xf32>
    %219 = vector.extract_strided_slice %193 {offsets = [8, 16], sizes = [8, 8], strides = [1, 1]} : vector<16x32xf32> to vector<8x8xf32>
    %220 = vector.extract_strided_slice %193 {offsets = [8, 24], sizes = [8, 8], strides = [1, 1]} : vector<16x32xf32> to vector<8x8xf32>
    %221 = tpu.concatenate %213, %214, %215, %216, %217, %218, %219, %220 in 0 : vector<8x8xf32>, vector<8x8xf32>, vector<8x8xf32>, vector<8x8xf32>, vector<8x8xf32>, vector<8x8xf32>, vector<8x8xf32>, vector<8x8xf32> -> vector<64x8xf32>
    %cst_67 = arith.constant dense<0.000000e+00> : vector<64x64xf32>
    %222 = tpu.matmul %203, %212, %cst_67 {dimension_numbers = #tpu.dot_dimension_numbers<[1], [1], [0], [0], [0, 0, 1, 0], [], []>} : vector<64x8xf32>, vector<64x8xf32>, vector<64x64xf32> -> vector<64x64xf32>
    %223 = arith.addf %222, %37 : vector<64x64xf32>
    %cst_68 = arith.constant dense<0xFF800000> : vector<64xf32>
    %224 = vector.multi_reduction <maximumf>, %223, %cst_68 [1] : vector<64x64xf32> to vector<64xf32>
    %225 = vector.shape_cast %224 : vector<64xf32> to vector<64x1xf32>
    %226 = vector.broadcast %225 : vector<64x1xf32> to vector<64x64xf32>
    %227 = arith.subf %223, %226 : vector<64x64xf32>
    %228 = math.exp %227 : vector<64x64xf32>
    %cst_69 = arith.constant dense<0.000000e+00> : vector<64xf32>
    %229 = vector.multi_reduction <add>, %228, %cst_69 [1] : vector<64x64xf32> to vector<64xf32>
    %230 = vector.shape_cast %229 : vector<64xf32> to vector<64x1xf32>
    %231 = tpu.reciprocal %230 {approx = true} : vector<64x1xf32> -> vector<64x1xf32>
    %232 = arith.mulf %230, %231 : vector<64x1xf32>
    %cst_70 = arith.constant 2.000000e+00 : f32
    %233 = vector.broadcast %cst_70 : f32 to vector<64x1xf32>
    %234 = arith.subf %233, %232 : vector<64x1xf32>
    %235 = arith.mulf %231, %234 : vector<64x1xf32>
    %236 = vector.broadcast %235 : vector<64x1xf32> to vector<64x64xf32>
    %237 = arith.mulf %228, %236 : vector<64x64xf32>
    %cst_71 = arith.constant dense<0.000000e+00> : vector<64x8xf32>
    %238 = tpu.matmul %237, %221, %cst_71 {dimension_numbers = #tpu.dot_dimension_numbers<[1], [0], [0], [1], [0, 0, 1, 1], [], []>} : vector<64x64xf32>, vector<64x8xf32>, vector<64x8xf32> -> vector<64x8xf32>
    %239 = vector.extract_strided_slice %238 {offsets = [0, 0], sizes = [8, 8], strides = [1, 1]} : vector<64x8xf32> to vector<8x8xf32>
    %240 = vector.extract_strided_slice %238 {offsets = [8, 0], sizes = [8, 8], strides = [1, 1]} : vector<64x8xf32> to vector<8x8xf32>
    %241 = vector.extract_strided_slice %238 {offsets = [16, 0], sizes = [8, 8], strides = [1, 1]} : vector<64x8xf32> to vector<8x8xf32>
    %242 = vector.extract_strided_slice %238 {offsets = [24, 0], sizes = [8, 8], strides = [1, 1]} : vector<64x8xf32> to vector<8x8xf32>
    %243 = tpu.concatenate %239, %240, %241, %242 in 1 : vector<8x8xf32>, vector<8x8xf32>, vector<8x8xf32>, vector<8x8xf32> -> vector<8x32xf32>
    %244 = vector.extract_strided_slice %238 {offsets = [32, 0], sizes = [8, 8], strides = [1, 1]} : vector<64x8xf32> to vector<8x8xf32>
    %245 = vector.extract_strided_slice %238 {offsets = [40, 0], sizes = [8, 8], strides = [1, 1]} : vector<64x8xf32> to vector<8x8xf32>
    %246 = vector.extract_strided_slice %238 {offsets = [48, 0], sizes = [8, 8], strides = [1, 1]} : vector<64x8xf32> to vector<8x8xf32>
    %247 = vector.extract_strided_slice %238 {offsets = [56, 0], sizes = [8, 8], strides = [1, 1]} : vector<64x8xf32> to vector<8x8xf32>
    %248 = tpu.concatenate %244, %245, %246, %247 in 1 : vector<8x8xf32>, vector<8x8xf32>, vector<8x8xf32>, vector<8x8xf32> -> vector<8x32xf32>
    %249 = tpu.concatenate %243, %248 in 0 : vector<8x32xf32>, vector<8x32xf32> -> vector<16x32xf32>
    %c1_72 = arith.constant 1 : index
    %c0_73 = arith.constant 0 : index
    %c0_74 = arith.constant 0 : index
    %250 = vector.load %arg5[%c1_72, %c0_73, %c0_74] : memref<4x32x32xf32, #tpu.memory_space<vmem>>, vector<1x32x32xf32>
    %251 = vector.shape_cast %250 : vector<1x32x32xf32> to vector<32x32xf32>
    %cst_75 = arith.constant dense<0.000000e+00> : vector<16x32xf32>
    %252 = tpu.matmul %249, %251, %cst_75 {dimension_numbers = #tpu.dot_dimension_numbers<[1], [0], [0], [1], [0, 0, 1, 1], [], []>} : vector<16x32xf32>, vector<32x32xf32>, vector<16x32xf32> -> vector<16x32xf32>
    %c1_76 = arith.constant 1 : index
    %c0_77 = arith.constant 0 : index
    %c0_78 = arith.constant 0 : index
    %253 = vector.load %arg6[%c1_76, %c0_77, %c0_78] : memref<4x16x16xf32, #tpu.memory_space<vmem>>, vector<1x16x16xf32>
    %254 = vector.shape_cast %253 : vector<1x16x16xf32> to vector<16x16xf32>
    %cst_79 = arith.constant dense<0.000000e+00> : vector<16x16xf32>
    %255 = tpu.matmul %194, %254, %cst_79 {dimension_numbers = #tpu.dot_dimension_numbers<[1], [0], [0], [1], [0, 0, 1, 1], [], []>} : vector<16x16xf32>, vector<16x16xf32>, vector<16x16xf32> -> vector<16x16xf32>
    %cst_80 = arith.constant dense<0xFF800000> : vector<16xf32>
    %256 = vector.multi_reduction <maximumf>, %255, %cst_80 [1] : vector<16x16xf32> to vector<16xf32>
    %257 = vector.shape_cast %256 : vector<16xf32> to vector<16x1xf32>
    %258 = vector.broadcast %257 : vector<16x1xf32> to vector<16x16xf32>
    %259 = arith.subf %255, %258 : vector<16x16xf32>
    %260 = math.exp %259 : vector<16x16xf32>
    %cst_81 = arith.constant dense<0.000000e+00> : vector<16xf32>
    %261 = vector.multi_reduction <add>, %260, %cst_81 [1] : vector<16x16xf32> to vector<16xf32>
    %262 = vector.shape_cast %261 : vector<16xf32> to vector<16x1xf32>
    %263 = tpu.reciprocal %262 {approx = true} : vector<16x1xf32> -> vector<16x1xf32>
    %264 = arith.mulf %262, %263 : vector<16x1xf32>
    %cst_82 = arith.constant 2.000000e+00 : f32
    %265 = vector.broadcast %cst_82 : f32 to vector<16x1xf32>
    %266 = arith.subf %265, %264 : vector<16x1xf32>
    %267 = arith.mulf %263, %266 : vector<16x1xf32>
    %268 = vector.broadcast %267 : vector<16x1xf32> to vector<16x16xf32>
    %269 = arith.mulf %260, %268 : vector<16x16xf32>
    %c1_83 = arith.constant 1 : index
    %c0_84 = arith.constant 0 : index
    %c0_85 = arith.constant 0 : index
    %270 = vector.load %arg7[%c1_83, %c0_84, %c0_85] : memref<4x16x32xf32, #tpu.memory_space<vmem>>, vector<1x16x32xf32>
    %271 = vector.shape_cast %270 : vector<1x16x32xf32> to vector<16x32xf32>
    %cst_86 = arith.constant dense<0.000000e+00> : vector<16x32xf32>
    %272 = tpu.matmul %269, %271, %cst_86 {dimension_numbers = #tpu.dot_dimension_numbers<[1], [0], [0], [1], [0, 0, 1, 1], [], []>} : vector<16x16xf32>, vector<16x32xf32>, vector<16x32xf32> -> vector<16x32xf32>
    %c1_87 = arith.constant 1 : index
    %c0_88 = arith.constant 0 : index
    %c0_89 = arith.constant 0 : index
    %273 = vector.load %arg11[%c1_87, %c0_88, %c0_89] : memref<4x4x32xf32, #tpu.memory_space<vmem>>, vector<1x4x32xf32>
    %274 = vector.shape_cast %273 : vector<1x4x32xf32> to vector<4x32xf32>
    %275 = arith.addf %252, %272 : vector<16x32xf32>
    %276 = vector.extract_strided_slice %274 {offsets = [0, 0], sizes = [1, 32], strides = [1, 1]} : vector<4x32xf32> to vector<1x32xf32>
    %277 = vector.broadcast %276 : vector<1x32xf32> to vector<16x32xf32>
    %278 = arith.addf %275, %277 : vector<16x32xf32>
    %c1_90 = arith.constant 1 : index
    %c0_91 = arith.constant 0 : index
    %c0_92 = arith.constant 0 : index
    %279 = vector.load %arg8[%c1_90, %c0_91, %c0_92] : memref<4x32x64xf32, #tpu.memory_space<vmem>>, vector<1x32x64xf32>
    %280 = vector.shape_cast %279 : vector<1x32x64xf32> to vector<32x64xf32>
    %cst_93 = arith.constant dense<0.000000e+00> : vector<16x64xf32>
    %281 = tpu.matmul %278, %280, %cst_93 {dimension_numbers = #tpu.dot_dimension_numbers<[1], [0], [0], [1], [0, 0, 1, 1], [], []>} : vector<16x32xf32>, vector<32x64xf32>, vector<16x64xf32> -> vector<16x64xf32>
    %c1_94 = arith.constant 1 : index
    %c0_95 = arith.constant 0 : index
    %c0_96 = arith.constant 0 : index
    %282 = vector.load %arg9[%c1_94, %c0_95, %c0_96] : memref<4x1x64xf32, #tpu.memory_space<vmem>>, vector<1x1x64xf32>
    %283 = vector.shape_cast %282 : vector<1x1x64xf32> to vector<1x64xf32>
    %284 = vector.broadcast %283 : vector<1x64xf32> to vector<16x64xf32>
    %285 = arith.addf %281, %284 : vector<16x64xf32>
    %286 = arith.mulf %285, %285 : vector<16x64xf32>
    %287 = arith.mulf %285, %286 : vector<16x64xf32>
    %cst_97 = arith.constant 4.471500e-02 : f32
    %288 = vector.broadcast %cst_97 : f32 to vector<16x64xf32>
    %289 = arith.mulf %288, %287 : vector<16x64xf32>
    %290 = arith.addf %285, %289 : vector<16x64xf32>
    %cst_98 = arith.constant 0.797884583 : f32
    %291 = vector.broadcast %cst_98 : f32 to vector<16x64xf32>
    %292 = arith.mulf %291, %290 : vector<16x64xf32>
    %293 = math.tanh %292 : vector<16x64xf32>
    %cst_99 = arith.constant 1.000000e+00 : f32
    %294 = vector.broadcast %cst_99 : f32 to vector<16x64xf32>
    %295 = arith.addf %294, %293 : vector<16x64xf32>
    %cst_100 = arith.constant 5.000000e-01 : f32
    %296 = vector.broadcast %cst_100 : f32 to vector<16x64xf32>
    %297 = arith.mulf %296, %295 : vector<16x64xf32>
    %298 = arith.mulf %285, %297 : vector<16x64xf32>
    %c1_101 = arith.constant 1 : index
    %c0_102 = arith.constant 0 : index
    %c0_103 = arith.constant 0 : index
    %299 = vector.load %arg10[%c1_101, %c0_102, %c0_103] : memref<4x64x32xf32, #tpu.memory_space<vmem>>, vector<1x64x32xf32>
    %300 = vector.shape_cast %299 : vector<1x64x32xf32> to vector<64x32xf32>
    %cst_104 = arith.constant dense<0.000000e+00> : vector<16x32xf32>
    %301 = tpu.matmul %298, %300, %cst_104 {dimension_numbers = #tpu.dot_dimension_numbers<[1], [0], [0], [1], [0, 0, 1, 1], [], []>} : vector<16x64xf32>, vector<64x32xf32>, vector<16x32xf32> -> vector<16x32xf32>
    %302 = vector.extract_strided_slice %274 {offsets = [1, 0], sizes = [1, 32], strides = [1, 1]} : vector<4x32xf32> to vector<1x32xf32>
    %303 = vector.broadcast %302 : vector<1x32xf32> to vector<16x32xf32>
    %304 = arith.addf %301, %303 : vector<16x32xf32>
    %305 = arith.addf %304, %278 : vector<16x32xf32>
    %306 = vector.extract_strided_slice %274 {offsets = [2, 0], sizes = [1, 32], strides = [1, 1]} : vector<4x32xf32> to vector<1x32xf32>
    %307 = vector.extract_strided_slice %274 {offsets = [3, 0], sizes = [1, 32], strides = [1, 1]} : vector<4x32xf32> to vector<1x32xf32>
    %cst_105 = arith.constant dense<0.000000e+00> : vector<16xf32>
    %308 = vector.multi_reduction <add>, %305, %cst_105 [1] : vector<16x32xf32> to vector<16xf32>
    %309 = vector.shape_cast %308 : vector<16xf32> to vector<16x1xf32>
    %cst_106 = arith.constant 3.200000e+01 : f32
    %310 = vector.broadcast %cst_106 : f32 to vector<16x1xf32>
    %311 = arith.divf %309, %310 : vector<16x1xf32>
    %312 = vector.broadcast %311 : vector<16x1xf32> to vector<16x32xf32>
    %313 = arith.subf %305, %312 : vector<16x32xf32>
    %314 = arith.mulf %313, %313 : vector<16x32xf32>
    %cst_107 = arith.constant dense<0.000000e+00> : vector<16xf32>
    %315 = vector.multi_reduction <add>, %314, %cst_107 [1] : vector<16x32xf32> to vector<16xf32>
    %316 = vector.shape_cast %315 : vector<16xf32> to vector<16x1xf32>
    %cst_108 = arith.constant 3.200000e+01 : f32
    %317 = vector.broadcast %cst_108 : f32 to vector<16x1xf32>
    %318 = arith.divf %316, %317 : vector<16x1xf32>
    %319 = vector.broadcast %311 : vector<16x1xf32> to vector<16x32xf32>
    %320 = arith.subf %305, %319 : vector<16x32xf32>
    %cst_109 = arith.constant 9.99999996E-13 : f32
    %321 = vector.broadcast %cst_109 : f32 to vector<16x1xf32>
    %322 = arith.addf %318, %321 : vector<16x1xf32>
    %323 = math.rsqrt %322 : vector<16x1xf32>
    %324 = vector.broadcast %323 : vector<16x1xf32> to vector<16x32xf32>
    %325 = arith.mulf %320, %324 : vector<16x32xf32>
    %326 = vector.broadcast %306 : vector<1x32xf32> to vector<16x32xf32>
    %327 = arith.mulf %325, %326 : vector<16x32xf32>
    %328 = vector.broadcast %307 : vector<1x32xf32> to vector<16x32xf32>
    %329 = arith.addf %327, %328 : vector<16x32xf32>
    %c2 = arith.constant 2 : index
    %c0_110 = arith.constant 0 : index
    %c0_111 = arith.constant 0 : index
    %330 = vector.load %arg3[%c2, %c0_110, %c0_111] : memref<4x32x112xf32, #tpu.memory_space<vmem>>, vector<1x32x112xf32>
    %331 = vector.shape_cast %330 : vector<1x32x112xf32> to vector<32x112xf32>
    %cst_112 = arith.constant dense<0.000000e+00> : vector<16x112xf32>
    %332 = tpu.matmul %329, %331, %cst_112 {dimension_numbers = #tpu.dot_dimension_numbers<[1], [0], [0], [1], [0, 0, 1, 1], [], []>} : vector<16x32xf32>, vector<32x112xf32>, vector<16x112xf32> -> vector<16x112xf32>
    %c2_113 = arith.constant 2 : index
    %c0_114 = arith.constant 0 : index
    %c0_115 = arith.constant 0 : index
    %333 = vector.load %arg4[%c2_113, %c0_114, %c0_115] : memref<4x1x112xf32, #tpu.memory_space<vmem>>, vector<1x1x112xf32>
    %334 = vector.shape_cast %333 : vector<1x1x112xf32> to vector<1x112xf32>
    %335 = vector.broadcast %334 : vector<1x112xf32> to vector<16x112xf32>
    %336 = arith.addf %332, %335 : vector<16x112xf32>
    %337 = vector.extract_strided_slice %336 {offsets = [0, 0], sizes = [16, 32], strides = [1, 1]} : vector<16x112xf32> to vector<16x32xf32>
    %338 = vector.extract_strided_slice %336 {offsets = [0, 32], sizes = [16, 32], strides = [1, 1]} : vector<16x112xf32> to vector<16x32xf32>
    %339 = vector.extract_strided_slice %336 {offsets = [0, 64], sizes = [16, 32], strides = [1, 1]} : vector<16x112xf32> to vector<16x32xf32>
    %340 = vector.extract_strided_slice %336 {offsets = [0, 96], sizes = [16, 16], strides = [1, 1]} : vector<16x112xf32> to vector<16x16xf32>
    %341 = vector.extract_strided_slice %337 {offsets = [0, 0], sizes = [8, 8], strides = [1, 1]} : vector<16x32xf32> to vector<8x8xf32>
    %342 = vector.extract_strided_slice %337 {offsets = [0, 8], sizes = [8, 8], strides = [1, 1]} : vector<16x32xf32> to vector<8x8xf32>
    %343 = vector.extract_strided_slice %337 {offsets = [0, 16], sizes = [8, 8], strides = [1, 1]} : vector<16x32xf32> to vector<8x8xf32>
    %344 = vector.extract_strided_slice %337 {offsets = [0, 24], sizes = [8, 8], strides = [1, 1]} : vector<16x32xf32> to vector<8x8xf32>
    %345 = vector.extract_strided_slice %337 {offsets = [8, 0], sizes = [8, 8], strides = [1, 1]} : vector<16x32xf32> to vector<8x8xf32>
    %346 = vector.extract_strided_slice %337 {offsets = [8, 8], sizes = [8, 8], strides = [1, 1]} : vector<16x32xf32> to vector<8x8xf32>
    %347 = vector.extract_strided_slice %337 {offsets = [8, 16], sizes = [8, 8], strides = [1, 1]} : vector<16x32xf32> to vector<8x8xf32>
    %348 = vector.extract_strided_slice %337 {offsets = [8, 24], sizes = [8, 8], strides = [1, 1]} : vector<16x32xf32> to vector<8x8xf32>
    %349 = tpu.concatenate %341, %342, %343, %344, %345, %346, %347, %348 in 0 : vector<8x8xf32>, vector<8x8xf32>, vector<8x8xf32>, vector<8x8xf32>, vector<8x8xf32>, vector<8x8xf32>, vector<8x8xf32>, vector<8x8xf32> -> vector<64x8xf32>
    %350 = vector.extract_strided_slice %338 {offsets = [0, 0], sizes = [8, 8], strides = [1, 1]} : vector<16x32xf32> to vector<8x8xf32>
    %351 = vector.extract_strided_slice %338 {offsets = [0, 8], sizes = [8, 8], strides = [1, 1]} : vector<16x32xf32> to vector<8x8xf32>
    %352 = vector.extract_strided_slice %338 {offsets = [0, 16], sizes = [8, 8], strides = [1, 1]} : vector<16x32xf32> to vector<8x8xf32>
    %353 = vector.extract_strided_slice %338 {offsets = [0, 24], sizes = [8, 8], strides = [1, 1]} : vector<16x32xf32> to vector<8x8xf32>
    %354 = vector.extract_strided_slice %338 {offsets = [8, 0], sizes = [8, 8], strides = [1, 1]} : vector<16x32xf32> to vector<8x8xf32>
    %355 = vector.extract_strided_slice %338 {offsets = [8, 8], sizes = [8, 8], strides = [1, 1]} : vector<16x32xf32> to vector<8x8xf32>
    %356 = vector.extract_strided_slice %338 {offsets = [8, 16], sizes = [8, 8], strides = [1, 1]} : vector<16x32xf32> to vector<8x8xf32>
    %357 = vector.extract_strided_slice %338 {offsets = [8, 24], sizes = [8, 8], strides = [1, 1]} : vector<16x32xf32> to vector<8x8xf32>
    %358 = tpu.concatenate %350, %351, %352, %353, %354, %355, %356, %357 in 0 : vector<8x8xf32>, vector<8x8xf32>, vector<8x8xf32>, vector<8x8xf32>, vector<8x8xf32>, vector<8x8xf32>, vector<8x8xf32>, vector<8x8xf32> -> vector<64x8xf32>
    %359 = vector.extract_strided_slice %339 {offsets = [0, 0], sizes = [8, 8], strides = [1, 1]} : vector<16x32xf32> to vector<8x8xf32>
    %360 = vector.extract_strided_slice %339 {offsets = [0, 8], sizes = [8, 8], strides = [1, 1]} : vector<16x32xf32> to vector<8x8xf32>
    %361 = vector.extract_strided_slice %339 {offsets = [0, 16], sizes = [8, 8], strides = [1, 1]} : vector<16x32xf32> to vector<8x8xf32>
    %362 = vector.extract_strided_slice %339 {offsets = [0, 24], sizes = [8, 8], strides = [1, 1]} : vector<16x32xf32> to vector<8x8xf32>
    %363 = vector.extract_strided_slice %339 {offsets = [8, 0], sizes = [8, 8], strides = [1, 1]} : vector<16x32xf32> to vector<8x8xf32>
    %364 = vector.extract_strided_slice %339 {offsets = [8, 8], sizes = [8, 8], strides = [1, 1]} : vector<16x32xf32> to vector<8x8xf32>
    %365 = vector.extract_strided_slice %339 {offsets = [8, 16], sizes = [8, 8], strides = [1, 1]} : vector<16x32xf32> to vector<8x8xf32>
    %366 = vector.extract_strided_slice %339 {offsets = [8, 24], sizes = [8, 8], strides = [1, 1]} : vector<16x32xf32> to vector<8x8xf32>
    %367 = tpu.concatenate %359, %360, %361, %362, %363, %364, %365, %366 in 0 : vector<8x8xf32>, vector<8x8xf32>, vector<8x8xf32>, vector<8x8xf32>, vector<8x8xf32>, vector<8x8xf32>, vector<8x8xf32>, vector<8x8xf32> -> vector<64x8xf32>
    %cst_116 = arith.constant dense<0.000000e+00> : vector<64x64xf32>
    %368 = tpu.matmul %349, %358, %cst_116 {dimension_numbers = #tpu.dot_dimension_numbers<[1], [1], [0], [0], [0, 0, 1, 0], [], []>} : vector<64x8xf32>, vector<64x8xf32>, vector<64x64xf32> -> vector<64x64xf32>
    %369 = arith.addf %368, %37 : vector<64x64xf32>
    %cst_117 = arith.constant dense<0xFF800000> : vector<64xf32>
    %370 = vector.multi_reduction <maximumf>, %369, %cst_117 [1] : vector<64x64xf32> to vector<64xf32>
    %371 = vector.shape_cast %370 : vector<64xf32> to vector<64x1xf32>
    %372 = vector.broadcast %371 : vector<64x1xf32> to vector<64x64xf32>
    %373 = arith.subf %369, %372 : vector<64x64xf32>
    %374 = math.exp %373 : vector<64x64xf32>
    %cst_118 = arith.constant dense<0.000000e+00> : vector<64xf32>
    %375 = vector.multi_reduction <add>, %374, %cst_118 [1] : vector<64x64xf32> to vector<64xf32>
    %376 = vector.shape_cast %375 : vector<64xf32> to vector<64x1xf32>
    %377 = tpu.reciprocal %376 {approx = true} : vector<64x1xf32> -> vector<64x1xf32>
    %378 = arith.mulf %376, %377 : vector<64x1xf32>
    %cst_119 = arith.constant 2.000000e+00 : f32
    %379 = vector.broadcast %cst_119 : f32 to vector<64x1xf32>
    %380 = arith.subf %379, %378 : vector<64x1xf32>
    %381 = arith.mulf %377, %380 : vector<64x1xf32>
    %382 = vector.broadcast %381 : vector<64x1xf32> to vector<64x64xf32>
    %383 = arith.mulf %374, %382 : vector<64x64xf32>
    %cst_120 = arith.constant dense<0.000000e+00> : vector<64x8xf32>
    %384 = tpu.matmul %383, %367, %cst_120 {dimension_numbers = #tpu.dot_dimension_numbers<[1], [0], [0], [1], [0, 0, 1, 1], [], []>} : vector<64x64xf32>, vector<64x8xf32>, vector<64x8xf32> -> vector<64x8xf32>
    %385 = vector.extract_strided_slice %384 {offsets = [0, 0], sizes = [8, 8], strides = [1, 1]} : vector<64x8xf32> to vector<8x8xf32>
    %386 = vector.extract_strided_slice %384 {offsets = [8, 0], sizes = [8, 8], strides = [1, 1]} : vector<64x8xf32> to vector<8x8xf32>
    %387 = vector.extract_strided_slice %384 {offsets = [16, 0], sizes = [8, 8], strides = [1, 1]} : vector<64x8xf32> to vector<8x8xf32>
    %388 = vector.extract_strided_slice %384 {offsets = [24, 0], sizes = [8, 8], strides = [1, 1]} : vector<64x8xf32> to vector<8x8xf32>
    %389 = tpu.concatenate %385, %386, %387, %388 in 1 : vector<8x8xf32>, vector<8x8xf32>, vector<8x8xf32>, vector<8x8xf32> -> vector<8x32xf32>
    %390 = vector.extract_strided_slice %384 {offsets = [32, 0], sizes = [8, 8], strides = [1, 1]} : vector<64x8xf32> to vector<8x8xf32>
    %391 = vector.extract_strided_slice %384 {offsets = [40, 0], sizes = [8, 8], strides = [1, 1]} : vector<64x8xf32> to vector<8x8xf32>
    %392 = vector.extract_strided_slice %384 {offsets = [48, 0], sizes = [8, 8], strides = [1, 1]} : vector<64x8xf32> to vector<8x8xf32>
    %393 = vector.extract_strided_slice %384 {offsets = [56, 0], sizes = [8, 8], strides = [1, 1]} : vector<64x8xf32> to vector<8x8xf32>
    %394 = tpu.concatenate %390, %391, %392, %393 in 1 : vector<8x8xf32>, vector<8x8xf32>, vector<8x8xf32>, vector<8x8xf32> -> vector<8x32xf32>
    %395 = tpu.concatenate %389, %394 in 0 : vector<8x32xf32>, vector<8x32xf32> -> vector<16x32xf32>
    %c2_121 = arith.constant 2 : index
    %c0_122 = arith.constant 0 : index
    %c0_123 = arith.constant 0 : index
    %396 = vector.load %arg5[%c2_121, %c0_122, %c0_123] : memref<4x32x32xf32, #tpu.memory_space<vmem>>, vector<1x32x32xf32>
    %397 = vector.shape_cast %396 : vector<1x32x32xf32> to vector<32x32xf32>
    %cst_124 = arith.constant dense<0.000000e+00> : vector<16x32xf32>
    %398 = tpu.matmul %395, %397, %cst_124 {dimension_numbers = #tpu.dot_dimension_numbers<[1], [0], [0], [1], [0, 0, 1, 1], [], []>} : vector<16x32xf32>, vector<32x32xf32>, vector<16x32xf32> -> vector<16x32xf32>
    %c2_125 = arith.constant 2 : index
    %c0_126 = arith.constant 0 : index
    %c0_127 = arith.constant 0 : index
    %399 = vector.load %arg6[%c2_125, %c0_126, %c0_127] : memref<4x16x16xf32, #tpu.memory_space<vmem>>, vector<1x16x16xf32>
    %400 = vector.shape_cast %399 : vector<1x16x16xf32> to vector<16x16xf32>
    %cst_128 = arith.constant dense<0.000000e+00> : vector<16x16xf32>
    %401 = tpu.matmul %340, %400, %cst_128 {dimension_numbers = #tpu.dot_dimension_numbers<[1], [0], [0], [1], [0, 0, 1, 1], [], []>} : vector<16x16xf32>, vector<16x16xf32>, vector<16x16xf32> -> vector<16x16xf32>
    %cst_129 = arith.constant dense<0xFF800000> : vector<16xf32>
    %402 = vector.multi_reduction <maximumf>, %401, %cst_129 [1] : vector<16x16xf32> to vector<16xf32>
    %403 = vector.shape_cast %402 : vector<16xf32> to vector<16x1xf32>
    %404 = vector.broadcast %403 : vector<16x1xf32> to vector<16x16xf32>
    %405 = arith.subf %401, %404 : vector<16x16xf32>
    %406 = math.exp %405 : vector<16x16xf32>
    %cst_130 = arith.constant dense<0.000000e+00> : vector<16xf32>
    %407 = vector.multi_reduction <add>, %406, %cst_130 [1] : vector<16x16xf32> to vector<16xf32>
    %408 = vector.shape_cast %407 : vector<16xf32> to vector<16x1xf32>
    %409 = tpu.reciprocal %408 {approx = true} : vector<16x1xf32> -> vector<16x1xf32>
    %410 = arith.mulf %408, %409 : vector<16x1xf32>
    %cst_131 = arith.constant 2.000000e+00 : f32
    %411 = vector.broadcast %cst_131 : f32 to vector<16x1xf32>
    %412 = arith.subf %411, %410 : vector<16x1xf32>
    %413 = arith.mulf %409, %412 : vector<16x1xf32>
    %414 = vector.broadcast %413 : vector<16x1xf32> to vector<16x16xf32>
    %415 = arith.mulf %406, %414 : vector<16x16xf32>
    %c2_132 = arith.constant 2 : index
    %c0_133 = arith.constant 0 : index
    %c0_134 = arith.constant 0 : index
    %416 = vector.load %arg7[%c2_132, %c0_133, %c0_134] : memref<4x16x32xf32, #tpu.memory_space<vmem>>, vector<1x16x32xf32>
    %417 = vector.shape_cast %416 : vector<1x16x32xf32> to vector<16x32xf32>
    %cst_135 = arith.constant dense<0.000000e+00> : vector<16x32xf32>
    %418 = tpu.matmul %415, %417, %cst_135 {dimension_numbers = #tpu.dot_dimension_numbers<[1], [0], [0], [1], [0, 0, 1, 1], [], []>} : vector<16x16xf32>, vector<16x32xf32>, vector<16x32xf32> -> vector<16x32xf32>
    %c2_136 = arith.constant 2 : index
    %c0_137 = arith.constant 0 : index
    %c0_138 = arith.constant 0 : index
    %419 = vector.load %arg11[%c2_136, %c0_137, %c0_138] : memref<4x4x32xf32, #tpu.memory_space<vmem>>, vector<1x4x32xf32>
    %420 = vector.shape_cast %419 : vector<1x4x32xf32> to vector<4x32xf32>
    %421 = arith.addf %398, %418 : vector<16x32xf32>
    %422 = vector.extract_strided_slice %420 {offsets = [0, 0], sizes = [1, 32], strides = [1, 1]} : vector<4x32xf32> to vector<1x32xf32>
    %423 = vector.broadcast %422 : vector<1x32xf32> to vector<16x32xf32>
    %424 = arith.addf %421, %423 : vector<16x32xf32>
    %c2_139 = arith.constant 2 : index
    %c0_140 = arith.constant 0 : index
    %c0_141 = arith.constant 0 : index
    %425 = vector.load %arg8[%c2_139, %c0_140, %c0_141] : memref<4x32x64xf32, #tpu.memory_space<vmem>>, vector<1x32x64xf32>
    %426 = vector.shape_cast %425 : vector<1x32x64xf32> to vector<32x64xf32>
    %cst_142 = arith.constant dense<0.000000e+00> : vector<16x64xf32>
    %427 = tpu.matmul %424, %426, %cst_142 {dimension_numbers = #tpu.dot_dimension_numbers<[1], [0], [0], [1], [0, 0, 1, 1], [], []>} : vector<16x32xf32>, vector<32x64xf32>, vector<16x64xf32> -> vector<16x64xf32>
    %c2_143 = arith.constant 2 : index
    %c0_144 = arith.constant 0 : index
    %c0_145 = arith.constant 0 : index
    %428 = vector.load %arg9[%c2_143, %c0_144, %c0_145] : memref<4x1x64xf32, #tpu.memory_space<vmem>>, vector<1x1x64xf32>
    %429 = vector.shape_cast %428 : vector<1x1x64xf32> to vector<1x64xf32>
    %430 = vector.broadcast %429 : vector<1x64xf32> to vector<16x64xf32>
    %431 = arith.addf %427, %430 : vector<16x64xf32>
    %432 = arith.mulf %431, %431 : vector<16x64xf32>
    %433 = arith.mulf %431, %432 : vector<16x64xf32>
    %cst_146 = arith.constant 4.471500e-02 : f32
    %434 = vector.broadcast %cst_146 : f32 to vector<16x64xf32>
    %435 = arith.mulf %434, %433 : vector<16x64xf32>
    %436 = arith.addf %431, %435 : vector<16x64xf32>
    %cst_147 = arith.constant 0.797884583 : f32
    %437 = vector.broadcast %cst_147 : f32 to vector<16x64xf32>
    %438 = arith.mulf %437, %436 : vector<16x64xf32>
    %439 = math.tanh %438 : vector<16x64xf32>
    %cst_148 = arith.constant 1.000000e+00 : f32
    %440 = vector.broadcast %cst_148 : f32 to vector<16x64xf32>
    %441 = arith.addf %440, %439 : vector<16x64xf32>
    %cst_149 = arith.constant 5.000000e-01 : f32
    %442 = vector.broadcast %cst_149 : f32 to vector<16x64xf32>
    %443 = arith.mulf %442, %441 : vector<16x64xf32>
    %444 = arith.mulf %431, %443 : vector<16x64xf32>
    %c2_150 = arith.constant 2 : index
    %c0_151 = arith.constant 0 : index
    %c0_152 = arith.constant 0 : index
    %445 = vector.load %arg10[%c2_150, %c0_151, %c0_152] : memref<4x64x32xf32, #tpu.memory_space<vmem>>, vector<1x64x32xf32>
    %446 = vector.shape_cast %445 : vector<1x64x32xf32> to vector<64x32xf32>
    %cst_153 = arith.constant dense<0.000000e+00> : vector<16x32xf32>
    %447 = tpu.matmul %444, %446, %cst_153 {dimension_numbers = #tpu.dot_dimension_numbers<[1], [0], [0], [1], [0, 0, 1, 1], [], []>} : vector<16x64xf32>, vector<64x32xf32>, vector<16x32xf32> -> vector<16x32xf32>
    %448 = vector.extract_strided_slice %420 {offsets = [1, 0], sizes = [1, 32], strides = [1, 1]} : vector<4x32xf32> to vector<1x32xf32>
    %449 = vector.broadcast %448 : vector<1x32xf32> to vector<16x32xf32>
    %450 = arith.addf %447, %449 : vector<16x32xf32>
    %451 = arith.addf %450, %424 : vector<16x32xf32>
    %452 = vector.extract_strided_slice %420 {offsets = [2, 0], sizes = [1, 32], strides = [1, 1]} : vector<4x32xf32> to vector<1x32xf32>
    %453 = vector.extract_strided_slice %420 {offsets = [3, 0], sizes = [1, 32], strides = [1, 1]} : vector<4x32xf32> to vector<1x32xf32>
    %cst_154 = arith.constant dense<0.000000e+00> : vector<16xf32>
    %454 = vector.multi_reduction <add>, %451, %cst_154 [1] : vector<16x32xf32> to vector<16xf32>
    %455 = vector.shape_cast %454 : vector<16xf32> to vector<16x1xf32>
    %cst_155 = arith.constant 3.200000e+01 : f32
    %456 = vector.broadcast %cst_155 : f32 to vector<16x1xf32>
    %457 = arith.divf %455, %456 : vector<16x1xf32>
    %458 = vector.broadcast %457 : vector<16x1xf32> to vector<16x32xf32>
    %459 = arith.subf %451, %458 : vector<16x32xf32>
    %460 = arith.mulf %459, %459 : vector<16x32xf32>
    %cst_156 = arith.constant dense<0.000000e+00> : vector<16xf32>
    %461 = vector.multi_reduction <add>, %460, %cst_156 [1] : vector<16x32xf32> to vector<16xf32>
    %462 = vector.shape_cast %461 : vector<16xf32> to vector<16x1xf32>
    %cst_157 = arith.constant 3.200000e+01 : f32
    %463 = vector.broadcast %cst_157 : f32 to vector<16x1xf32>
    %464 = arith.divf %462, %463 : vector<16x1xf32>
    %465 = vector.broadcast %457 : vector<16x1xf32> to vector<16x32xf32>
    %466 = arith.subf %451, %465 : vector<16x32xf32>
    %cst_158 = arith.constant 9.99999996E-13 : f32
    %467 = vector.broadcast %cst_158 : f32 to vector<16x1xf32>
    %468 = arith.addf %464, %467 : vector<16x1xf32>
    %469 = math.rsqrt %468 : vector<16x1xf32>
    %470 = vector.broadcast %469 : vector<16x1xf32> to vector<16x32xf32>
    %471 = arith.mulf %466, %470 : vector<16x32xf32>
    %472 = vector.broadcast %452 : vector<1x32xf32> to vector<16x32xf32>
    %473 = arith.mulf %471, %472 : vector<16x32xf32>
    %474 = vector.broadcast %453 : vector<1x32xf32> to vector<16x32xf32>
    %475 = arith.addf %473, %474 : vector<16x32xf32>
    %c3 = arith.constant 3 : index
    %c0_159 = arith.constant 0 : index
    %c0_160 = arith.constant 0 : index
    %476 = vector.load %arg3[%c3, %c0_159, %c0_160] : memref<4x32x112xf32, #tpu.memory_space<vmem>>, vector<1x32x112xf32>
    %477 = vector.shape_cast %476 : vector<1x32x112xf32> to vector<32x112xf32>
    %cst_161 = arith.constant dense<0.000000e+00> : vector<16x112xf32>
    %478 = tpu.matmul %475, %477, %cst_161 {dimension_numbers = #tpu.dot_dimension_numbers<[1], [0], [0], [1], [0, 0, 1, 1], [], []>} : vector<16x32xf32>, vector<32x112xf32>, vector<16x112xf32> -> vector<16x112xf32>
    %c3_162 = arith.constant 3 : index
    %c0_163 = arith.constant 0 : index
    %c0_164 = arith.constant 0 : index
    %479 = vector.load %arg4[%c3_162, %c0_163, %c0_164] : memref<4x1x112xf32, #tpu.memory_space<vmem>>, vector<1x1x112xf32>
    %480 = vector.shape_cast %479 : vector<1x1x112xf32> to vector<1x112xf32>
    %481 = vector.broadcast %480 : vector<1x112xf32> to vector<16x112xf32>
    %482 = arith.addf %478, %481 : vector<16x112xf32>
    %483 = vector.extract_strided_slice %482 {offsets = [0, 0], sizes = [16, 32], strides = [1, 1]} : vector<16x112xf32> to vector<16x32xf32>
    %484 = vector.extract_strided_slice %482 {offsets = [0, 32], sizes = [16, 32], strides = [1, 1]} : vector<16x112xf32> to vector<16x32xf32>
    %485 = vector.extract_strided_slice %482 {offsets = [0, 64], sizes = [16, 32], strides = [1, 1]} : vector<16x112xf32> to vector<16x32xf32>
    %486 = vector.extract_strided_slice %482 {offsets = [0, 96], sizes = [16, 16], strides = [1, 1]} : vector<16x112xf32> to vector<16x16xf32>
    %487 = vector.extract_strided_slice %483 {offsets = [0, 0], sizes = [8, 8], strides = [1, 1]} : vector<16x32xf32> to vector<8x8xf32>
    %488 = vector.extract_strided_slice %483 {offsets = [0, 8], sizes = [8, 8], strides = [1, 1]} : vector<16x32xf32> to vector<8x8xf32>
    %489 = vector.extract_strided_slice %483 {offsets = [0, 16], sizes = [8, 8], strides = [1, 1]} : vector<16x32xf32> to vector<8x8xf32>
    %490 = vector.extract_strided_slice %483 {offsets = [0, 24], sizes = [8, 8], strides = [1, 1]} : vector<16x32xf32> to vector<8x8xf32>
    %491 = vector.extract_strided_slice %483 {offsets = [8, 0], sizes = [8, 8], strides = [1, 1]} : vector<16x32xf32> to vector<8x8xf32>
    %492 = vector.extract_strided_slice %483 {offsets = [8, 8], sizes = [8, 8], strides = [1, 1]} : vector<16x32xf32> to vector<8x8xf32>
    %493 = vector.extract_strided_slice %483 {offsets = [8, 16], sizes = [8, 8], strides = [1, 1]} : vector<16x32xf32> to vector<8x8xf32>
    %494 = vector.extract_strided_slice %483 {offsets = [8, 24], sizes = [8, 8], strides = [1, 1]} : vector<16x32xf32> to vector<8x8xf32>
    %495 = tpu.concatenate %487, %488, %489, %490, %491, %492, %493, %494 in 0 : vector<8x8xf32>, vector<8x8xf32>, vector<8x8xf32>, vector<8x8xf32>, vector<8x8xf32>, vector<8x8xf32>, vector<8x8xf32>, vector<8x8xf32> -> vector<64x8xf32>
    %496 = vector.extract_strided_slice %484 {offsets = [0, 0], sizes = [8, 8], strides = [1, 1]} : vector<16x32xf32> to vector<8x8xf32>
    %497 = vector.extract_strided_slice %484 {offsets = [0, 8], sizes = [8, 8], strides = [1, 1]} : vector<16x32xf32> to vector<8x8xf32>
    %498 = vector.extract_strided_slice %484 {offsets = [0, 16], sizes = [8, 8], strides = [1, 1]} : vector<16x32xf32> to vector<8x8xf32>
    %499 = vector.extract_strided_slice %484 {offsets = [0, 24], sizes = [8, 8], strides = [1, 1]} : vector<16x32xf32> to vector<8x8xf32>
    %500 = vector.extract_strided_slice %484 {offsets = [8, 0], sizes = [8, 8], strides = [1, 1]} : vector<16x32xf32> to vector<8x8xf32>
    %501 = vector.extract_strided_slice %484 {offsets = [8, 8], sizes = [8, 8], strides = [1, 1]} : vector<16x32xf32> to vector<8x8xf32>
    %502 = vector.extract_strided_slice %484 {offsets = [8, 16], sizes = [8, 8], strides = [1, 1]} : vector<16x32xf32> to vector<8x8xf32>
    %503 = vector.extract_strided_slice %484 {offsets = [8, 24], sizes = [8, 8], strides = [1, 1]} : vector<16x32xf32> to vector<8x8xf32>
    %504 = tpu.concatenate %496, %497, %498, %499, %500, %501, %502, %503 in 0 : vector<8x8xf32>, vector<8x8xf32>, vector<8x8xf32>, vector<8x8xf32>, vector<8x8xf32>, vector<8x8xf32>, vector<8x8xf32>, vector<8x8xf32> -> vector<64x8xf32>
    %505 = vector.extract_strided_slice %485 {offsets = [0, 0], sizes = [8, 8], strides = [1, 1]} : vector<16x32xf32> to vector<8x8xf32>
    %506 = vector.extract_strided_slice %485 {offsets = [0, 8], sizes = [8, 8], strides = [1, 1]} : vector<16x32xf32> to vector<8x8xf32>
    %507 = vector.extract_strided_slice %485 {offsets = [0, 16], sizes = [8, 8], strides = [1, 1]} : vector<16x32xf32> to vector<8x8xf32>
    %508 = vector.extract_strided_slice %485 {offsets = [0, 24], sizes = [8, 8], strides = [1, 1]} : vector<16x32xf32> to vector<8x8xf32>
    %509 = vector.extract_strided_slice %485 {offsets = [8, 0], sizes = [8, 8], strides = [1, 1]} : vector<16x32xf32> to vector<8x8xf32>
    %510 = vector.extract_strided_slice %485 {offsets = [8, 8], sizes = [8, 8], strides = [1, 1]} : vector<16x32xf32> to vector<8x8xf32>
    %511 = vector.extract_strided_slice %485 {offsets = [8, 16], sizes = [8, 8], strides = [1, 1]} : vector<16x32xf32> to vector<8x8xf32>
    %512 = vector.extract_strided_slice %485 {offsets = [8, 24], sizes = [8, 8], strides = [1, 1]} : vector<16x32xf32> to vector<8x8xf32>
    %513 = tpu.concatenate %505, %506, %507, %508, %509, %510, %511, %512 in 0 : vector<8x8xf32>, vector<8x8xf32>, vector<8x8xf32>, vector<8x8xf32>, vector<8x8xf32>, vector<8x8xf32>, vector<8x8xf32>, vector<8x8xf32> -> vector<64x8xf32>
    %cst_165 = arith.constant dense<0.000000e+00> : vector<64x64xf32>
    %514 = tpu.matmul %495, %504, %cst_165 {dimension_numbers = #tpu.dot_dimension_numbers<[1], [1], [0], [0], [0, 0, 1, 0], [], []>} : vector<64x8xf32>, vector<64x8xf32>, vector<64x64xf32> -> vector<64x64xf32>
    %515 = arith.addf %514, %37 : vector<64x64xf32>
    %cst_166 = arith.constant dense<0xFF800000> : vector<64xf32>
    %516 = vector.multi_reduction <maximumf>, %515, %cst_166 [1] : vector<64x64xf32> to vector<64xf32>
    %517 = vector.shape_cast %516 : vector<64xf32> to vector<64x1xf32>
    %518 = vector.broadcast %517 : vector<64x1xf32> to vector<64x64xf32>
    %519 = arith.subf %515, %518 : vector<64x64xf32>
    %520 = math.exp %519 : vector<64x64xf32>
    %cst_167 = arith.constant dense<0.000000e+00> : vector<64xf32>
    %521 = vector.multi_reduction <add>, %520, %cst_167 [1] : vector<64x64xf32> to vector<64xf32>
    %522 = vector.shape_cast %521 : vector<64xf32> to vector<64x1xf32>
    %523 = tpu.reciprocal %522 {approx = true} : vector<64x1xf32> -> vector<64x1xf32>
    %524 = arith.mulf %522, %523 : vector<64x1xf32>
    %cst_168 = arith.constant 2.000000e+00 : f32
    %525 = vector.broadcast %cst_168 : f32 to vector<64x1xf32>
    %526 = arith.subf %525, %524 : vector<64x1xf32>
    %527 = arith.mulf %523, %526 : vector<64x1xf32>
    %528 = vector.broadcast %527 : vector<64x1xf32> to vector<64x64xf32>
    %529 = arith.mulf %520, %528 : vector<64x64xf32>
    %cst_169 = arith.constant dense<0.000000e+00> : vector<64x8xf32>
    %530 = tpu.matmul %529, %513, %cst_169 {dimension_numbers = #tpu.dot_dimension_numbers<[1], [0], [0], [1], [0, 0, 1, 1], [], []>} : vector<64x64xf32>, vector<64x8xf32>, vector<64x8xf32> -> vector<64x8xf32>
    %531 = vector.extract_strided_slice %530 {offsets = [0, 0], sizes = [8, 8], strides = [1, 1]} : vector<64x8xf32> to vector<8x8xf32>
    %532 = vector.extract_strided_slice %530 {offsets = [8, 0], sizes = [8, 8], strides = [1, 1]} : vector<64x8xf32> to vector<8x8xf32>
    %533 = vector.extract_strided_slice %530 {offsets = [16, 0], sizes = [8, 8], strides = [1, 1]} : vector<64x8xf32> to vector<8x8xf32>
    %534 = vector.extract_strided_slice %530 {offsets = [24, 0], sizes = [8, 8], strides = [1, 1]} : vector<64x8xf32> to vector<8x8xf32>
    %535 = tpu.concatenate %531, %532, %533, %534 in 1 : vector<8x8xf32>, vector<8x8xf32>, vector<8x8xf32>, vector<8x8xf32> -> vector<8x32xf32>
    %536 = vector.extract_strided_slice %530 {offsets = [32, 0], sizes = [8, 8], strides = [1, 1]} : vector<64x8xf32> to vector<8x8xf32>
    %537 = vector.extract_strided_slice %530 {offsets = [40, 0], sizes = [8, 8], strides = [1, 1]} : vector<64x8xf32> to vector<8x8xf32>
    %538 = vector.extract_strided_slice %530 {offsets = [48, 0], sizes = [8, 8], strides = [1, 1]} : vector<64x8xf32> to vector<8x8xf32>
    %539 = vector.extract_strided_slice %530 {offsets = [56, 0], sizes = [8, 8], strides = [1, 1]} : vector<64x8xf32> to vector<8x8xf32>
    %540 = tpu.concatenate %536, %537, %538, %539 in 1 : vector<8x8xf32>, vector<8x8xf32>, vector<8x8xf32>, vector<8x8xf32> -> vector<8x32xf32>
    %541 = tpu.concatenate %535, %540 in 0 : vector<8x32xf32>, vector<8x32xf32> -> vector<16x32xf32>
    %c3_170 = arith.constant 3 : index
    %c0_171 = arith.constant 0 : index
    %c0_172 = arith.constant 0 : index
    %542 = vector.load %arg5[%c3_170, %c0_171, %c0_172] : memref<4x32x32xf32, #tpu.memory_space<vmem>>, vector<1x32x32xf32>
    %543 = vector.shape_cast %542 : vector<1x32x32xf32> to vector<32x32xf32>
    %cst_173 = arith.constant dense<0.000000e+00> : vector<16x32xf32>
    %544 = tpu.matmul %541, %543, %cst_173 {dimension_numbers = #tpu.dot_dimension_numbers<[1], [0], [0], [1], [0, 0, 1, 1], [], []>} : vector<16x32xf32>, vector<32x32xf32>, vector<16x32xf32> -> vector<16x32xf32>
    %c3_174 = arith.constant 3 : index
    %c0_175 = arith.constant 0 : index
    %c0_176 = arith.constant 0 : index
    %545 = vector.load %arg6[%c3_174, %c0_175, %c0_176] : memref<4x16x16xf32, #tpu.memory_space<vmem>>, vector<1x16x16xf32>
    %546 = vector.shape_cast %545 : vector<1x16x16xf32> to vector<16x16xf32>
    %cst_177 = arith.constant dense<0.000000e+00> : vector<16x16xf32>
    %547 = tpu.matmul %486, %546, %cst_177 {dimension_numbers = #tpu.dot_dimension_numbers<[1], [0], [0], [1], [0, 0, 1, 1], [], []>} : vector<16x16xf32>, vector<16x16xf32>, vector<16x16xf32> -> vector<16x16xf32>
    %cst_178 = arith.constant dense<0xFF800000> : vector<16xf32>
    %548 = vector.multi_reduction <maximumf>, %547, %cst_178 [1] : vector<16x16xf32> to vector<16xf32>
    %549 = vector.shape_cast %548 : vector<16xf32> to vector<16x1xf32>
    %550 = vector.broadcast %549 : vector<16x1xf32> to vector<16x16xf32>
    %551 = arith.subf %547, %550 : vector<16x16xf32>
    %552 = math.exp %551 : vector<16x16xf32>
    %cst_179 = arith.constant dense<0.000000e+00> : vector<16xf32>
    %553 = vector.multi_reduction <add>, %552, %cst_179 [1] : vector<16x16xf32> to vector<16xf32>
    %554 = vector.shape_cast %553 : vector<16xf32> to vector<16x1xf32>
    %555 = tpu.reciprocal %554 {approx = true} : vector<16x1xf32> -> vector<16x1xf32>
    %556 = arith.mulf %554, %555 : vector<16x1xf32>
    %cst_180 = arith.constant 2.000000e+00 : f32
    %557 = vector.broadcast %cst_180 : f32 to vector<16x1xf32>
    %558 = arith.subf %557, %556 : vector<16x1xf32>
    %559 = arith.mulf %555, %558 : vector<16x1xf32>
    %560 = vector.broadcast %559 : vector<16x1xf32> to vector<16x16xf32>
    %561 = arith.mulf %552, %560 : vector<16x16xf32>
    %c3_181 = arith.constant 3 : index
    %c0_182 = arith.constant 0 : index
    %c0_183 = arith.constant 0 : index
    %562 = vector.load %arg7[%c3_181, %c0_182, %c0_183] : memref<4x16x32xf32, #tpu.memory_space<vmem>>, vector<1x16x32xf32>
    %563 = vector.shape_cast %562 : vector<1x16x32xf32> to vector<16x32xf32>
    %cst_184 = arith.constant dense<0.000000e+00> : vector<16x32xf32>
    %564 = tpu.matmul %561, %563, %cst_184 {dimension_numbers = #tpu.dot_dimension_numbers<[1], [0], [0], [1], [0, 0, 1, 1], [], []>} : vector<16x16xf32>, vector<16x32xf32>, vector<16x32xf32> -> vector<16x32xf32>
    %c3_185 = arith.constant 3 : index
    %c0_186 = arith.constant 0 : index
    %c0_187 = arith.constant 0 : index
    %565 = vector.load %arg11[%c3_185, %c0_186, %c0_187] : memref<4x4x32xf32, #tpu.memory_space<vmem>>, vector<1x4x32xf32>
    %566 = vector.shape_cast %565 : vector<1x4x32xf32> to vector<4x32xf32>
    %567 = arith.addf %544, %564 : vector<16x32xf32>
    %568 = vector.extract_strided_slice %566 {offsets = [0, 0], sizes = [1, 32], strides = [1, 1]} : vector<4x32xf32> to vector<1x32xf32>
    %569 = vector.broadcast %568 : vector<1x32xf32> to vector<16x32xf32>
    %570 = arith.addf %567, %569 : vector<16x32xf32>
    %c3_188 = arith.constant 3 : index
    %c0_189 = arith.constant 0 : index
    %c0_190 = arith.constant 0 : index
    %571 = vector.load %arg8[%c3_188, %c0_189, %c0_190] : memref<4x32x64xf32, #tpu.memory_space<vmem>>, vector<1x32x64xf32>
    %572 = vector.shape_cast %571 : vector<1x32x64xf32> to vector<32x64xf32>
    %cst_191 = arith.constant dense<0.000000e+00> : vector<16x64xf32>
    %573 = tpu.matmul %570, %572, %cst_191 {dimension_numbers = #tpu.dot_dimension_numbers<[1], [0], [0], [1], [0, 0, 1, 1], [], []>} : vector<16x32xf32>, vector<32x64xf32>, vector<16x64xf32> -> vector<16x64xf32>
    %c3_192 = arith.constant 3 : index
    %c0_193 = arith.constant 0 : index
    %c0_194 = arith.constant 0 : index
    %574 = vector.load %arg9[%c3_192, %c0_193, %c0_194] : memref<4x1x64xf32, #tpu.memory_space<vmem>>, vector<1x1x64xf32>
    %575 = vector.shape_cast %574 : vector<1x1x64xf32> to vector<1x64xf32>
    %576 = vector.broadcast %575 : vector<1x64xf32> to vector<16x64xf32>
    %577 = arith.addf %573, %576 : vector<16x64xf32>
    %578 = arith.mulf %577, %577 : vector<16x64xf32>
    %579 = arith.mulf %577, %578 : vector<16x64xf32>
    %cst_195 = arith.constant 4.471500e-02 : f32
    %580 = vector.broadcast %cst_195 : f32 to vector<16x64xf32>
    %581 = arith.mulf %580, %579 : vector<16x64xf32>
    %582 = arith.addf %577, %581 : vector<16x64xf32>
    %cst_196 = arith.constant 0.797884583 : f32
    %583 = vector.broadcast %cst_196 : f32 to vector<16x64xf32>
    %584 = arith.mulf %583, %582 : vector<16x64xf32>
    %585 = math.tanh %584 : vector<16x64xf32>
    %cst_197 = arith.constant 1.000000e+00 : f32
    %586 = vector.broadcast %cst_197 : f32 to vector<16x64xf32>
    %587 = arith.addf %586, %585 : vector<16x64xf32>
    %cst_198 = arith.constant 5.000000e-01 : f32
    %588 = vector.broadcast %cst_198 : f32 to vector<16x64xf32>
    %589 = arith.mulf %588, %587 : vector<16x64xf32>
    %590 = arith.mulf %577, %589 : vector<16x64xf32>
    %c3_199 = arith.constant 3 : index
    %c0_200 = arith.constant 0 : index
    %c0_201 = arith.constant 0 : index
    %591 = vector.load %arg10[%c3_199, %c0_200, %c0_201] : memref<4x64x32xf32, #tpu.memory_space<vmem>>, vector<1x64x32xf32>
    %592 = vector.shape_cast %591 : vector<1x64x32xf32> to vector<64x32xf32>
    %cst_202 = arith.constant dense<0.000000e+00> : vector<16x32xf32>
    %593 = tpu.matmul %590, %592, %cst_202 {dimension_numbers = #tpu.dot_dimension_numbers<[1], [0], [0], [1], [0, 0, 1, 1], [], []>} : vector<16x64xf32>, vector<64x32xf32>, vector<16x32xf32> -> vector<16x32xf32>
    %594 = vector.extract_strided_slice %566 {offsets = [1, 0], sizes = [1, 32], strides = [1, 1]} : vector<4x32xf32> to vector<1x32xf32>
    %595 = vector.broadcast %594 : vector<1x32xf32> to vector<16x32xf32>
    %596 = arith.addf %593, %595 : vector<16x32xf32>
    %597 = arith.addf %596, %570 : vector<16x32xf32>
    %598 = vector.extract_strided_slice %566 {offsets = [2, 0], sizes = [1, 32], strides = [1, 1]} : vector<4x32xf32> to vector<1x32xf32>
    %599 = vector.extract_strided_slice %566 {offsets = [3, 0], sizes = [1, 32], strides = [1, 1]} : vector<4x32xf32> to vector<1x32xf32>
    %cst_203 = arith.constant dense<0.000000e+00> : vector<16xf32>
    %600 = vector.multi_reduction <add>, %597, %cst_203 [1] : vector<16x32xf32> to vector<16xf32>
    %601 = vector.shape_cast %600 : vector<16xf32> to vector<16x1xf32>
    %cst_204 = arith.constant 3.200000e+01 : f32
    %602 = vector.broadcast %cst_204 : f32 to vector<16x1xf32>
    %603 = arith.divf %601, %602 : vector<16x1xf32>
    %604 = vector.broadcast %603 : vector<16x1xf32> to vector<16x32xf32>
    %605 = arith.subf %597, %604 : vector<16x32xf32>
    %606 = arith.mulf %605, %605 : vector<16x32xf32>
    %cst_205 = arith.constant dense<0.000000e+00> : vector<16xf32>
    %607 = vector.multi_reduction <add>, %606, %cst_205 [1] : vector<16x32xf32> to vector<16xf32>
    %608 = vector.shape_cast %607 : vector<16xf32> to vector<16x1xf32>
    %cst_206 = arith.constant 3.200000e+01 : f32
    %609 = vector.broadcast %cst_206 : f32 to vector<16x1xf32>
    %610 = arith.divf %608, %609 : vector<16x1xf32>
    %611 = vector.broadcast %603 : vector<16x1xf32> to vector<16x32xf32>
    %612 = arith.subf %597, %611 : vector<16x32xf32>
    %cst_207 = arith.constant 9.99999996E-13 : f32
    %613 = vector.broadcast %cst_207 : f32 to vector<16x1xf32>
    %614 = arith.addf %610, %613 : vector<16x1xf32>
    %615 = math.rsqrt %614 : vector<16x1xf32>
    %616 = vector.broadcast %615 : vector<16x1xf32> to vector<16x32xf32>
    %617 = arith.mulf %612, %616 : vector<16x32xf32>
    %618 = vector.broadcast %598 : vector<1x32xf32> to vector<16x32xf32>
    %619 = arith.mulf %617, %618 : vector<16x32xf32>
    %620 = vector.broadcast %599 : vector<1x32xf32> to vector<16x32xf32>
    %621 = arith.addf %619, %620 : vector<16x32xf32>
    %622 = vector.extract_strided_slice %0 {offsets = [2, 0], sizes = [1, 32], strides = [1, 1]} : vector<4x32xf32> to vector<1x32xf32>
    %623 = vector.extract_strided_slice %0 {offsets = [3, 0], sizes = [1, 32], strides = [1, 1]} : vector<4x32xf32> to vector<1x32xf32>
    %cst_208 = arith.constant dense<0.000000e+00> : vector<16xf32>
    %624 = vector.multi_reduction <add>, %621, %cst_208 [1] : vector<16x32xf32> to vector<16xf32>
    %625 = vector.shape_cast %624 : vector<16xf32> to vector<16x1xf32>
    %cst_209 = arith.constant 3.200000e+01 : f32
    %626 = vector.broadcast %cst_209 : f32 to vector<16x1xf32>
    %627 = arith.divf %625, %626 : vector<16x1xf32>
    %628 = vector.broadcast %627 : vector<16x1xf32> to vector<16x32xf32>
    %629 = arith.subf %621, %628 : vector<16x32xf32>
    %630 = arith.mulf %629, %629 : vector<16x32xf32>
    %cst_210 = arith.constant dense<0.000000e+00> : vector<16xf32>
    %631 = vector.multi_reduction <add>, %630, %cst_210 [1] : vector<16x32xf32> to vector<16xf32>
    %632 = vector.shape_cast %631 : vector<16xf32> to vector<16x1xf32>
    %cst_211 = arith.constant 3.200000e+01 : f32
    %633 = vector.broadcast %cst_211 : f32 to vector<16x1xf32>
    %634 = arith.divf %632, %633 : vector<16x1xf32>
    %635 = vector.broadcast %627 : vector<16x1xf32> to vector<16x32xf32>
    %636 = arith.subf %621, %635 : vector<16x32xf32>
    %cst_212 = arith.constant 9.99999996E-13 : f32
    %637 = vector.broadcast %cst_212 : f32 to vector<16x1xf32>
    %638 = arith.addf %634, %637 : vector<16x1xf32>
    %639 = math.rsqrt %638 : vector<16x1xf32>
    %640 = vector.broadcast %639 : vector<16x1xf32> to vector<16x32xf32>
    %641 = arith.mulf %636, %640 : vector<16x32xf32>
    %642 = vector.broadcast %622 : vector<1x32xf32> to vector<16x32xf32>
    %643 = arith.mulf %641, %642 : vector<16x32xf32>
    %644 = vector.broadcast %623 : vector<1x32xf32> to vector<16x32xf32>
    %645 = arith.addf %643, %644 : vector<16x32xf32>
    %c0_213 = arith.constant 0 : index
    %c0_214 = arith.constant 0 : index
    %646 = vector.load %arg13[%c0_213, %c0_214] : memref<32x128xf32, #tpu.memory_space<vmem>>, vector<32x128xf32>
    %cst_215 = arith.constant dense<0.000000e+00> : vector<16x128xf32>
    %647 = tpu.matmul %645, %646, %cst_215 {dimension_numbers = #tpu.dot_dimension_numbers<[1], [0], [0], [1], [0, 0, 1, 1], [], []>} : vector<16x32xf32>, vector<32x128xf32>, vector<16x128xf32> -> vector<16x128xf32>
    %c0_216 = arith.constant 0 : index
    %c0_217 = arith.constant 0 : index
    %648 = vector.load %arg14[%c0_216, %c0_217] : memref<16x128xf32, #tpu.memory_space<vmem>>, vector<16x128xf32>
    tpu.vector_store %arg14[%c0_216, %c0_217], %647 {strides = array<i32>} : memref<16x128xf32, #tpu.memory_space<vmem>>, vector<16x128xf32>,
    return
  }
  func.func @transform_0(%arg0: i32) -> (i32, i32) {
    %c0_i32 = arith.constant 0 : i32
    %c0_i32_0 = arith.constant 0 : i32
    %c0_i32_1 = arith.constant 0 : i32
    return %c0_i32, %c0_i32_0 : i32, i32
  }
  func.func @transform_1(%arg0: i32) -> (i32, i32) {
    %c0_i32 = arith.constant 0 : i32
    %c0_i32_0 = arith.constant 0 : i32
    %c0_i32_1 = arith.constant 0 : i32
    return %c0_i32, %c0_i32_0 : i32, i32
  }
  func.func @transform_2(%arg0: i32) -> (i32, i32, i32) {
    %c0_i32 = arith.constant 0 : i32
    %c0_i32_0 = arith.constant 0 : i32
    %c0_i32_1 = arith.constant 0 : i32
    %c0_i32_2 = arith.constant 0 : i32
    return %c0_i32, %c0_i32_0, %c0_i32_1 : i32, i32, i32
  }
  func.func @transform_3(%arg0: i32) -> (i32, i32, i32) {
    %c0_i32 = arith.constant 0 : i32
    %c0_i32_0 = arith.constant 0 : i32
    %c0_i32_1 = arith.constant 0 : i32
    %c0_i32_2 = arith.constant 0 : i32
    return %c0_i32, %c0_i32_0, %c0_i32_1 : i32, i32, i32
  }
  func.func @transform_4(%arg0: i32) -> (i32, i32, i32) {
    %c0_i32 = arith.constant 0 : i32
    %c0_i32_0 = arith.constant 0 : i32
    %c0_i32_1 = arith.constant 0 : i32
    %c0_i32_2 = arith.constant 0 : i32
    return %c0_i32, %c0_i32_0, %c0_i32_1 : i32, i32, i32
  }
  func.func @transform_5(%arg0: i32) -> (i32, i32, i32) {
    %c0_i32 = arith.constant 0 : i32
    %c0_i32_0 = arith.constant 0 : i32
    %c0_i32_1 = arith.constant 0 : i32
    %c0_i32_2 = arith.constant 0 : i32
    return %c0_i32, %c0_i32_0, %c0_i32_1 : i32, i32, i32
  }
  func.func @transform_6(%arg0: i32) -> (i32, i32, i32) {
    %c0_i32 = arith.constant 0 : i32
    %c0_i32_0 = arith.constant 0 : i32
    %c0_i32_1 = arith.constant 0 : i32
    %c0_i32_2 = arith.constant 0 : i32
    return %c0_i32, %c0_i32_0, %c0_i32_1 : i32, i32, i32
  }
  func.func @transform_7(%arg0: i32) -> (i32, i32, i32) {
    %c0_i32 = arith.constant 0 : i32
    %c0_i32_0 = arith.constant 0 : i32
    %c0_i32_1 = arith.constant 0 : i32
    %c0_i32_2 = arith.constant 0 : i32
    return %c0_i32, %c0_i32_0, %c0_i32_1 : i32, i32, i32
  }
  func.func @transform_8(%arg0: i32) -> (i32, i32, i32) {
    %c0_i32 = arith.constant 0 : i32
    %c0_i32_0 = arith.constant 0 : i32
    %c0_i32_1 = arith.constant 0 : i32
    %c0_i32_2 = arith.constant 0 : i32
    return %c0_i32, %c0_i32_0, %c0_i32_1 : i32, i32, i32
  }
  func.func @transform_9(%arg0: i32) -> (i32, i32, i32) {
    %c0_i32 = arith.constant 0 : i32
    %c0_i32_0 = arith.constant 0 : i32
    %c0_i32_1 = arith.constant 0 : i32
    %c0_i32_2 = arith.constant 0 : i32
    return %c0_i32, %c0_i32_0, %c0_i32_1 : i32, i32, i32
  }
  func.func @transform_10(%arg0: i32) -> (i32, i32, i32) {
    %c0_i32 = arith.constant 0 : i32
    %c0_i32_0 = arith.constant 0 : i32
    %c0_i32_1 = arith.constant 0 : i32
    %c0_i32_2 = arith.constant 0 : i32
    return %c0_i32, %c0_i32_0, %c0_i32_1 : i32, i32, i32
  }
  func.func @transform_11(%arg0: i32) -> (i32, i32) {
    %c0_i32 = arith.constant 0 : i32
    %c0_i32_0 = arith.constant 0 : i32
    %c0_i32_1 = arith.constant 0 : i32
    return %c0_i32, %c0_i32_0 : i32, i32
  }
  func.func @transform_12(%arg0: i32) -> (i32, i32) {
    %c0_i32 = arith.constant 0 : i32
    %c0_i32_0 = arith.constant 0 : i32
    %c0_i32_1 = arith.constant 0 : i32
    return %c0_i32, %c0_i32_0 : i32, i32
  }
  func.func @transform_13(%arg0: i32) -> (i32, i32) {
    %c0_i32 = arith.constant 0 : i32
    %c0_i32_0 = arith.constant 0 : i32
    %c0_i32_1 = arith.constant 0 : i32
    return %c0_i32, %c0_i32_0 : i32, i32
  }
}

</mosaic_0001>

<llo_original>
// kernel: quasar_forward.1
$region0: #{quasar_forward.1}
  #allocation0 [shape = 'u32[]', space=smem, size = 0x4, offset = 0x4, fixed_abs, tag = 'smem constant byte address 0x4 - core index']
  #allocation1 [shape = 'u32[72,128]{1,0:T(1,128)}', space=vmem, size = 0x9000, scoped, tag = 'internal scratch']
  %s0 = inlined_call_operand.vmem [shape: f32[16,32], index: 0, kind: input, shape index: {}]
  %s1 = inlined_call_operand.vmem [shape: f32[1,64], index: 1, kind: input, shape index: {}]
  %s2 = inlined_call_operand.vmem [shape: f32[4,32,112], index: 2, kind: input, shape index: {}]
  %s3 = inlined_call_operand.vmem [shape: f32[4,1,112], index: 3, kind: input, shape index: {}]
  %s4 = inlined_call_operand.vmem [shape: f32[4,32,32], index: 4, kind: input, shape index: {}]
  %s5 = inlined_call_operand.vmem [shape: f32[4,16,16], index: 5, kind: input, shape index: {}]
  %s6 = inlined_call_operand.vmem [shape: f32[4,16,32], index: 6, kind: input, shape index: {}]
  %s7 = inlined_call_operand.vmem [shape: f32[4,32,64], index: 7, kind: input, shape index: {}]
  %s8 = inlined_call_operand.vmem [shape: f32[4,1,64], index: 8, kind: input, shape index: {}]
  %s9 = inlined_call_operand.vmem [shape: f32[4,64,32], index: 9, kind: input, shape index: {}]
  %s10 = inlined_call_operand.vmem [shape: f32[4,4,32], index: 10, kind: input, shape index: {}]
  %s11 = inlined_call_operand.vmem [shape: f32[4,32], index: 11, kind: input, shape index: {}]
  %s12 = inlined_call_operand.vmem [shape: f32[32,128], index: 12, kind: input, shape index: {}]
  %s13 = inlined_call_operand.hbm [shape: f32[16,128], index: 13, kind: output, shape index: {}]
  %s14 = sld [smem:[#allocation0]]
  $region62: #{quasar_forward.1} parent=0
    _
  %s16 = ssub.s32 1, %s14
  %s17 = scalar_select 0, %s16, %s14
  $region1: #{quasar_forward.1} parent=0
    #allocation2 [shape = 'u8[8192]{0}', space=vmem, size = 0x2000, scoped, tag = 'output window, operand 0, single buffered']
    #allocation3 [shape = 's32[1]{0}', space=sflag, size = 0x4, scoped, tag = 'scoped memory for quasar_forward.1']
    %18 = vsyncpa [#allocation3], 0
    // Predicated region
    $region2: #{quasar_forward.1} parent=1 // pred_check
      _
    $region3: #{quasar_forward.1} parent=1 // pred_check_branch
      %20 = sbr.rel (0) target = $region5
    $region4: #{quasar_forward.1} parent=1 // pred_region
      _
    $region5: #{quasar_forward.1} parent=1 // pred_fallthru
      _
    // Predicated region
    $region6: #{quasar_forward.1} parent=1 // pred_check
      _
    $region7: #{quasar_forward.1} parent=1 // pred_check_branch
      %22 = sbr.rel (0) target = $region9
    $region8: #{quasar_forward.1} parent=1 // pred_region
      _
    $region9: #{quasar_forward.1} parent=1 // pred_fallthru
      _
    // Predicated region
    $region10: #{quasar_forward.1} parent=1 // pred_check
      _
    $region11: #{quasar_forward.1} parent=1 // pred_check_branch
      %24 = sbr.rel (0) target = $region13
    $region12: #{quasar_forward.1} parent=1 // pred_region
      _
    $region13: #{quasar_forward.1} parent=1 // pred_fallthru
      _
    // Predicated region
    $region14: #{quasar_forward.1} parent=1 // pred_check
      _
    $region15: #{quasar_forward.1} parent=1 // pred_check_branch
      %26 = sbr.rel (0) target = $region17
    $region16: #{quasar_forward.1} parent=1 // pred_region
      _
    $region17: #{quasar_forward.1} parent=1 // pred_fallthru
      _
    // Predicated region
    $region18: #{quasar_forward.1} parent=1 // pred_check
      _
    $region19: #{quasar_forward.1} parent=1 // pred_check_branch
      %28 = sbr.rel (0) target = $region21
    $region20: #{quasar_forward.1} parent=1 // pred_region
      _
    $region21: #{quasar_forward.1} parent=1 // pred_fallthru
      _
    // Predicated region
    $region22: #{quasar_forward.1} parent=1 // pred_check
      _
    $region23: #{quasar_forward.1} parent=1 // pred_check_branch
      %30 = sbr.rel (0) target = $region25
    $region24: #{quasar_forward.1} parent=1 // pred_region
      _
    $region25: #{quasar_forward.1} parent=1 // pred_fallthru
      _
    // Predicated region
    $region26: #{quasar_forward.1} parent=1 // pred_check
      _
    $region27: #{quasar_forward.1} parent=1 // pred_check_branch
      %32 = sbr.rel (0) target = $region29
    $region28: #{quasar_forward.1} parent=1 // pred_region
      _
    $region29: #{quasar_forward.1} parent=1 // pred_fallthru
      _
    // Predicated region
    $region30: #{quasar_forward.1} parent=1 // pred_check
      _
    $region31: #{quasar_forward.1} parent=1 // pred_check_branch
      %34 = sbr.rel (0) target = $region33
    $region32: #{quasar_forward.1} parent=1 // pred_region
      _
    $region33: #{quasar_forward.1} parent=1 // pred_fallthru
      _
    // Predicated region
    $region34: #{quasar_forward.1} parent=1 // pred_check
      _
    $region35: #{quasar_forward.1} parent=1 // pred_check_branch
      %36 = sbr.rel (0) target = $region37
    $region36: #{quasar_forward.1} parent=1 // pred_region
      _
    $region37: #{quasar_forward.1} parent=1 // pred_fallthru
      _
    // Predicated region
    $region38: #{quasar_forward.1} parent=1 // pred_check
      _
    $region39: #{quasar_forward.1} parent=1 // pred_check_branch
      %38 = sbr.rel (0) target = $region41
    $region40: #{quasar_forward.1} parent=1 // pred_region
      _
    $region41: #{quasar_forward.1} parent=1 // pred_fallthru
      _
    // Predicated region
    $region42: #{quasar_forward.1} parent=1 // pred_check
      _
    $region43: #{quasar_forward.1} parent=1 // pred_check_branch
      %40 = sbr.rel (0) target = $region45
    $region44: #{quasar_forward.1} parent=1 // pred_region
      _
    $region45: #{quasar_forward.1} parent=1 // pred_fallthru
      _
    // Predicated region
    $region46: #{quasar_forward.1} parent=1 // pred_check
      _
    $region47: #{quasar_forward.1} parent=1 // pred_check_branch
      %42 = sbr.rel (0) target = $region49
    $region48: #{quasar_forward.1} parent=1 // pred_region
      _
    $region49: #{quasar_forward.1} parent=1 // pred_fallthru
      _
    // Predicated region
    $region50: #{quasar_forward.1} parent=1 // pred_check
      _
    $region51: #{quasar_forward.1} parent=1 // pred_check_branch
      %44 = sbr.rel (0) target = $region53
    $region52: #{quasar_forward.1} parent=1 // pred_region
      _
    $region53: #{quasar_forward.1} parent=1 // pred_fallthru
      _
    %v45 = vld [vmem:[%s11] sm:$0xf]
    %v46 = vld [vmem:[%s0] sm:$0xff]
    %v47 = vld [vmem:[%s0 + $0x8] sm:$0xff]
    %vm48 = vcmask 261120
    %v49 = vsel %vm48, %v46, 0.0
    %50 = vadd.xlane.f32.xlu0 %v49
    %v51 = vpop.xlane.xlu0 %50
    %v52 = vsel %vm48, %v47, 0.0
    %53 = vadd.xlane.f32.xlu0 %v52
    %v54 = vpop.xlane.xlu0 %53
    %v55 = vrcp.pop 32.0
    %v56 = vmul.f32 32.0, %v55
    %v57 = vsub.f32 1.0, %v56
    %v58 = vmul.f32 %v55, %v57
    %v59 = vadd.f32 %v55, %v58
    %vm60 = vweird.f32 %v55
    %v61 = vsel %vm60, %v55, %v59
    %v62 = vmul.f32 %v51, %v61
    %v63 = vmul.f32 %v54, %v61
    %v64 = vsub.f32 %v46, %v62
    %v65 = vsub.f32 %v47, %v63
    %v66 = vmul.f32 %v64, %v64
    %v67 = vmul.f32 %v65, %v65
    %v68 = vsel %vm48, %v66, 0.0
    %69 = vadd.xlane.f32.xlu0 %v68
    %v70 = vpop.xlane.xlu0 %69
    %v71 = vsel %vm48, %v67, 0.0
    %72 = vadd.xlane.f32.xlu0 %v71
    %v73 = vpop.xlane.xlu0 %72
    %v74 = vmul.f32 %v70, %v61
    %v75 = vmul.f32 %v73, %v61
    %v76 = vadd.f32 %v74, 1e-12
    %v77 = vadd.f32 %v75, 1e-12
    %v78 = vrsqrt.pop %v76
    %v79 = vmul.f32 %v78, %v76
    %v80 = vmul.f32 %v79, %v78
    %v81 = vmul.f32 0.5, %v80
    %v82 = vsub.f32 1.5, %v81
    %v83 = vmul.f32 %v78, %v82
    %vm84 = vweird.f32 %v76
    %vm85 = vweird.f32 %v78
    %vm86 = vmor %vm84, %vm85
    %v87 = vsel %vm86, %v78, %v83
    %v88 = vrsqrt.pop %v77
    %v89 = vmul.f32 %v88, %v77
    %v90 = vmul.f32 %v89, %v88
    %v91 = vmul.f32 0.5, %v90
    %v92 = vsub.f32 1.5, %v91
    %v93 = vmul.f32 %v88, %v92
    %vm94 = vweird.f32 %v77
    %vm95 = vweird.f32 %v88
    %vm96 = vmor %vm94, %vm95
    %v97 = vsel %vm96, %v88, %v93
    %v98 = vmul.f32 %v64, %v87
    %v99 = vmul.f32 %v65, %v97
    %v100 = vperm.slane %v45, 0
    %v101 = vmul.f32 %v98, %v100
    %v102 = vmul.f32 %v99, %v100
    %v103 = vperm.slane %v45, 1
    %v104 = vadd.f32 %v101, %v103
    %v105 = vadd.f32 %v102, %v103
    %v106 = vlaneseq
    %v107 = vshrl.u32 %v106, 7
    %v108 = vadd.s32 %v107, 8
    %v109 = vadd.s32 %v107, 16
    %v110 = vadd.s32 %v107, 24
    %v111 = vadd.s32 %v107, 32
    %v112 = vadd.s32 %v107, 40
    %v113 = vadd.s32 %v107, 48
    %v114 = vadd.s32 %v107, 56
    %v115 = vlaneseq
    %v116 = vand.u32 %v115, 127
    %v117 = vand.u32 %v107, 4294967288
    %v118 = vand.u32 %v108, 4294967288
    %v119 = vand.u32 %v109, 4294967288
    %v120 = vand.u32 %v110, 4294967288
    %v121 = vand.u32 %v111, 4294967288
    %v122 = vand.u32 %v112, 4294967288
    %v123 = vand.u32 %v113, 4294967288
    %v124 = vand.u32 %v114, 4294967288
    %v125 = vand.u32 %v116, 4294967288
    %vm126 = vcmp.eq.s32.totalorder %v117, %v125
    %vm127 = vcmp.eq.s32.totalorder %v118, %v125
    %vm128 = vcmp.eq.s32.totalorder %v119, %v125
    %vm129 = vcmp.eq.s32.totalorder %v120, %v125
    %vm130 = vcmp.eq.s32.totalorder %v121, %v125
    %vm131 = vcmp.eq.s32.totalorder %v122, %v125
    %vm132 = vcmp.eq.s32.totalorder %v123, %v125
    %vm133 = vcmp.eq.s32.totalorder %v124, %v125
    %v134 = vld [vmem:[%s1] sm:$0x1]
    %v136 = vperm.slane %v134, 0
    %v138 = vsel %vm126, %v136, -1e+09
    %v139 = vsel %vm127, %v136, -1e+09
    %v140 = vsel %vm128, %v136, -1e+09
    %v141 = vsel %vm129, %v136, -1e+09
    %v142 = vsel %vm130, %v136, -1e+09
    %v143 = vsel %vm131, %v136, -1e+09
    %v144 = vsel %vm132, %v136, -1e+09
    %v145 = vsel %vm133, %v136, -1e+09
    %v146 = vld [vmem:[%s2] sm:$0xff]
    %v147 = vld [vmem:[%s2 + $0x8] sm:$0xff]
    %v148 = vld [vmem:[%s2 + $0x10] sm:$0xff]
    %v149 = vld [vmem:[%s2 + $0x18] sm:$0xff]
    %v150 = vld [vmem:[%s3] sm:$0x1]
    %v152 = vperm.slane %v150, 0
    %v155 = vsel %vm48, %v104, 0
    %v158 = vsel %vm48, %v105, 0
    %160 = vmatpush.msra.mxu0 0.0
    %161 = vmatpush.msra.mxu0 0.0
    %162 = vmatpush.msra.mxu0 0.0
    %163 = vmatpush.msra.mxu0 0.0
    %164 = vmatpush.msra.mxu0 0.0
    %165 = vmatpush.msra.mxu0 0.0
    %166 = vmatpush.msra.mxu0 0.0
    %167 = vmatpush.msra.mxu0 0.0
    %168 = vmatpush.msra.mxu0 0.0
    %169 = vmatpush.msra.mxu0 0.0
    %170 = vmatpush.msra.mxu0 0.0
    %171 = vmatpush.msra.mxu0 0.0
    %172 = vmatpush.msra.mxu0 %v149
    %173 = vmatpush.msra.mxu0 %v148
    %174 = vmatpush.msra.mxu0 %v147
    %175 = vmatpush.msra.mxu0 %v146
    %176 = vmatmul.f32.gmra.mxu0 %v155
    %v177 = vpop.f32.mrf.mxu0
    %v178 = vadd.f32 %v152, %v177
    %179 = vmatmul.f32.gmra.mxu0 %v158
    %v180 = vpop.f32.mrf.mxu0
    %v181 = vadd.f32 %v152, %v180
    %182 = vdwg.mxu0
    %184 = vrot.lane.b32.xlu0 %v178, 120
    %v185 = vpop.permute.xlu0 %184
    %186 = vrot.lane.b32.xlu0 %v178, 112
    %v187 = vpop.permute.xlu0 %186
    %188 = vrot.lane.b32.xlu0 %v178, 104
    %v189 = vpop.permute.xlu0 %188
    %191 = vrot.lane.b32.xlu0 %v181, 120
    %v192 = vpop.permute.xlu0 %191
    %193 = vrot.lane.b32.xlu0 %v181, 112
    %v194 = vpop.permute.xlu0 %193
    %195 = vrot.lane.b32.xlu0 %v181, 104
    %v196 = vpop.permute.xlu0 %195
    %197 = vrot.lane.b32.xlu0 %v178, 96
    %v198 = vpop.permute.xlu0 %197
    %199 = vrot.lane.b32.xlu0 %v185, 96
    %v200 = vpop.permute.xlu0 %199
    %201 = vrot.lane.b32.xlu0 %v187, 96
    %v202 = vpop.permute.xlu0 %201
    %203 = vrot.lane.b32.xlu0 %v189, 96
    %v204 = vpop.permute.xlu0 %203
    %205 = vrot.lane.b32.xlu0 %v181, 96
    %v206 = vpop.permute.xlu0 %205
    %207 = vrot.lane.b32.xlu0 %v192, 96
    %v208 = vpop.permute.xlu0 %207
    %209 = vrot.lane.b32.xlu0 %v194, 96
    %v210 = vpop.permute.xlu0 %209
    %211 = vrot.lane.b32.xlu0 %v196, 96
    %v212 = vpop.permute.xlu0 %211
    %vm213 = vcmask 64512
    %v214 = vsel %vm213, %v178, 0
    %v216 = vsel %vm213, %v185, 0
    %v218 = vsel %vm213, %v187, 0
    %v220 = vsel %vm213, %v189, 0
    %v222 = vsel %vm213, %v181, 0
    %v224 = vsel %vm213, %v192, 0
    %v226 = vsel %vm213, %v194, 0
    %v228 = vsel %vm213, %v196, 0
    %v230 = vsel %vm213, %v198, 0
    %v232 = vsel %vm213, %v200, 0
    %v234 = vsel %vm213, %v202, 0
    %v236 = vsel %vm213, %v204, 0
    %v238 = vsel %vm213, %v206, 0
    %v240 = vsel %vm213, %v208, 0
    %v242 = vsel %vm213, %v210, 0
    %v244 = vsel %vm213, %v212, 0
    %246 = vmatpush.xpose.msra.mxu0 0.0
    %247 = vmatpush.xpose.msra.mxu0 0.0
    %248 = vmatpush.xpose.msra.mxu0 0.0
    %249 = vmatpush.xpose.msra.mxu0 0.0
    %250 = vmatpush.xpose.msra.mxu0 0.0
    %251 = vmatpush.xpose.msra.mxu0 0.0
    %252 = vmatpush.xpose.msra.mxu0 0.0
    %253 = vmatpush.xpose.msra.mxu0 0.0
    %254 = vmatpush.xpose.msra.mxu0 %v244
    %255 = vmatpush.xpose.msra.mxu0 %v242
    %256 = vmatpush.xpose.msra.mxu0 %v240
    %257 = vmatpush.xpose.msra.mxu0 %v238
    %258 = vmatpush.xpose.msra.mxu0 %v236
    %259 = vmatpush.xpose.msra.mxu0 %v234
    %260 = vmatpush.xpose.msra.mxu0 %v232
    %261 = vmatpush.xpose.msra.mxu0 %v230
    %262 = vmatmul.f32.gmra.mxu0 %v214
    %v263 = vpop.f32.mrf.mxu0
    %v264 = vadd.f32 %v138, %v263
    %265 = vmatmul.f32.gmra.mxu0 %v216
    %v266 = vpop.f32.mrf.mxu0
    %v267 = vadd.f32 %v139, %v266
    %268 = vmatmul.f32.gmra.mxu0 %v218
    %v269 = vpop.f32.mrf.mxu0
    %v270 = vadd.f32 %v140, %v269
    %271 = vmatmul.f32.gmra.mxu0 %v220
    %v272 = vpop.f32.mrf.mxu0
    %v273 = vadd.f32 %v141, %v272
    %274 = vmatmul.f32.gmra.mxu0 %v222
    %v275 = vpop.f32.mrf.mxu0
    %v276 = vadd.f32 %v142, %v275
    %277 = vmatmul.f32.gmra.mxu0 %v224
    %v278 = vpop.f32.mrf.mxu0
    %v279 = vadd.f32 %v143, %v278
    %280 = vmatmul.f32.gmra.mxu0 %v226
    %v281 = vpop.f32.mrf.mxu0
    %v282 = vadd.f32 %v144, %v281
    %283 = vmatmul.f32.gmra.mxu0 %v228
    %v284 = vpop.f32.mrf.mxu0
    %v285 = vadd.f32 %v145, %v284
    %286 = vdwg.mxu0
    %vm287 = vcmask 523264
    %v288 = vsel %vm287, %v264, -inf
    %289 = vmax.xlane.f32.xlu0 %v288
    %v290 = vpop.xlane.xlu0 %289
    %v291 = vsel %vm287, %v267, -inf
    %292 = vmax.xlane.f32.xlu0 %v291
    %v293 = vpop.xlane.xlu0 %292
    %v294 = vsel %vm287, %v270, -inf
    %295 = vmax.xlane.f32.xlu0 %v294
    %v296 = vpop.xlane.xlu0 %295
    %v297 = vsel %vm287, %v273, -inf
    %298 = vmax.xlane.f32.xlu0 %v297
    %v299 = vpop.xlane.xlu0 %298
    %v300 = vsel %vm287, %v276, -inf
    %301 = vmax.xlane.f32.xlu0 %v300
    %v302 = vpop.xlane.xlu0 %301
    %v303 = vsel %vm287, %v279, -inf
    %304 = vmax.xlane.f32.xlu0 %v303
    %v305 = vpop.xlane.xlu0 %304
    %v306 = vsel %vm287, %v282, -inf
    %307 = vmax.xlane.f32.xlu0 %v306
    %v308 = vpop.xlane.xlu0 %307
    %v309 = vsel %vm287, %v285, -inf
    %310 = vmax.xlane.f32.xlu0 %v309
    %v311 = vpop.xlane.xlu0 %310
    %v312 = vsub.f32 %v264, %v290
    %v313 = vsub.f32 %v267, %v293
    %v314 = vsub.f32 %v270, %v296
    %v315 = vsub.f32 %v273, %v299
    %v316 = vsub.f32 %v276, %v302
    %v317 = vsub.f32 %v279, %v305
    %v318 = vsub.f32 %v282, %v308
    %v319 = vsub.f32 %v285, %v311
    %v320 = vmul.f32 %v312, 1.442695
    %v321 = vpow.pop %v320
    %v322 = vmul.f32 %v313, 1.442695
    %v323 = vpow.pop %v322
    %v324 = vmul.f32 %v314, 1.442695
    %v325 = vpow.pop %v324
    %v326 = vmul.f32 %v315, 1.442695
    %v327 = vpow.pop %v326
    %v328 = vmul.f32 %v316, 1.442695
    %v329 = vpow.pop %v328
    %v330 = vmul.f32 %v317, 1.442695
    %v331 = vpow.pop %v330
    %v332 = vmul.f32 %v318, 1.442695
    %v333 = vpow.pop %v332
    %v334 = vmul.f32 %v319, 1.442695
    %v335 = vpow.pop %v334
    %v336 = vsel %vm287, %v321, 0.0
    %337 = vadd.xlane.f32.xlu0 %v336
    %v338 = vpop.xlane.xlu0 %337
    %v339 = vsel %vm287, %v323, 0.0
    %340 = vadd.xlane.f32.xlu0 %v339
    %v341 = vpop.xlane.xlu0 %340
    %v342 = vsel %vm287, %v325, 0.0
    %343 = vadd.xlane.f32.xlu0 %v342
    %v344 = vpop.xlane.xlu0 %343
    %v345 = vsel %vm287, %v327, 0.0
    %346 = vadd.xlane.f32.xlu0 %v345
    %v347 = vpop.xlane.xlu0 %346
    %v348 = vsel %vm287, %v329, 0.0
    %349 = vadd.xlane.f32.xlu0 %v348
    %v350 = vpop.xlane.xlu0 %349
    %v351 = vsel %vm287, %v331, 0.0
    %352 = vadd.xlane.f32.xlu0 %v351
    %v353 = vpop.xlane.xlu0 %352
    %v354 = vsel %vm287, %v333, 0.0
    %355 = vadd.xlane.f32.xlu0 %v354
    %v356 = vpop.xlane.xlu0 %355
    %v357 = vsel %vm287, %v335, 0.0
    %358 = vadd.xlane.f32.xlu0 %v357
    %v359 = vpop.xlane.xlu0 %358
    %v360 = vrcp.pop %v338
    %v361 = vrcp.pop %v341
    %v362 = vrcp.pop %v344
    %v363 = vrcp.pop %v347
    %v364 = vrcp.pop %v350
    %v365 = vrcp.pop %v353
    %v366 = vrcp.pop %v356
    %v367 = vrcp.pop %v359
    %v368 = vmul.f32 %v338, %v360
    %v369 = vmul.f32 %v341, %v361
    %v370 = vmul.f32 %v344, %v362
    %v371 = vmul.f32 %v347, %v363
    %v372 = vmul.f32 %v350, %v364
    %v373 = vmul.f32 %v353, %v365
    %v374 = vmul.f32 %v356, %v366
    %v375 = vmul.f32 %v359, %v367
    %v376 = vsub.f32 2.0, %v368
    %v377 = vsub.f32 2.0, %v369
    %v378 = vsub.f32 2.0, %v370
    %v379 = vsub.f32 2.0, %v371
    %v380 = vsub.f32 2.0, %v372
    %v381 = vsub.f32 2.0, %v373
    %v382 = vsub.f32 2.0, %v374
    %v383 = vsub.f32 2.0, %v375
    %v384 = vmul.f32 %v360, %v376
    %v385 = vmul.f32 %v361, %v377
    %v386 = vmul.f32 %v362, %v378
    %v387 = vmul.f32 %v363, %v379
    %v388 = vmul.f32 %v364, %v380
    %v389 = vmul.f32 %v365, %v381
    %v390 = vmul.f32 %v366, %v382
    %v391 = vmul.f32 %v367, %v383
    %v392 = vmul.f32 %v321, %v384
    %v393 = vmul.f32 %v323, %v385
    %v394 = vmul.f32 %v325, %v386
    %v395 = vmul.f32 %v327, %v387
    %v396 = vmul.f32 %v329, %v388
    %v397 = vmul.f32 %v331, %v389
    %v398 = vmul.f32 %v333, %v390
    %v399 = vmul.f32 %v335, %v391
    %400 = vrot.lane.b32.xlu0 %v178, 64
    %v401 = vpop.permute.xlu0 %400
    %402 = vrot.lane.b32.xlu0 %v185, 64
    %v403 = vpop.permute.xlu0 %402
    %404 = vrot.lane.b32.xlu0 %v187, 64
    %v405 = vpop.permute.xlu0 %404
    %406 = vrot.lane.b32.xlu0 %v189, 64
    %v407 = vpop.permute.xlu0 %406
    %408 = vrot.lane.b32.xlu0 %v181, 64
    %v409 = vpop.permute.xlu0 %408
    %410 = vrot.lane.b32.xlu0 %v192, 64
    %v411 = vpop.permute.xlu0 %410
    %412 = vrot.lane.b32.xlu0 %v194, 64
    %v413 = vpop.permute.xlu0 %412
    %414 = vrot.lane.b32.xlu0 %v196, 64
    %v415 = vpop.permute.xlu0 %414
    %v425 = vsel %vm287, %v392, 0
    %v428 = vsel %vm287, %v393, 0
    %v431 = vsel %vm287, %v394, 0
    %v434 = vsel %vm287, %v395, 0
    %v437 = vsel %vm287, %v396, 0
    %v440 = vsel %vm287, %v397, 0
    %v443 = vsel %vm287, %v398, 0
    %v446 = vsel %vm287, %v399, 0
    %448 = vmatpush.msra.mxu0 0.0
    %449 = vmatpush.msra.mxu0 0.0
    %450 = vmatpush.msra.mxu0 0.0
    %451 = vmatpush.msra.mxu0 0.0
    %452 = vmatpush.msra.mxu0 0.0
    %453 = vmatpush.msra.mxu0 0.0
    %454 = vmatpush.msra.mxu0 0.0
    %455 = vmatpush.msra.mxu0 0.0
    %456 = vmatpush.msra.mxu0 %v415
    %457 = vmatpush.msra.mxu0 %v413
    %458 = vmatpush.msra.mxu0 %v411
    %459 = vmatpush.msra.mxu0 %v409
    %460 = vmatpush.msra.mxu0 %v407
    %461 = vmatpush.msra.mxu0 %v405
    %462 = vmatpush.msra.mxu0 %v403
    %463 = vmatpush.msra.mxu0 %v401
    %464 = vmatmul.f32.gmra.mxu0 %v425
    %v465 = vpop.f32.mrf.mxu0
    %v466 = vadd.f32 0.0, %v465
    %467 = vmatmul.f32.gmra.mxu0 %v428
    %v468 = vpop.f32.mrf.mxu0
    %v469 = vadd.f32 0.0, %v468
    %470 = vmatmul.f32.gmra.mxu0 %v431
    %v471 = vpop.f32.mrf.mxu0
    %v472 = vadd.f32 0.0, %v471
    %473 = vmatmul.f32.gmra.mxu0 %v434
    %v474 = vpop.f32.mrf.mxu0
    %v475 = vadd.f32 0.0, %v474
    %476 = vmatmul.f32.gmra.mxu0 %v437
    %v477 = vpop.f32.mrf.mxu0
    %v478 = vadd.f32 0.0, %v477
    %479 = vmatmul.f32.gmra.mxu0 %v440
    %v480 = vpop.f32.mrf.mxu0
    %v481 = vadd.f32 0.0, %v480
    %482 = vmatmul.f32.gmra.mxu0 %v443
    %v483 = vpop.f32.mrf.mxu0
    %v484 = vadd.f32 0.0, %v483
    %485 = vmatmul.f32.gmra.mxu0 %v446
    %v486 = vpop.f32.mrf.mxu0
    %v487 = vadd.f32 0.0, %v486
    %488 = vdwg.mxu0
    %490 = vrot.lane.b32.xlu0 %v469, 8
    %v491 = vpop.permute.xlu0 %490
    %494 = vrot.lane.b32.xlu0 %v472, 16
    %v495 = vpop.permute.xlu0 %494
    %498 = vrot.lane.b32.xlu0 %v475, 24
    %v499 = vpop.permute.xlu0 %498
    %v501 = vsel %vm213, %v466, %v491
    %vm502 = vcmask 130048
    %v503 = vsel %vm502, %v501, %v495
    %vm504 = vcmask 195584
    %v505 = vsel %vm504, %v503, %v499
    %507 = vrot.lane.b32.xlu0 %v481, 8
    %v508 = vpop.permute.xlu0 %507
    %511 = vrot.lane.b32.xlu0 %v484, 16
    %v512 = vpop.permute.xlu0 %511
    %515 = vrot.lane.b32.xlu0 %v487, 24
    %v516 = vpop.permute.xlu0 %515
    %v518 = vsel %vm213, %v478, %v508
    %v519 = vsel %vm502, %v518, %v512
    %v520 = vsel %vm504, %v519, %v516
    %v521 = vld [vmem:[%s4] sm:$0xff]
    %v522 = vld [vmem:[%s4 + $0x8] sm:$0xff]
    %v523 = vld [vmem:[%s4 + $0x10] sm:$0xff]
    %v524 = vld [vmem:[%s4 + $0x18] sm:$0xff]
    %v525 = vld [vmem:[%s5] sm:$0xff]
    %v526 = vld [vmem:[%s5 + $0x8] sm:$0xff]
    %527 = vrot.lane.b32.xlu0 %v178, 32
    %v528 = vpop.permute.xlu0 %527
    %529 = vrot.lane.b32.xlu0 %v181, 32
    %v530 = vpop.permute.xlu0 %529
    %v531 = vsel %vm502, %v528, 0
    %v533 = vsel %vm502, %v530, 0
    %535 = vmatpush.msra.mxu0 0.0
    %536 = vmatpush.msra.mxu0 0.0
    %537 = vmatpush.msra.mxu0 0.0
    %538 = vmatpush.msra.mxu0 0.0
    %539 = vmatpush.msra.mxu0 0.0
    %540 = vmatpush.msra.mxu0 0.0
    %541 = vmatpush.msra.mxu0 0.0
    %542 = vmatpush.msra.mxu0 0.0
    %543 = vmatpush.msra.mxu0 0.0
    %544 = vmatpush.msra.mxu0 0.0
    %545 = vmatpush.msra.mxu0 0.0
    %546 = vmatpush.msra.mxu0 0.0
    %547 = vmatpush.msra.mxu0 0.0
    %548 = vmatpush.msra.mxu0 0.0
    %549 = vmatpush.msra.mxu0 %v526
    %550 = vmatpush.msra.mxu0 %v525
    %551 = vmatmul.f32.gmra.mxu0 %v531
    %v552 = vpop.f32.mrf.mxu0
    %v553 = vadd.f32 0.0, %v552
    %554 = vmatmul.f32.gmra.mxu0 %v533
    %v555 = vpop.f32.mrf.mxu0
    %v556 = vadd.f32 0.0, %v555
    %557 = vdwg.mxu0
    %v558 = vsel %vm502, %v553, -inf
    %559 = vmax.xlane.f32.xlu0 %v558
    %v560 = vpop.xlane.xlu0 %559
    %v561 = vsel %vm502, %v556, -inf
    %562 = vmax.xlane.f32.xlu0 %v561
    %v563 = vpop.xlane.xlu0 %562
    %v564 = vsub.f32 %v553, %v560
    %v565 = vsub.f32 %v556, %v563
    %v566 = vmul.f32 %v564, 1.442695
    %v567 = vpow.pop %v566
    %v568 = vmul.f32 %v565, 1.442695
    %v569 = vpow.pop %v568
    %v570 = vsel %vm502, %v567, 0.0
    %571 = vadd.xlane.f32.xlu0 %v570
    %v572 = vpop.xlane.xlu0 %571
    %v573 = vsel %vm502, %v569, 0.0
    %574 = vadd.xlane.f32.xlu0 %v573
    %v575 = vpop.xlane.xlu0 %574
    %v576 = vrcp.pop %v572
    %v577 = vrcp.pop %v575
    %v578 = vmul.f32 %v572, %v576
    %v579 = vmul.f32 %v575, %v577
    %v580 = vsub.f32 2.0, %v578
    %v581 = vsub.f32 2.0, %v579
    %v582 = vmul.f32 %v576, %v580
    %v583 = vmul.f32 %v577, %v581
    %v584 = vmul.f32 %v567, %v582
    %v585 = vmul.f32 %v569, %v583
    %v586 = vld [vmem:[%s6] sm:$0xff]
    %v587 = vld [vmem:[%s6 + $0x8] sm:$0xff]
    %v589 = vsel %vm502, %v584, 0
    %v592 = vsel %vm502, %v585, 0
    %594 = vmatpush.msra.mxu0 0.0
    %595 = vmatpush.msra.mxu0 0.0
    %596 = vmatpush.msra.mxu0 0.0
    %597 = vmatpush.msra.mxu0 0.0
    %598 = vmatpush.msra.mxu0 0.0
    %599 = vmatpush.msra.mxu0 0.0
    %600 = vmatpush.msra.mxu0 0.0
    %601 = vmatpush.msra.mxu0 0.0
    %602 = vmatpush.msra.mxu0 0.0
    %603 = vmatpush.msra.mxu0 0.0
    %604 = vmatpush.msra.mxu0 0.0
    %605 = vmatpush.msra.mxu0 0.0
    %606 = vmatpush.msra.mxu0 0.0
    %607 = vmatpush.msra.mxu0 0.0
    %608 = vmatpush.msra.mxu0 %v587
    %609 = vmatpush.msra.mxu0 %v586
    %610 = vmatmul.f32.gmra.mxu0 %v589
    %v611 = vpop.f32.mrf.mxu0
    %v612 = vadd.f32 0.0, %v611
    %613 = vmatmul.f32.gmra.mxu0 %v592
    %v614 = vpop.f32.mrf.mxu0
    %v615 = vadd.f32 0.0, %v614
    %616 = vdwg.mxu0
    %v617 = vld [vmem:[%s10] sm:$0xf]
    %v619 = vsel %vm48, %v505, 0
    %v622 = vsel %vm48, %v520, 0
    %624 = vmatpush.msra.mxu0 0.0
    %625 = vmatpush.msra.mxu0 0.0
    %626 = vmatpush.msra.mxu0 0.0
    %627 = vmatpush.msra.mxu0 0.0
    %628 = vmatpush.msra.mxu0 0.0
    %629 = vmatpush.msra.mxu0 0.0
    %630 = vmatpush.msra.mxu0 0.0
    %631 = vmatpush.msra.mxu0 0.0
    %632 = vmatpush.msra.mxu0 0.0
    %633 = vmatpush.msra.mxu0 0.0
    %634 = vmatpush.msra.mxu0 0.0
    %635 = vmatpush.msra.mxu0 0.0
    %636 = vmatpush.msra.mxu0 %v524
    %637 = vmatpush.msra.mxu0 %v523
    %638 = vmatpush.msra.mxu0 %v522
    %639 = vmatpush.msra.mxu0 %v521
    %640 = vmatmul.f32.gmra.mxu0 %v619
    %v641 = vpop.f32.mrf.mxu0
    %v642 = vadd.f32 %v612, %v641
    %643 = vmatmul.f32.gmra.mxu0 %v622
    %v644 = vpop.f32.mrf.mxu0
    %v645 = vadd.f32 %v615, %v644
    %646 = vdwg.mxu0
    %v647 = vperm.slane %v617, 0
    %v648 = vadd.f32 %v642, %v647
    %v649 = vadd.f32 %v645, %v647
    %v650 = vld [vmem:[%s7] sm:$0xff]
    %v651 = vld [vmem:[%s7 + $0x8] sm:$0xff]
    %v652 = vld [vmem:[%s7 + $0x10] sm:$0xff]
    %v653 = vld [vmem:[%s7 + $0x18] sm:$0xff]
    %v654 = vld [vmem:[%s8] sm:$0x1]
    %v656 = vperm.slane %v654, 0
    %v659 = vsel %vm48, %v648, 0
    %v662 = vsel %vm48, %v649, 0
    %664 = vmatpush.msra.mxu0 0.0
    %665 = vmatpush.msra.mxu0 0.0
    %666 = vmatpush.msra.mxu0 0.0
    %667 = vmatpush.msra.mxu0 0.0
    %668 = vmatpush.msra.mxu0 0.0
    %669 = vmatpush.msra.mxu0 0.0
    %670 = vmatpush.msra.mxu0 0.0
    %671 = vmatpush.msra.mxu0 0.0
    %672 = vmatpush.msra.mxu0 0.0
    %673 = vmatpush.msra.mxu0 0.0
    %674 = vmatpush.msra.mxu0 0.0
    %675 = vmatpush.msra.mxu0 0.0
    %676 = vmatpush.msra.mxu0 %v653
    %677 = vmatpush.msra.mxu0 %v652
    %678 = vmatpush.msra.mxu0 %v651
    %679 = vmatpush.msra.mxu0 %v650
    %680 = vmatmul.f32.gmra.mxu0 %v659
    %v681 = vpop.f32.mrf.mxu0
    %v682 = vadd.f32 %v656, %v681
    %683 = vmatmul.f32.gmra.mxu0 %v662
    %v684 = vpop.f32.mrf.mxu0
    %v685 = vadd.f32 %v656, %v684
    %686 = vdwg.mxu0
    %v687 = vmul.f32 %v682, %v682
    %v688 = vmul.f32 %v685, %v685
    %v689 = vmul.f32 %v682, %v687
    %v690 = vmul.f32 %v685, %v688
    %v691 = vmul.f32 %v689, 0.044715
    %v692 = vmul.f32 %v690, 0.044715
    %v693 = vadd.f32 %v682, %v691
    %v694 = vadd.f32 %v685, %v692
    %v695 = vmul.f32 %v693, 0.7978846
    %v696 = vmul.f32 %v694, 0.7978846
    %v697 = vtanh.pop %v695
    %v698 = vtanh.pop %v696
    %v699 = vadd.f32 %v697, 1.0
    %v700 = vadd.f32 %v698, 1.0
    %v701 = vmul.f32 %v699, 0.5
    %v702 = vmul.f32 %v700, 0.5
    %v703 = vmul.f32 %v682, %v701
    %v704 = vmul.f32 %v685, %v702
    %v705 = vld [vmem:[%s9] sm:$0xff]
    %v706 = vld [vmem:[%s9 + $0x8] sm:$0xff]
    %v707 = vld [vmem:[%s9 + $0x10] sm:$0xff]
    %v708 = vld [vmem:[%s9 + $0x18] sm:$0xff]
    %v709 = vld [vmem:[%s9 + $0x20] sm:$0xff]
    %v710 = vld [vmem:[%s9 + $0x28] sm:$0xff]
    %v711 = vld [vmem:[%s9 + $0x30] sm:$0xff]
    %v712 = vld [vmem:[%s9 + $0x38] sm:$0xff]
    %v713 = vperm.slane %v617, 1
    %v715 = vsel %vm287, %v703, 0
    %v718 = vsel %vm287, %v704, 0
    %720 = vmatpush.msra.mxu0 0.0
    %721 = vmatpush.msra.mxu0 0.0
    %722 = vmatpush.msra.mxu0 0.0
    %723 = vmatpush.msra.mxu0 0.0
    %724 = vmatpush.msra.mxu0 0.0
    %725 = vmatpush.msra.mxu0 0.0
    %726 = vmatpush.msra.mxu0 0.0
    %727 = vmatpush.msra.mxu0 0.0
    %728 = vmatpush.msra.mxu0 %v712
    %729 = vmatpush.msra.mxu0 %v711
    %730 = vmatpush.msra.mxu0 %v710
    %731 = vmatpush.msra.mxu0 %v709
    %732 = vmatpush.msra.mxu0 %v708
    %733 = vmatpush.msra.mxu0 %v707
    %734 = vmatpush.msra.mxu0 %v706
    %735 = vmatpush.msra.mxu0 %v705
    %736 = vmatmul.f32.gmra.mxu0 %v715
    %v737 = vpop.f32.mrf.mxu0
    %v738 = vadd.f32 %v713, %v737
    %739 = vmatmul.f32.gmra.mxu0 %v718
    %v740 = vpop.f32.mrf.mxu0
    %v741 = vadd.f32 %v713, %v740
    %742 = vdwg.mxu0
    %v743 = vadd.f32 %v738, %v648
    %v744 = vadd.f32 %v741, %v649
    %v745 = vsel %vm48, %v743, 0.0
    %746 = vadd.xlane.f32.xlu0 %v745
    %v747 = vpop.xlane.xlu0 %746
    %v748 = vsel %vm48, %v744, 0.0
    %749 = vadd.xlane.f32.xlu0 %v748
    %v750 = vpop.xlane.xlu0 %749
    %v751 = vmul.f32 %v747, %v61
    %v752 = vmul.f32 %v750, %v61
    %v753 = vsub.f32 %v743, %v751
    %v754 = vsub.f32 %v744, %v752
    %v755 = vmul.f32 %v753, %v753
    %v756 = vmul.f32 %v754, %v754
    %v757 = vsel %vm48, %v755, 0.0
    %758 = vadd.xlane.f32.xlu0 %v757
    %v759 = vpop.xlane.xlu0 %758
    %v760 = vsel %vm48, %v756, 0.0
    %761 = vadd.xlane.f32.xlu0 %v760
    %v762 = vpop.xlane.xlu0 %761
    %v763 = vmul.f32 %v759, %v61
    %v764 = vmul.f32 %v762, %v61
    %v765 = vadd.f32 %v763, 1e-12
    %v766 = vadd.f32 %v764, 1e-12
    %v767 = vrsqrt.pop %v765
    %v768 = vmul.f32 %v767, %v765
    %v769 = vmul.f32 %v768, %v767
    %v770 = vmul.f32 0.5, %v769
    %v771 = vsub.f32 1.5, %v770
    %v772 = vmul.f32 %v767, %v771
    %vm773 = vweird.f32 %v765
    %vm774 = vweird.f32 %v767
    %vm775 = vmor %vm773, %vm774
    %v776 = vsel %vm775, %v767, %v772
    %v777 = vrsqrt.pop %v766
    %v778 = vmul.f32 %v777, %v766
    %v779 = vmul.f32 %v778, %v777
    %v780 = vmul.f32 0.5, %v779
    %v781 = vsub.f32 1.5, %v780
    %v782 = vmul.f32 %v777, %v781
    %vm783 = vweird.f32 %v766
    %vm784 = vweird.f32 %v777
    %vm785 = vmor %vm783, %vm784
    %v786 = vsel %vm785, %v777, %v782
    %v787 = vmul.f32 %v753, %v776
    %v788 = vmul.f32 %v754, %v786
    %v789 = vperm.slane %v617, 2
    %v790 = vmul.f32 %v787, %v789
    %v791 = vmul.f32 %v788, %v789
    %v792 = vperm.slane %v617, 3
    %v793 = vadd.f32 %v790, %v792
    %v794 = vadd.f32 %v791, %v792
    %s795 = scalar_lea.vmem %s2, 32
    %v796 = vld [vmem:[%s795] sm:$0xff]
    %v797 = vld [vmem:[%s795 + $0x8] sm:$0xff]
    %v798 = vld [vmem:[%s795 + $0x10] sm:$0xff]
    %v799 = vld [vmem:[%s795 + $0x18] sm:$0xff]
    %s800 = scalar_lea.vmem %s3, 1
    %v801 = vld [vmem:[%s800] sm:$0x1]
    %v803 = vperm.slane %v801, 0
    %v806 = vsel %vm48, %v793, 0
    %v809 = vsel %vm48, %v794, 0
    %811 = vmatpush.msra.mxu0 0.0
    %812 = vmatpush.msra.mxu0 0.0
    %813 = vmatpush.msra.mxu0 0.0
    %814 = vmatpush.msra.mxu0 0.0
    %815 = vmatpush.msra.mxu0 0.0
    %816 = vmatpush.msra.mxu0 0.0
    %817 = vmatpush.msra.mxu0 0.0
    %818 = vmatpush.msra.mxu0 0.0
    %819 = vmatpush.msra.mxu0 0.0
    %820 = vmatpush.msra.mxu0 0.0
    %821 = vmatpush.msra.mxu0 0.0
    %822 = vmatpush.msra.mxu0 0.0
    %823 = vmatpush.msra.mxu0 %v799
    %824 = vmatpush.msra.mxu0 %v798
    %825 = vmatpush.msra.mxu0 %v797
    %826 = vmatpush.msra.mxu0 %v796
    %827 = vmatmul.f32.gmra.mxu0 %v806
    %v828 = vpop.f32.mrf.mxu0
    %v829 = vadd.f32 %v803, %v828
    %830 = vmatmul.f32.gmra.mxu0 %v809
    %v831 = vpop.f32.mrf.mxu0
    %v832 = vadd.f32 %v803, %v831
    %833 = vdwg.mxu0
    %835 = vrot.lane.b32.xlu0 %v829, 120
    %v836 = vpop.permute.xlu0 %835
    %837 = vrot.lane.b32.xlu0 %v829, 112
    %v838 = vpop.permute.xlu0 %837
    %839 = vrot.lane.b32.xlu0 %v829, 104
    %v840 = vpop.permute.xlu0 %839
    %842 = vrot.lane.b32.xlu0 %v832, 120
    %v843 = vpop.permute.xlu0 %842
    %844 = vrot.lane.b32.xlu0 %v832, 112
    %v845 = vpop.permute.xlu0 %844
    %846 = vrot.lane.b32.xlu0 %v832, 104
    %v847 = vpop.permute.xlu0 %846
    %848 = vrot.lane.b32.xlu0 %v829, 96
    %v849 = vpop.permute.xlu0 %848
    %850 = vrot.lane.b32.xlu0 %v836, 96
    %v851 = vpop.permute.xlu0 %850
    %852 = vrot.lane.b32.xlu0 %v838, 96
    %v853 = vpop.permute.xlu0 %852
    %854 = vrot.lane.b32.xlu0 %v840, 96
    %v855 = vpop.permute.xlu0 %854
    %856 = vrot.lane.b32.xlu0 %v832, 96
    %v857 = vpop.permute.xlu0 %856
    %858 = vrot.lane.b32.xlu0 %v843, 96
    %v859 = vpop.permute.xlu0 %858
    %860 = vrot.lane.b32.xlu0 %v845, 96
    %v861 = vpop.permute.xlu0 %860
    %862 = vrot.lane.b32.xlu0 %v847, 96
    %v863 = vpop.permute.xlu0 %862
    %v864 = vsel %vm213, %v829, 0
    %v866 = vsel %vm213, %v836, 0
    %v868 = vsel %vm213, %v838, 0
    %v870 = vsel %vm213, %v840, 0
    %v872 = vsel %vm213, %v832, 0
    %v874 = vsel %vm213, %v843, 0
    %v876 = vsel %vm213, %v845, 0
    %v878 = vsel %vm213, %v847, 0
    %v880 = vsel %vm213, %v849, 0
    %v882 = vsel %vm213, %v851, 0
    %v884 = vsel %vm213, %v853, 0
    %v886 = vsel %vm213, %v855, 0
    %v888 = vsel %vm213, %v857, 0
    %v890 = vsel %vm213, %v859, 0
    %v892 = vsel %vm213, %v861, 0
    %v894 = vsel %vm213, %v863, 0
    %896 = vmatpush.xpose.msra.mxu0 0.0
    %897 = vmatpush.xpose.msra.mxu0 0.0
    %898 = vmatpush.xpose.msra.mxu0 0.0
    %899 = vmatpush.xpose.msra.mxu0 0.0
    %900 = vmatpush.xpose.msra.mxu0 0.0
    %901 = vmatpush.xpose.msra.mxu0 0.0
    %902 = vmatpush.xpose.msra.mxu0 0.0
    %903 = vmatpush.xpose.msra.mxu0 0.0
    %904 = vmatpush.xpose.msra.mxu0 %v894
    %905 = vmatpush.xpose.msra.mxu0 %v892
    %906 = vmatpush.xpose.msra.mxu0 %v890
    %907 = vmatpush.xpose.msra.mxu0 %v888
    %908 = vmatpush.xpose.msra.mxu0 %v886
    %909 = vmatpush.xpose.msra.mxu0 %v884
    %910 = vmatpush.xpose.msra.mxu0 %v882
    %911 = vmatpush.xpose.msra.mxu0 %v880
    %912 = vmatmul.f32.gmra.mxu0 %v864
    %v913 = vpop.f32.mrf.mxu0
    %v914 = vadd.f32 %v138, %v913
    %915 = vmatmul.f32.gmra.mxu0 %v866
    %v916 = vpop.f32.mrf.mxu0
    %v917 = vadd.f32 %v139, %v916
    %918 = vmatmul.f32.gmra.mxu0 %v868
    %v919 = vpop.f32.mrf.mxu0
    %v920 = vadd.f32 %v140, %v919
    %921 = vmatmul.f32.gmra.mxu0 %v870
    %v922 = vpop.f32.mrf.mxu0
    %v923 = vadd.f32 %v141, %v922
    %924 = vmatmul.f32.gmra.mxu0 %v872
    %v925 = vpop.f32.mrf.mxu0
    %v926 = vadd.f32 %v142, %v925
    %927 = vmatmul.f32.gmra.mxu0 %v874
    %v928 = vpop.f32.mrf.mxu0
    %v929 = vadd.f32 %v143, %v928
    %930 = vmatmul.f32.gmra.mxu0 %v876
    %v931 = vpop.f32.mrf.mxu0
    %v932 = vadd.f32 %v144, %v931
    %933 = vmatmul.f32.gmra.mxu0 %v878
    %v934 = vpop.f32.mrf.mxu0
    %v935 = vadd.f32 %v145, %v934
    %936 = vdwg.mxu0
    %v937 = vsel %vm287, %v914, -inf
    %938 = vmax.xlane.f32.xlu0 %v937
    %v939 = vpop.xlane.xlu0 %938
    %v940 = vsel %vm287, %v917, -inf
    %941 = vmax.xlane.f32.xlu0 %v940
    %v942 = vpop.xlane.xlu0 %941
    %v943 = vsel %vm287, %v920, -inf
    %944 = vmax.xlane.f32.xlu0 %v943
    %v945 = vpop.xlane.xlu0 %944
    %v946 = vsel %vm287, %v923, -inf
    %947 = vmax.xlane.f32.xlu0 %v946
    %v948 = vpop.xlane.xlu0 %947
    %v949 = vsel %vm287, %v926, -inf
    %950 = vmax.xlane.f32.xlu0 %v949
    %v951 = vpop.xlane.xlu0 %950
    %v952 = vsel %vm287, %v929, -inf
    %953 = vmax.xlane.f32.xlu0 %v952
    %v954 = vpop.xlane.xlu0 %953
    %v955 = vsel %vm287, %v932, -inf
    %956 = vmax.xlane.f32.xlu0 %v955
    %v957 = vpop.xlane.xlu0 %956
    %v958 = vsel %vm287, %v935, -inf
    %959 = vmax.xlane.f32.xlu0 %v958
    %v960 = vpop.xlane.xlu0 %959
    %v961 = vsub.f32 %v914, %v939
    %v962 = vsub.f32 %v917, %v942
    %v963 = vsub.f32 %v920, %v945
    %v964 = vsub.f32 %v923, %v948
    %v965 = vsub.f32 %v926, %v951
    %v966 = vsub.f32 %v929, %v954
    %v967 = vsub.f32 %v932, %v957
    %v968 = vsub.f32 %v935, %v960
    %v969 = vmul.f32 %v961, 1.442695
    %v970 = vpow.pop %v969
    %v971 = vmul.f32 %v962, 1.442695
    %v972 = vpow.pop %v971
    %v973 = vmul.f32 %v963, 1.442695
    %v974 = vpow.pop %v973
    %v975 = vmul.f32 %v964, 1.442695
    %v976 = vpow.pop %v975
    %v977 = vmul.f32 %v965, 1.442695
    %v978 = vpow.pop %v977
    %v979 = vmul.f32 %v966, 1.442695
    %v980 = vpow.pop %v979
    %v981 = vmul.f32 %v967, 1.442695
    %v982 = vpow.pop %v981
    %v983 = vmul.f32 %v968, 1.442695
    %v984 = vpow.pop %v983
    %v985 = vsel %vm287, %v970, 0.0
    %986 = vadd.xlane.f32.xlu0 %v985
    %v987 = vpop.xlane.xlu0 %986
    %v988 = vsel %vm287, %v972, 0.0
    %989 = vadd.xlane.f32.xlu0 %v988
    %v990 = vpop.xlane.xlu0 %989
    %v991 = vsel %vm287, %v974, 0.0
    %992 = vadd.xlane.f32.xlu0 %v991
    %v993 = vpop.xlane.xlu0 %992
    %v994 = vsel %vm287, %v976, 0.0
    %995 = vadd.xlane.f32.xlu0 %v994
    %v996 = vpop.xlane.xlu0 %995
    %v997 = vsel %vm287, %v978, 0.0
    %998 = vadd.xlane.f32.xlu0 %v997
    %v999 = vpop.xlane.xlu0 %998
    %v1000 = vsel %vm287, %v980, 0.0
    %1001 = vadd.xlane.f32.xlu0 %v1000
    %v1002 = vpop.xlane.xlu0 %1001
    %v1003 = vsel %vm287, %v982, 0.0
    %1004 = vadd.xlane.f32.xlu0 %v1003
    %v1005 = vpop.xlane.xlu0 %1004
    %v1006 = vsel %vm287, %v984, 0.0
    %1007 = vadd.xlane.f32.xlu0 %v1006
    %v1008 = vpop.xlane.xlu0 %1007
    %v1009 = vrcp.pop %v987
    %v1010 = vrcp.pop %v990
    %v1011 = vrcp.pop %v993
    %v1012 = vrcp.pop %v996
    %v1013 = vrcp.pop %v999
    %v1014 = vrcp.pop %v1002
    %v1015 = vrcp.pop %v1005
    %v1016 = vrcp.pop %v1008
    %v1017 = vmul.f32 %v987, %v1009
    %v1018 = vmul.f32 %v990, %v1010
    %v1019 = vmul.f32 %v993, %v1011
    %v1020 = vmul.f32 %v996, %v1012
    %v1021 = vmul.f32 %v999, %v1013
    %v1022 = vmul.f32 %v1002, %v1014
    %v1023 = vmul.f32 %v1005, %v1015
    %v1024 = vmul.f32 %v1008, %v1016
    %v1025 = vsub.f32 2.0, %v1017
    %v1026 = vsub.f32 2.0, %v1018
    %v1027 = vsub.f32 2.0, %v1019
    %v1028 = vsub.f32 2.0, %v1020
    %v1029 = vsub.f32 2.0, %v1021
    %v1030 = vsub.f32 2.0, %v1022
    %v1031 = vsub.f32 2.0, %v1023
    %v1032 = vsub.f32 2.0, %v1024
    %v1033 = vmul.f32 %v1009, %v1025
    %v1034 = vmul.f32 %v1010, %v1026
    %v1035 = vmul.f32 %v1011, %v1027
    %v1036 = vmul.f32 %v1012, %v1028
    %v1037 = vmul.f32 %v1013, %v1029
    %v1038 = vmul.f32 %v1014, %v1030
    %v1039 = vmul.f32 %v1015, %v1031
    %v1040 = vmul.f32 %v1016, %v1032
    %v1041 = vmul.f32 %v970, %v1033
    %v1042 = vmul.f32 %v972, %v1034
    %v1043 = vmul.f32 %v974, %v1035
    %v1044 = vmul.f32 %v976, %v1036
    %v1045 = vmul.f32 %v978, %v1037
    %v1046 = vmul.f32 %v980, %v1038
    %v1047 = vmul.f32 %v982, %v1039
    %v1048 = vmul.f32 %v984, %v1040
    %1049 = vrot.lane.b32.xlu0 %v829, 64
    %v1050 = vpop.permute.xlu0 %1049
    %1051 = vrot.lane.b32.xlu0 %v836, 64
    %v1052 = vpop.permute.xlu0 %1051
    %1053 = vrot.lane.b32.xlu0 %v838, 64
    %v1054 = vpop.permute.xlu0 %1053
    %1055 = vrot.lane.b32.xlu0 %v840, 64
    %v1056 = vpop.permute.xlu0 %1055
    %1057 = vrot.lane.b32.xlu0 %v832, 64
    %v1058 = vpop.permute.xlu0 %1057
    %1059 = vrot.lane.b32.xlu0 %v843, 64
    %v1060 = vpop.permute.xlu0 %1059
    %1061 = vrot.lane.b32.xlu0 %v845, 64
    %v1062 = vpop.permute.xlu0 %1061
    %1063 = vrot.lane.b32.xlu0 %v847, 64
    %v1064 = vpop.permute.xlu0 %1063
    %v1074 = vsel %vm287, %v1041, 0
    %v1077 = vsel %vm287, %v1042, 0
    %v1080 = vsel %vm287, %v1043, 0
    %v1083 = vsel %vm287, %v1044, 0
    %v1086 = vsel %vm287, %v1045, 0
    %v1089 = vsel %vm287, %v1046, 0
    %v1092 = vsel %vm287, %v1047, 0
    %v1095 = vsel %vm287, %v1048, 0
    %1097 = vmatpush.msra.mxu0 0.0
    %1098 = vmatpush.msra.mxu0 0.0
    %1099 = vmatpush.msra.mxu0 0.0
    %1100 = vmatpush.msra.mxu0 0.0
    %1101 = vmatpush.msra.mxu0 0.0
    %1102 = vmatpush.msra.mxu0 0.0
    %1103 = vmatpush.msra.mxu0 0.0
    %1104 = vmatpush.msra.mxu0 0.0
    %1105 = vmatpush.msra.mxu0 %v1064
    %1106 = vmatpush.msra.mxu0 %v1062
    %1107 = vmatpush.msra.mxu0 %v1060
    %1108 = vmatpush.msra.mxu0 %v1058
    %1109 = vmatpush.msra.mxu0 %v1056
    %1110 = vmatpush.msra.mxu0 %v1054
    %1111 = vmatpush.msra.mxu0 %v1052
    %1112 = vmatpush.msra.mxu0 %v1050
    %1113 = vmatmul.f32.gmra.mxu0 %v1074
    %v1114 = vpop.f32.mrf.mxu0
    %v1115 = vadd.f32 0.0, %v1114
    %1116 = vmatmul.f32.gmra.mxu0 %v1077
    %v1117 = vpop.f32.mrf.mxu0
    %v1118 = vadd.f32 0.0, %v1117
    %1119 = vmatmul.f32.gmra.mxu0 %v1080
    %v1120 = vpop.f32.mrf.mxu0
    %v1121 = vadd.f32 0.0, %v1120
    %1122 = vmatmul.f32.gmra.mxu0 %v1083
    %v1123 = vpop.f32.mrf.mxu0
    %v1124 = vadd.f32 0.0, %v1123
    %1125 = vmatmul.f32.gmra.mxu0 %v1086
    %v1126 = vpop.f32.mrf.mxu0
    %v1127 = vadd.f32 0.0, %v1126
    %1128 = vmatmul.f32.gmra.mxu0 %v1089
    %v1129 = vpop.f32.mrf.mxu0
    %v1130 = vadd.f32 0.0, %v1129
    %1131 = vmatmul.f32.gmra.mxu0 %v1092
    %v1132 = vpop.f32.mrf.mxu0
    %v1133 = vadd.f32 0.0, %v1132
    %1134 = vmatmul.f32.gmra.mxu0 %v1095
    %v1135 = vpop.f32.mrf.mxu0
    %v1136 = vadd.f32 0.0, %v1135
    %1137 = vdwg.mxu0
    %1139 = vrot.lane.b32.xlu0 %v1118, 8
    %v1140 = vpop.permute.xlu0 %1139
    %1143 = vrot.lane.b32.xlu0 %v1121, 16
    %v1144 = vpop.permute.xlu0 %1143
    %1147 = vrot.lane.b32.xlu0 %v1124, 24
    %v1148 = vpop.permute.xlu0 %1147
    %v1150 = vsel %vm213, %v1115, %v1140
    %v1151 = vsel %vm502, %v1150, %v1144
    %v1152 = vsel %vm504, %v1151, %v1148
    %1154 = vrot.lane.b32.xlu0 %v1130, 8
    %v1155 = vpop.permute.xlu0 %1154
    %1158 = vrot.lane.b32.xlu0 %v1133, 16
    %v1159 = vpop.permute.xlu0 %1158
    %1162 = vrot.lane.b32.xlu0 %v1136, 24
    %v1163 = vpop.permute.xlu0 %1162
    %v1165 = vsel %vm213, %v1127, %v1155
    %v1166 = vsel %vm502, %v1165, %v1159
    %v1167 = vsel %vm504, %v1166, %v1163
    %s1168 = scalar_lea.vmem %s4, 32
    %v1169 = vld [vmem:[%s1168] sm:$0xff]
    %v1170 = vld [vmem:[%s1168 + $0x8] sm:$0xff]
    %v1171 = vld [vmem:[%s1168 + $0x10] sm:$0xff]
    %v1172 = vld [vmem:[%s1168 + $0x18] sm:$0xff]
    %s1173 = scalar_lea.vmem %s5, 16
    %v1174 = vld [vmem:[%s1173] sm:$0xff]
    %v1175 = vld [vmem:[%s1173 + $0x8] sm:$0xff]
    %1176 = vrot.lane.b32.xlu0 %v829, 32
    %v1177 = vpop.permute.xlu0 %1176
    %1178 = vrot.lane.b32.xlu0 %v832, 32
    %v1179 = vpop.permute.xlu0 %1178
    %v1180 = vsel %vm502, %v1177, 0
    %v1182 = vsel %vm502, %v1179, 0
    %1184 = vmatpush.msra.mxu0 0.0
    %1185 = vmatpush.msra.mxu0 0.0
    %1186 = vmatpush.msra.mxu0 0.0
    %1187 = vmatpush.msra.mxu0 0.0
    %1188 = vmatpush.msra.mxu0 0.0
    %1189 = vmatpush.msra.mxu0 0.0
    %1190 = vmatpush.msra.mxu0 0.0
    %1191 = vmatpush.msra.mxu0 0.0
    %1192 = vmatpush.msra.mxu0 0.0
    %1193 = vmatpush.msra.mxu0 0.0
    %1194 = vmatpush.msra.mxu0 0.0
    %1195 = vmatpush.msra.mxu0 0.0
    %1196 = vmatpush.msra.mxu0 0.0
    %1197 = vmatpush.msra.mxu0 0.0
    %1198 = vmatpush.msra.mxu0 %v1175
    %1199 = vmatpush.msra.mxu0 %v1174
    %1200 = vmatmul.f32.gmra.mxu0 %v1180
    %v1201 = vpop.f32.mrf.mxu0
    %v1202 = vadd.f32 0.0, %v1201
    %1203 = vmatmul.f32.gmra.mxu0 %v1182
    %v1204 = vpop.f32.mrf.mxu0
    %v1205 = vadd.f32 0.0, %v1204
    %1206 = vdwg.mxu0
    %v1207 = vsel %vm502, %v1202, -inf
    %1208 = vmax.xlane.f32.xlu0 %v1207
    %v1209 = vpop.xlane.xlu0 %1208
    %v1210 = vsel %vm502, %v1205, -inf
    %1211 = vmax.xlane.f32.xlu0 %v1210
    %v1212 = vpop.xlane.xlu0 %1211
    %v1213 = vsub.f32 %v1202, %v1209
    %v1214 = vsub.f32 %v1205, %v1212
    %v1215 = vmul.f32 %v1213, 1.442695
    %v1216 = vpow.pop %v1215
    %v1217 = vmul.f32 %v1214, 1.442695
    %v1218 = vpow.pop %v1217
    %v1219 = vsel %vm502, %v1216, 0.0
    %1220 = vadd.xlane.f32.xlu0 %v1219
    %v1221 = vpop.xlane.xlu0 %1220
    %v1222 = vsel %vm502, %v1218, 0.0
    %1223 = vadd.xlane.f32.xlu0 %v1222
    %v1224 = vpop.xlane.xlu0 %1223
    %v1225 = vrcp.pop %v1221
    %v1226 = vrcp.pop %v1224
    %v1227 = vmul.f32 %v1221, %v1225
    %v1228 = vmul.f32 %v1224, %v1226
    %v1229 = vsub.f32 2.0, %v1227
    %v1230 = vsub.f32 2.0, %v1228
    %v1231 = vmul.f32 %v1225, %v1229
    %v1232 = vmul.f32 %v1226, %v1230
    %v1233 = vmul.f32 %v1216, %v1231
    %v1234 = vmul.f32 %v1218, %v1232
    %s1235 = scalar_lea.vmem %s6, 16
    %v1236 = vld [vmem:[%s1235] sm:$0xff]
    %v1237 = vld [vmem:[%s1235 + $0x8] sm:$0xff]
    %v1239 = vsel %vm502, %v1233, 0
    %v1242 = vsel %vm502, %v1234, 0
    %1244 = vmatpush.msra.mxu0 0.0
    %1245 = vmatpush.msra.mxu0 0.0
    %1246 = vmatpush.msra.mxu0 0.0
    %1247 = vmatpush.msra.mxu0 0.0
    %1248 = vmatpush.msra.mxu0 0.0
    %1249 = vmatpush.msra.mxu0 0.0
    %1250 = vmatpush.msra.mxu0 0.0
    %1251 = vmatpush.msra.mxu0 0.0
    %1252 = vmatpush.msra.mxu0 0.0
    %1253 = vmatpush.msra.mxu0 0.0
    %1254 = vmatpush.msra.mxu0 0.0
    %1255 = vmatpush.msra.mxu0 0.0
    %1256 = vmatpush.msra.mxu0 0.0
    %1257 = vmatpush.msra.mxu0 0.0
    %1258 = vmatpush.msra.mxu0 %v1237
    %1259 = vmatpush.msra.mxu0 %v1236
    %1260 = vmatmul.f32.gmra.mxu0 %v1239
    %v1261 = vpop.f32.mrf.mxu0
    %v1262 = vadd.f32 0.0, %v1261
    %1263 = vmatmul.f32.gmra.mxu0 %v1242
    %v1264 = vpop.f32.mrf.mxu0
    %v1265 = vadd.f32 0.0, %v1264
    %1266 = vdwg.mxu0
    %s1267 = scalar_lea.vmem %s10, 4
    %v1268 = vld [vmem:[%s1267] sm:$0xf]
    %v1270 = vsel %vm48, %v1152, 0
    %v1273 = vsel %vm48, %v1167, 0
    %1275 = vmatpush.msra.mxu0 0.0
    %1276 = vmatpush.msra.mxu0 0.0
    %1277 = vmatpush.msra.mxu0 0.0
    %1278 = vmatpush.msra.mxu0 0.0
    %1279 = vmatpush.msra.mxu0 0.0
    %1280 = vmatpush.msra.mxu0 0.0
    %1281 = vmatpush.msra.mxu0 0.0
    %1282 = vmatpush.msra.mxu0 0.0
    %1283 = vmatpush.msra.mxu0 0.0
    %1284 = vmatpush.msra.mxu0 0.0
    %1285 = vmatpush.msra.mxu0 0.0
    %1286 = vmatpush.msra.mxu0 0.0
    %1287 = vmatpush.msra.mxu0 %v1172
    %1288 = vmatpush.msra.mxu0 %v1171
    %1289 = vmatpush.msra.mxu0 %v1170
    %1290 = vmatpush.msra.mxu0 %v1169
    %1291 = vmatmul.f32.gmra.mxu0 %v1270
    %v1292 = vpop.f32.mrf.mxu0
    %v1293 = vadd.f32 %v1262, %v1292
    %1294 = vmatmul.f32.gmra.mxu0 %v1273
    %v1295 = vpop.f32.mrf.mxu0
    %v1296 = vadd.f32 %v1265, %v1295
    %1297 = vdwg.mxu0
    %v1298 = vperm.slane %v1268, 0
    %v1299 = vadd.f32 %v1293, %v1298
    %v1300 = vadd.f32 %v1296, %v1298
    %s1301 = scalar_lea.vmem %s7, 32
    %v1302 = vld [vmem:[%s1301] sm:$0xff]
    %v1303 = vld [vmem:[%s1301 + $0x8] sm:$0xff]
    %v1304 = vld [vmem:[%s1301 + $0x10] sm:$0xff]
    %v1305 = vld [vmem:[%s1301 + $0x18] sm:$0xff]
    %s1306 = scalar_lea.vmem %s8, 1
    %v1307 = vld [vmem:[%s1306] sm:$0x1]
    %v1309 = vperm.slane %v1307, 0
    %v1312 = vsel %vm48, %v1299, 0
    %v1315 = vsel %vm48, %v1300, 0
    %1317 = vmatpush.msra.mxu0 0.0
    %1318 = vmatpush.msra.mxu0 0.0
    %1319 = vmatpush.msra.mxu0 0.0
    %1320 = vmatpush.msra.mxu0 0.0
    %1321 = vmatpush.msra.mxu0 0.0
    %1322 = vmatpush.msra.mxu0 0.0
    %1323 = vmatpush.msra.mxu0 0.0
    %1324 = vmatpush.msra.mxu0 0.0
    %1325 = vmatpush.msra.mxu0 0.0
    %1326 = vmatpush.msra.mxu0 0.0
    %1327 = vmatpush.msra.mxu0 0.0
    %1328 = vmatpush.msra.mxu0 0.0
    %1329 = vmatpush.msra.mxu0 %v1305
    %1330 = vmatpush.msra.mxu0 %v1304
    %1331 = vmatpush.msra.mxu0 %v1303
    %1332 = vmatpush.msra.mxu0 %v1302
    %1333 = vmatmul.f32.gmra.mxu0 %v1312
    %v1334 = vpop.f32.mrf.mxu0
    %v1335 = vadd.f32 %v1309, %v1334
    %1336 = vmatmul.f32.gmra.mxu0 %v1315
    %v1337 = vpop.f32.mrf.mxu0
    %v1338 = vadd.f32 %v1309, %v1337
    %1339 = vdwg.mxu0
    %v1340 = vmul.f32 %v1335, %v1335
    %v1341 = vmul.f32 %v1338, %v1338
    %v1342 = vmul.f32 %v1335, %v1340
    %v1343 = vmul.f32 %v1338, %v1341
    %v1344 = vmul.f32 %v1342, 0.044715
    %v1345 = vmul.f32 %v1343, 0.044715
    %v1346 = vadd.f32 %v1335, %v1344
    %v1347 = vadd.f32 %v1338, %v1345
    %v1348 = vmul.f32 %v1346, 0.7978846
    %v1349 = vmul.f32 %v1347, 0.7978846
    %v1350 = vtanh.pop %v1348
    %v1351 = vtanh.pop %v1349
    %v1352 = vadd.f32 %v1350, 1.0
    %v1353 = vadd.f32 %v1351, 1.0
    %v1354 = vmul.f32 %v1352, 0.5
    %v1355 = vmul.f32 %v1353, 0.5
    %v1356 = vmul.f32 %v1335, %v1354
    %v1357 = vmul.f32 %v1338, %v1355
    %s1358 = scalar_lea.vmem %s9, 64
    %v1359 = vld [vmem:[%s1358] sm:$0xff]
    %v1360 = vld [vmem:[%s1358 + $0x8] sm:$0xff]
    %v1361 = vld [vmem:[%s1358 + $0x10] sm:$0xff]
    %v1362 = vld [vmem:[%s1358 + $0x18] sm:$0xff]
    %v1363 = vld [vmem:[%s1358 + $0x20] sm:$0xff]
    %v1364 = vld [vmem:[%s1358 + $0x28] sm:$0xff]
    %v1365 = vld [vmem:[%s1358 + $0x30] sm:$0xff]
    %v1366 = vld [vmem:[%s1358 + $0x38] sm:$0xff]
    %v1367 = vperm.slane %v1268, 1
    %v1369 = vsel %vm287, %v1356, 0
    %v1372 = vsel %vm287, %v1357, 0
    %1374 = vmatpush.msra.mxu0 0.0
    %1375 = vmatpush.msra.mxu0 0.0
    %1376 = vmatpush.msra.mxu0 0.0
    %1377 = vmatpush.msra.mxu0 0.0
    %1378 = vmatpush.msra.mxu0 0.0
    %1379 = vmatpush.msra.mxu0 0.0
    %1380 = vmatpush.msra.mxu0 0.0
    %1381 = vmatpush.msra.mxu0 0.0
    %1382 = vmatpush.msra.mxu0 %v1366
    %1383 = vmatpush.msra.mxu0 %v1365
    %1384 = vmatpush.msra.mxu0 %v1364
    %1385 = vmatpush.msra.mxu0 %v1363
    %1386 = vmatpush.msra.mxu0 %v1362
    %1387 = vmatpush.msra.mxu0 %v1361
    %1388 = vmatpush.msra.mxu0 %v1360
    %1389 = vmatpush.msra.mxu0 %v1359
    %1390 = vmatmul.f32.gmra.mxu0 %v1369
    %v1391 = vpop.f32.mrf.mxu0
    %v1392 = vadd.f32 %v1367, %v1391
    %1393 = vmatmul.f32.gmra.mxu0 %v1372
    %v1394 = vpop.f32.mrf.mxu0
    %v1395 = vadd.f32 %v1367, %v1394
    %1396 = vdwg.mxu0
    %v1397 = vadd.f32 %v1392, %v1299
    %v1398 = vadd.f32 %v1395, %v1300
    %v1399 = vsel %vm48, %v1397, 0.0
    %1400 = vadd.xlane.f32.xlu0 %v1399
    %v1401 = vpop.xlane.xlu0 %1400
    %v1402 = vsel %vm48, %v1398, 0.0
    %1403 = vadd.xlane.f32.xlu0 %v1402
    %v1404 = vpop.xlane.xlu0 %1403
    %v1405 = vmul.f32 %v1401, %v61
    %v1406 = vmul.f32 %v1404, %v61
    %v1407 = vsub.f32 %v1397, %v1405
    %v1408 = vsub.f32 %v1398, %v1406
    %v1409 = vmul.f32 %v1407, %v1407
    %v1410 = vmul.f32 %v1408, %v1408
    %v1411 = vsel %vm48, %v1409, 0.0
    %1412 = vadd.xlane.f32.xlu0 %v1411
    %v1413 = vpop.xlane.xlu0 %1412
    %v1414 = vsel %vm48, %v1410, 0.0
    %1415 = vadd.xlane.f32.xlu0 %v1414
    %v1416 = vpop.xlane.xlu0 %1415
    %v1417 = vmul.f32 %v1413, %v61
    %v1418 = vmul.f32 %v1416, %v61
    %v1419 = vadd.f32 %v1417, 1e-12
    %v1420 = vadd.f32 %v1418, 1e-12
    %v1421 = vrsqrt.pop %v1419
    %v1422 = vmul.f32 %v1421, %v1419
    %v1423 = vmul.f32 %v1422, %v1421
    %v1424 = vmul.f32 0.5, %v1423
    %v1425 = vsub.f32 1.5, %v1424
    %v1426 = vmul.f32 %v1421, %v1425
    %vm1427 = vweird.f32 %v1419
    %vm1428 = vweird.f32 %v1421
    %vm1429 = vmor %vm1427, %vm1428
    %v1430 = vsel %vm1429, %v1421, %v1426
    %v1431 = vrsqrt.pop %v1420
    %v1432 = vmul.f32 %v1431, %v1420
    %v1433 = vmul.f32 %v1432, %v1431
    %v1434 = vmul.f32 0.5, %v1433
    %v1435 = vsub.f32 1.5, %v1434
    %v1436 = vmul.f32 %v1431, %v1435
    %vm1437 = vweird.f32 %v1420
    %vm1438 = vweird.f32 %v1431
    %vm1439 = vmor %vm1437, %vm1438
    %v1440 = vsel %vm1439, %v1431, %v1436
    %v1441 = vmul.f32 %v1407, %v1430
    %v1442 = vmul.f32 %v1408, %v1440
    %v1443 = vperm.slane %v1268, 2
    %v1444 = vmul.f32 %v1441, %v1443
    %v1445 = vmul.f32 %v1442, %v1443
    %v1446 = vperm.slane %v1268, 3
    %v1447 = vadd.f32 %v1444, %v1446
    %v1448 = vadd.f32 %v1445, %v1446
    %s1449 = scalar_lea.vmem %s2, 64
    %v1450 = vld [vmem:[%s1449] sm:$0xff]
    %v1451 = vld [vmem:[%s1449 + $0x8] sm:$0xff]
    %v1452 = vld [vmem:[%s1449 + $0x10] sm:$0xff]
    %v1453 = vld [vmem:[%s1449 + $0x18] sm:$0xff]
    %s1454 = scalar_lea.vmem %s3, 2
    %v1455 = vld [vmem:[%s1454] sm:$0x1]
    %v1457 = vperm.slane %v1455, 0
    %v1460 = vsel %vm48, %v1447, 0
    %v1463 = vsel %vm48, %v1448, 0
    %1465 = vmatpush.msra.mxu0 0.0
    %1466 = vmatpush.msra.mxu0 0.0
    %1467 = vmatpush.msra.mxu0 0.0
    %1468 = vmatpush.msra.mxu0 0.0
    %1469 = vmatpush.msra.mxu0 0.0
    %1470 = vmatpush.msra.mxu0 0.0
    %1471 = vmatpush.msra.mxu0 0.0
    %1472 = vmatpush.msra.mxu0 0.0
    %1473 = vmatpush.msra.mxu0 0.0
    %1474 = vmatpush.msra.mxu0 0.0
    %1475 = vmatpush.msra.mxu0 0.0
    %1476 = vmatpush.msra.mxu0 0.0
    %1477 = vmatpush.msra.mxu0 %v1453
    %1478 = vmatpush.msra.mxu0 %v1452
    %1479 = vmatpush.msra.mxu0 %v1451
    %1480 = vmatpush.msra.mxu0 %v1450
    %1481 = vmatmul.f32.gmra.mxu0 %v1460
    %v1482 = vpop.f32.mrf.mxu0
    %v1483 = vadd.f32 %v1457, %v1482
    %1484 = vmatmul.f32.gmra.mxu0 %v1463
    %v1485 = vpop.f32.mrf.mxu0
    %v1486 = vadd.f32 %v1457, %v1485
    %1487 = vdwg.mxu0
    %1489 = vrot.lane.b32.xlu0 %v1483, 120
    %v1490 = vpop.permute.xlu0 %1489
    %1491 = vrot.lane.b32.xlu0 %v1483, 112
    %v1492 = vpop.permute.xlu0 %1491
    %1493 = vrot.lane.b32.xlu0 %v1483, 104
    %v1494 = vpop.permute.xlu0 %1493
    %1496 = vrot.lane.b32.xlu0 %v1486, 120
    %v1497 = vpop.permute.xlu0 %1496
    %1498 = vrot.lane.b32.xlu0 %v1486, 112
    %v1499 = vpop.permute.xlu0 %1498
    %1500 = vrot.lane.b32.xlu0 %v1486, 104
    %v1501 = vpop.permute.xlu0 %1500
    %1502 = vrot.lane.b32.xlu0 %v1483, 96
    %v1503 = vpop.permute.xlu0 %1502
    %1504 = vrot.lane.b32.xlu0 %v1490, 96
    %v1505 = vpop.permute.xlu0 %1504
    %1506 = vrot.lane.b32.xlu0 %v1492, 96
    %v1507 = vpop.permute.xlu0 %1506
    %1508 = vrot.lane.b32.xlu0 %v1494, 96
    %v1509 = vpop.permute.xlu0 %1508
    %1510 = vrot.lane.b32.xlu0 %v1486, 96
    %v1511 = vpop.permute.xlu0 %1510
    %1512 = vrot.lane.b32.xlu0 %v1497, 96
    %v1513 = vpop.permute.xlu0 %1512
    %1514 = vrot.lane.b32.xlu0 %v1499, 96
    %v1515 = vpop.permute.xlu0 %1514
    %1516 = vrot.lane.b32.xlu0 %v1501, 96
    %v1517 = vpop.permute.xlu0 %1516
    %v1518 = vsel %vm213, %v1483, 0
    %v1520 = vsel %vm213, %v1490, 0
    %v1522 = vsel %vm213, %v1492, 0
    %v1524 = vsel %vm213, %v1494, 0
    %v1526 = vsel %vm213, %v1486, 0
    %v1528 = vsel %vm213, %v1497, 0
    %v1530 = vsel %vm213, %v1499, 0
    %v1532 = vsel %vm213, %v1501, 0
    %v1534 = vsel %vm213, %v1503, 0
    %v1536 = vsel %vm213, %v1505, 0
    %v1538 = vsel %vm213, %v1507, 0
    %v1540 = vsel %vm213, %v1509, 0
    %v1542 = vsel %vm213, %v1511, 0
    %v1544 = vsel %vm213, %v1513, 0
    %v1546 = vsel %vm213, %v1515, 0
    %v1548 = vsel %vm213, %v1517, 0
    %1550 = vmatpush.xpose.msra.mxu0 0.0
    %1551 = vmatpush.xpose.msra.mxu0 0.0
    %1552 = vmatpush.xpose.msra.mxu0 0.0
    %1553 = vmatpush.xpose.msra.mxu0 0.0
    %1554 = vmatpush.xpose.msra.mxu0 0.0
    %1555 = vmatpush.xpose.msra.mxu0 0.0
    %1556 = vmatpush.xpose.msra.mxu0 0.0
    %1557 = vmatpush.xpose.msra.mxu0 0.0
    %1558 = vmatpush.xpose.msra.mxu0 %v1548
    %1559 = vmatpush.xpose.msra.mxu0 %v1546
    %1560 = vmatpush.xpose.msra.mxu0 %v1544
    %1561 = vmatpush.xpose.msra.mxu0 %v1542
    %1562 = vmatpush.xpose.msra.mxu0 %v1540
    %1563 = vmatpush.xpose.msra.mxu0 %v1538
    %1564 = vmatpush.xpose.msra.mxu0 %v1536
    %1565 = vmatpush.xpose.msra.mxu0 %v1534
    %1566 = vmatmul.f32.gmra.mxu0 %v1518
    %v1567 = vpop.f32.mrf.mxu0
    %v1568 = vadd.f32 %v138, %v1567
    %1569 = vmatmul.f32.gmra.mxu0 %v1520
    %v1570 = vpop.f32.mrf.mxu0
    %v1571 = vadd.f32 %v139, %v1570
    %1572 = vmatmul.f32.gmra.mxu0 %v1522
    %v1573 = vpop.f32.mrf.mxu0
    %v1574 = vadd.f32 %v140, %v1573
    %1575 = vmatmul.f32.gmra.mxu0 %v1524
    %v1576 = vpop.f32.mrf.mxu0
    %v1577 = vadd.f32 %v141, %v1576
    %1578 = vmatmul.f32.gmra.mxu0 %v1526
    %v1579 = vpop.f32.mrf.mxu0
    %v1580 = vadd.f32 %v142, %v1579
    %1581 = vmatmul.f32.gmra.mxu0 %v1528
    %v1582 = vpop.f32.mrf.mxu0
    %v1583 = vadd.f32 %v143, %v1582
    %1584 = vmatmul.f32.gmra.mxu0 %v1530
    %v1585 = vpop.f32.mrf.mxu0
    %v1586 = vadd.f32 %v144, %v1585
    %1587 = vmatmul.f32.gmra.mxu0 %v1532
    %v1588 = vpop.f32.mrf.mxu0
    %v1589 = vadd.f32 %v145, %v1588
    %1590 = vdwg.mxu0
    %v1591 = vsel %vm287, %v1568, -inf
    %1592 = vmax.xlane.f32.xlu0 %v1591
    %v1593 = vpop.xlane.xlu0 %1592
    %v1594 = vsel %vm287, %v1571, -inf
    %1595 = vmax.xlane.f32.xlu0 %v1594
    %v1596 = vpop.xlane.xlu0 %1595
    %v1597 = vsel %vm287, %v1574, -inf
    %1598 = vmax.xlane.f32.xlu0 %v1597
    %v1599 = vpop.xlane.xlu0 %1598
    %v1600 = vsel %vm287, %v1577, -inf
    %1601 = vmax.xlane.f32.xlu0 %v1600
    %v1602 = vpop.xlane.xlu0 %1601
    %v1603 = vsel %vm287, %v1580, -inf
    %1604 = vmax.xlane.f32.xlu0 %v1603
    %v1605 = vpop.xlane.xlu0 %1604
    %v1606 = vsel %vm287, %v1583, -inf
    %1607 = vmax.xlane.f32.xlu0 %v1606
    %v1608 = vpop.xlane.xlu0 %1607
    %v1609 = vsel %vm287, %v1586, -inf
    %1610 = vmax.xlane.f32.xlu0 %v1609
    %v1611 = vpop.xlane.xlu0 %1610
    %v1612 = vsel %vm287, %v1589, -inf
    %1613 = vmax.xlane.f32.xlu0 %v1612
    %v1614 = vpop.xlane.xlu0 %1613
    %v1615 = vsub.f32 %v1568, %v1593
    %v1616 = vsub.f32 %v1571, %v1596
    %v1617 = vsub.f32 %v1574, %v1599
    %v1618 = vsub.f32 %v1577, %v1602
    %v1619 = vsub.f32 %v1580, %v1605
    %v1620 = vsub.f32 %v1583, %v1608
    %v1621 = vsub.f32 %v1586, %v1611
    %v1622 = vsub.f32 %v1589, %v1614
    %v1623 = vmul.f32 %v1615, 1.442695
    %v1624 = vpow.pop %v1623
    %v1625 = vmul.f32 %v1616, 1.442695
    %v1626 = vpow.pop %v1625
    %v1627 = vmul.f32 %v1617, 1.442695
    %v1628 = vpow.pop %v1627
    %v1629 = vmul.f32 %v1618, 1.442695
    %v1630 = vpow.pop %v1629
    %v1631 = vmul.f32 %v1619, 1.442695
    %v1632 = vpow.pop %v1631
    %v1633 = vmul.f32 %v1620, 1.442695
    %v1634 = vpow.pop %v1633
    %v1635 = vmul.f32 %v1621, 1.442695
    %v1636 = vpow.pop %v1635
    %v1637 = vmul.f32 %v1622, 1.442695
    %v1638 = vpow.pop %v1637
    %v1639 = vsel %vm287, %v1624, 0.0
    %1640 = vadd.xlane.f32.xlu0 %v1639
    %v1641 = vpop.xlane.xlu0 %1640
    %v1642 = vsel %vm287, %v1626, 0.0
    %1643 = vadd.xlane.f32.xlu0 %v1642
    %v1644 = vpop.xlane.xlu0 %1643
    %v1645 = vsel %vm287, %v1628, 0.0
    %1646 = vadd.xlane.f32.xlu0 %v1645
    %v1647 = vpop.xlane.xlu0 %1646
    %v1648 = vsel %vm287, %v1630, 0.0
    %1649 = vadd.xlane.f32.xlu0 %v1648
    %v1650 = vpop.xlane.xlu0 %1649
    %v1651 = vsel %vm287, %v1632, 0.0
    %1652 = vadd.xlane.f32.xlu0 %v1651
    %v1653 = vpop.xlane.xlu0 %1652
    %v1654 = vsel %vm287, %v1634, 0.0
    %1655 = vadd.xlane.f32.xlu0 %v1654
    %v1656 = vpop.xlane.xlu0 %1655
    %v1657 = vsel %vm287, %v1636, 0.0
    %1658 = vadd.xlane.f32.xlu0 %v1657
    %v1659 = vpop.xlane.xlu0 %1658
    %v1660 = vsel %vm287, %v1638, 0.0
    %1661 = vadd.xlane.f32.xlu0 %v1660
    %v1662 = vpop.xlane.xlu0 %1661
    %v1663 = vrcp.pop %v1641
    %v1664 = vrcp.pop %v1644
    %v1665 = vrcp.pop %v1647
    %v1666 = vrcp.pop %v1650
    %v1667 = vrcp.pop %v1653
    %v1668 = vrcp.pop %v1656
    %v1669 = vrcp.pop %v1659
    %v1670 = vrcp.pop %v1662
    %v1671 = vmul.f32 %v1641, %v1663
    %v1672 = vmul.f32 %v1644, %v1664
    %v1673 = vmul.f32 %v1647, %v1665
    %v1674 = vmul.f32 %v1650, %v1666
    %v1675 = vmul.f32 %v1653, %v1667
    %v1676 = vmul.f32 %v1656, %v1668
    %v1677 = vmul.f32 %v1659, %v1669
    %v1678 = vmul.f32 %v1662, %v1670
    %v1679 = vsub.f32 2.0, %v1671
    %v1680 = vsub.f32 2.0, %v1672
    %v1681 = vsub.f32 2.0, %v1673
    %v1682 = vsub.f32 2.0, %v1674
    %v1683 = vsub.f32 2.0, %v1675
    %v1684 = vsub.f32 2.0, %v1676
    %v1685 = vsub.f32 2.0, %v1677
    %v1686 = vsub.f32 2.0, %v1678
    %v1687 = vmul.f32 %v1663, %v1679
    %v1688 = vmul.f32 %v1664, %v1680
    %v1689 = vmul.f32 %v1665, %v1681
    %v1690 = vmul.f32 %v1666, %v1682
    %v1691 = vmul.f32 %v1667, %v1683
    %v1692 = vmul.f32 %v1668, %v1684
    %v1693 = vmul.f32 %v1669, %v1685
    %v1694 = vmul.f32 %v1670, %v1686
    %v1695 = vmul.f32 %v1624, %v1687
    %v1696 = vmul.f32 %v1626, %v1688
    %v1697 = vmul.f32 %v1628, %v1689
    %v1698 = vmul.f32 %v1630, %v1690
    %v1699 = vmul.f32 %v1632, %v1691
    %v1700 = vmul.f32 %v1634, %v1692
    %v1701 = vmul.f32 %v1636, %v1693
    %v1702 = vmul.f32 %v1638, %v1694
    %1703 = vrot.lane.b32.xlu0 %v1483, 64
    %v1704 = vpop.permute.xlu0 %1703
    %1705 = vrot.lane.b32.xlu0 %v1490, 64
    %v1706 = vpop.permute.xlu0 %1705
    %1707 = vrot.lane.b32.xlu0 %v1492, 64
    %v1708 = vpop.permute.xlu0 %1707
    %1709 = vrot.lane.b32.xlu0 %v1494, 64
    %v1710 = vpop.permute.xlu0 %1709
    %1711 = vrot.lane.b32.xlu0 %v1486, 64
    %v1712 = vpop.permute.xlu0 %1711
    %1713 = vrot.lane.b32.xlu0 %v1497, 64
    %v1714 = vpop.permute.xlu0 %1713
    %1715 = vrot.lane.b32.xlu0 %v1499, 64
    %v1716 = vpop.permute.xlu0 %1715
    %1717 = vrot.lane.b32.xlu0 %v1501, 64
    %v1718 = vpop.permute.xlu0 %1717
    %v1728 = vsel %vm287, %v1695, 0
    %v1731 = vsel %vm287, %v1696, 0
    %v1734 = vsel %vm287, %v1697, 0
    %v1737 = vsel %vm287, %v1698, 0
    %v1740 = vsel %vm287, %v1699, 0
    %v1743 = vsel %vm287, %v1700, 0
    %v1746 = vsel %vm287, %v1701, 0
    %v1749 = vsel %vm287, %v1702, 0
    %1751 = vmatpush.msra.mxu0 0.0
    %1752 = vmatpush.msra.mxu0 0.0
    %1753 = vmatpush.msra.mxu0 0.0
    %1754 = vmatpush.msra.mxu0 0.0
    %1755 = vmatpush.msra.mxu0 0.0
    %1756 = vmatpush.msra.mxu0 0.0
    %1757 = vmatpush.msra.mxu0 0.0
    %1758 = vmatpush.msra.mxu0 0.0
    %1759 = vmatpush.msra.mxu0 %v1718
    %1760 = vmatpush.msra.mxu0 %v1716
    %1761 = vmatpush.msra.mxu0 %v1714
    %1762 = vmatpush.msra.mxu0 %v1712
    %1763 = vmatpush.msra.mxu0 %v1710
    %1764 = vmatpush.msra.mxu0 %v1708
    %1765 = vmatpush.msra.mxu0 %v1706
    %1766 = vmatpush.msra.mxu0 %v1704
    %1767 = vmatmul.f32.gmra.mxu0 %v1728
    %v1768 = vpop.f32.mrf.mxu0
    %v1769 = vadd.f32 0.0, %v1768
    %1770 = vmatmul.f32.gmra.mxu0 %v1731
    %v1771 = vpop.f32.mrf.mxu0
    %v1772 = vadd.f32 0.0, %v1771
    %1773 = vmatmul.f32.gmra.mxu0 %v1734
    %v1774 = vpop.f32.mrf.mxu0
    %v1775 = vadd.f32 0.0, %v1774
    %1776 = vmatmul.f32.gmra.mxu0 %v1737
    %v1777 = vpop.f32.mrf.mxu0
    %v1778 = vadd.f32 0.0, %v1777
    %1779 = vmatmul.f32.gmra.mxu0 %v1740
    %v1780 = vpop.f32.mrf.mxu0
    %v1781 = vadd.f32 0.0, %v1780
    %1782 = vmatmul.f32.gmra.mxu0 %v1743
    %v1783 = vpop.f32.mrf.mxu0
    %v1784 = vadd.f32 0.0, %v1783
    %1785 = vmatmul.f32.gmra.mxu0 %v1746
    %v1786 = vpop.f32.mrf.mxu0
    %v1787 = vadd.f32 0.0, %v1786
    %1788 = vmatmul.f32.gmra.mxu0 %v1749
    %v1789 = vpop.f32.mrf.mxu0
    %v1790 = vadd.f32 0.0, %v1789
    %1791 = vdwg.mxu0
    %1793 = vrot.lane.b32.xlu0 %v1772, 8
    %v1794 = vpop.permute.xlu0 %1793
    %1797 = vrot.lane.b32.xlu0 %v1775, 16
    %v1798 = vpop.permute.xlu0 %1797
    %1801 = vrot.lane.b32.xlu0 %v1778, 24
    %v1802 = vpop.permute.xlu0 %1801
    %v1804 = vsel %vm213, %v1769, %v1794
    %v1805 = vsel %vm502, %v1804, %v1798
    %v1806 = vsel %vm504, %v1805, %v1802
    %1808 = vrot.lane.b32.xlu0 %v1784, 8
    %v1809 = vpop.permute.xlu0 %1808
    %1812 = vrot.lane.b32.xlu0 %v1787, 16
    %v1813 = vpop.permute.xlu0 %1812
    %1816 = vrot.lane.b32.xlu0 %v1790, 24
    %v1817 = vpop.permute.xlu0 %1816
    %v1819 = vsel %vm213, %v1781, %v1809
    %v1820 = vsel %vm502, %v1819, %v1813
    %v1821 = vsel %vm504, %v1820, %v1817
    %s1822 = scalar_lea.vmem %s4, 64
    %v1823 = vld [vmem:[%s1822] sm:$0xff]
    %v1824 = vld [vmem:[%s1822 + $0x8] sm:$0xff]
    %v1825 = vld [vmem:[%s1822 + $0x10] sm:$0xff]
    %v1826 = vld [vmem:[%s1822 + $0x18] sm:$0xff]
    %s1827 = scalar_lea.vmem %s5, 32
    %v1828 = vld [vmem:[%s1827] sm:$0xff]
    %v1829 = vld [vmem:[%s1827 + $0x8] sm:$0xff]
    %1830 = vrot.lane.b32.xlu0 %v1483, 32
    %v1831 = vpop.permute.xlu0 %1830
    %1832 = vrot.lane.b32.xlu0 %v1486, 32
    %v1833 = vpop.permute.xlu0 %1832
    %v1834 = vsel %vm502, %v1831, 0
    %v1836 = vsel %vm502, %v1833, 0
    %1838 = vmatpush.msra.mxu0 0.0
    %1839 = vmatpush.msra.mxu0 0.0
    %1840 = vmatpush.msra.mxu0 0.0
    %1841 = vmatpush.msra.mxu0 0.0
    %1842 = vmatpush.msra.mxu0 0.0
    %1843 = vmatpush.msra.mxu0 0.0
    %1844 = vmatpush.msra.mxu0 0.0
    %1845 = vmatpush.msra.mxu0 0.0
    %1846 = vmatpush.msra.mxu0 0.0
    %1847 = vmatpush.msra.mxu0 0.0
    %1848 = vmatpush.msra.mxu0 0.0
    %1849 = vmatpush.msra.mxu0 0.0
    %1850 = vmatpush.msra.mxu0 0.0
    %1851 = vmatpush.msra.mxu0 0.0
    %1852 = vmatpush.msra.mxu0 %v1829
    %1853 = vmatpush.msra.mxu0 %v1828
    %1854 = vmatmul.f32.gmra.mxu0 %v1834
    %v1855 = vpop.f32.mrf.mxu0
    %v1856 = vadd.f32 0.0, %v1855
    %1857 = vmatmul.f32.gmra.mxu0 %v1836
    %v1858 = vpop.f32.mrf.mxu0
    %v1859 = vadd.f32 0.0, %v1858
    %1860 = vdwg.mxu0
    %v1861 = vsel %vm502, %v1856, -inf
    %1862 = vmax.xlane.f32.xlu0 %v1861
    %v1863 = vpop.xlane.xlu0 %1862
    %v1864 = vsel %vm502, %v1859, -inf
    %1865 = vmax.xlane.f32.xlu0 %v1864
    %v1866 = vpop.xlane.xlu0 %1865
    %v1867 = vsub.f32 %v1856, %v1863
    %v1868 = vsub.f32 %v1859, %v1866
    %v1869 = vmul.f32 %v1867, 1.442695
    %v1870 = vpow.pop %v1869
    %v1871 = vmul.f32 %v1868, 1.442695
    %v1872 = vpow.pop %v1871
    %v1873 = vsel %vm502, %v1870, 0.0
    %1874 = vadd.xlane.f32.xlu0 %v1873
    %v1875 = vpop.xlane.xlu0 %1874
    %v1876 = vsel %vm502, %v1872, 0.0
    %1877 = vadd.xlane.f32.xlu0 %v1876
    %v1878 = vpop.xlane.xlu0 %1877
    %v1879 = vrcp.pop %v1875
    %v1880 = vrcp.pop %v1878
    %v1881 = vmul.f32 %v1875, %v1879
    %v1882 = vmul.f32 %v1878, %v1880
    %v1883 = vsub.f32 2.0, %v1881
    %v1884 = vsub.f32 2.0, %v1882
    %v1885 = vmul.f32 %v1879, %v1883
    %v1886 = vmul.f32 %v1880, %v1884
    %v1887 = vmul.f32 %v1870, %v1885
    %v1888 = vmul.f32 %v1872, %v1886
    %s1889 = scalar_lea.vmem %s6, 32
    %v1890 = vld [vmem:[%s1889] sm:$0xff]
    %v1891 = vld [vmem:[%s1889 + $0x8] sm:$0xff]
    %v1893 = vsel %vm502, %v1887, 0
    %v1896 = vsel %vm502, %v1888, 0
    %1898 = vmatpush.msra.mxu0 0.0
    %1899 = vmatpush.msra.mxu0 0.0
    %1900 = vmatpush.msra.mxu0 0.0
    %1901 = vmatpush.msra.mxu0 0.0
    %1902 = vmatpush.msra.mxu0 0.0
    %1903 = vmatpush.msra.mxu0 0.0
    %1904 = vmatpush.msra.mxu0 0.0
    %1905 = vmatpush.msra.mxu0 0.0
    %1906 = vmatpush.msra.mxu0 0.0
    %1907 = vmatpush.msra.mxu0 0.0
    %1908 = vmatpush.msra.mxu0 0.0
    %1909 = vmatpush.msra.mxu0 0.0
    %1910 = vmatpush.msra.mxu0 0.0
    %1911 = vmatpush.msra.mxu0 0.0
    %1912 = vmatpush.msra.mxu0 %v1891
    %1913 = vmatpush.msra.mxu0 %v1890
    %1914 = vmatmul.f32.gmra.mxu0 %v1893
    %v1915 = vpop.f32.mrf.mxu0
    %v1916 = vadd.f32 0.0, %v1915
    %1917 = vmatmul.f32.gmra.mxu0 %v1896
    %v1918 = vpop.f32.mrf.mxu0
    %v1919 = vadd.f32 0.0, %v1918
    %1920 = vdwg.mxu0
    %s1921 = scalar_lea.vmem %s10, 8
    %v1922 = vld [vmem:[%s1921] sm:$0xf]
    %v1924 = vsel %vm48, %v1806, 0
    %v1927 = vsel %vm48, %v1821, 0
    %1929 = vmatpush.msra.mxu0 0.0
    %1930 = vmatpush.msra.mxu0 0.0
    %1931 = vmatpush.msra.mxu0 0.0
    %1932 = vmatpush.msra.mxu0 0.0
    %1933 = vmatpush.msra.mxu0 0.0
    %1934 = vmatpush.msra.mxu0 0.0
    %1935 = vmatpush.msra.mxu0 0.0
    %1936 = vmatpush.msra.mxu0 0.0
    %1937 = vmatpush.msra.mxu0 0.0
    %1938 = vmatpush.msra.mxu0 0.0
    %1939 = vmatpush.msra.mxu0 0.0
    %1940 = vmatpush.msra.mxu0 0.0
    %1941 = vmatpush.msra.mxu0 %v1826
    %1942 = vmatpush.msra.mxu0 %v1825
    %1943 = vmatpush.msra.mxu0 %v1824
    %1944 = vmatpush.msra.mxu0 %v1823
    %1945 = vmatmul.f32.gmra.mxu0 %v1924
    %v1946 = vpop.f32.mrf.mxu0
    %v1947 = vadd.f32 %v1916, %v1946
    %1948 = vmatmul.f32.gmra.mxu0 %v1927
    %v1949 = vpop.f32.mrf.mxu0
    %v1950 = vadd.f32 %v1919, %v1949
    %1951 = vdwg.mxu0
    %v1952 = vperm.slane %v1922, 0
    %v1953 = vadd.f32 %v1947, %v1952
    %v1954 = vadd.f32 %v1950, %v1952
    %s1955 = scalar_lea.vmem %s7, 64
    %v1956 = vld [vmem:[%s1955] sm:$0xff]
    %v1957 = vld [vmem:[%s1955 + $0x8] sm:$0xff]
    %v1958 = vld [vmem:[%s1955 + $0x10] sm:$0xff]
    %v1959 = vld [vmem:[%s1955 + $0x18] sm:$0xff]
    %s1960 = scalar_lea.vmem %s8, 2
    %v1961 = vld [vmem:[%s1960] sm:$0x1]
    %v1963 = vperm.slane %v1961, 0
    %v1966 = vsel %vm48, %v1953, 0
    %v1969 = vsel %vm48, %v1954, 0
    %1971 = vmatpush.msra.mxu0 0.0
    %1972 = vmatpush.msra.mxu0 0.0
    %1973 = vmatpush.msra.mxu0 0.0
    %1974 = vmatpush.msra.mxu0 0.0
    %1975 = vmatpush.msra.mxu0 0.0
    %1976 = vmatpush.msra.mxu0 0.0
    %1977 = vmatpush.msra.mxu0 0.0
    %1978 = vmatpush.msra.mxu0 0.0
    %1979 = vmatpush.msra.mxu0 0.0
    %1980 = vmatpush.msra.mxu0 0.0
    %1981 = vmatpush.msra.mxu0 0.0
    %1982 = vmatpush.msra.mxu0 0.0
    %1983 = vmatpush.msra.mxu0 %v1959
    %1984 = vmatpush.msra.mxu0 %v1958
    %1985 = vmatpush.msra.mxu0 %v1957
    %1986 = vmatpush.msra.mxu0 %v1956
    %1987 = vmatmul.f32.gmra.mxu0 %v1966
    %v1988 = vpop.f32.mrf.mxu0
    %v1989 = vadd.f32 %v1963, %v1988
    %1990 = vmatmul.f32.gmra.mxu0 %v1969
    %v1991 = vpop.f32.mrf.mxu0
    %v1992 = vadd.f32 %v1963, %v1991
    %1993 = vdwg.mxu0
    %v1994 = vmul.f32 %v1989, %v1989
    %v1995 = vmul.f32 %v1992, %v1992
    %v1996 = vmul.f32 %v1989, %v1994
    %v1997 = vmul.f32 %v1992, %v1995
    %v1998 = vmul.f32 %v1996, 0.044715
    %v1999 = vmul.f32 %v1997, 0.044715
    %v2000 = vadd.f32 %v1989, %v1998
    %v2001 = vadd.f32 %v1992, %v1999
    %v2002 = vmul.f32 %v2000, 0.7978846
    %v2003 = vmul.f32 %v2001, 0.7978846
    %v2004 = vtanh.pop %v2002
    %v2005 = vtanh.pop %v2003
    %v2006 = vadd.f32 %v2004, 1.0
    %v2007 = vadd.f32 %v2005, 1.0
    %v2008 = vmul.f32 %v2006, 0.5
    %v2009 = vmul.f32 %v2007, 0.5
    %v2010 = vmul.f32 %v1989, %v2008
    %v2011 = vmul.f32 %v1992, %v2009
    %s2012 = scalar_lea.vmem %s9, 128
    %v2013 = vld [vmem:[%s2012] sm:$0xff]
    %v2014 = vld [vmem:[%s2012 + $0x8] sm:$0xff]
    %v2015 = vld [vmem:[%s2012 + $0x10] sm:$0xff]
    %v2016 = vld [vmem:[%s2012 + $0x18] sm:$0xff]
    %v2017 = vld [vmem:[%s2012 + $0x20] sm:$0xff]
    %v2018 = vld [vmem:[%s2012 + $0x28] sm:$0xff]
    %v2019 = vld [vmem:[%s2012 + $0x30] sm:$0xff]
    %v2020 = vld [vmem:[%s2012 + $0x38] sm:$0xff]
    %v2021 = vperm.slane %v1922, 1
    %v2023 = vsel %vm287, %v2010, 0
    %v2026 = vsel %vm287, %v2011, 0
    %2028 = vmatpush.msra.mxu0 0.0
    %2029 = vmatpush.msra.mxu0 0.0
    %2030 = vmatpush.msra.mxu0 0.0
    %2031 = vmatpush.msra.mxu0 0.0
    %2032 = vmatpush.msra.mxu0 0.0
    %2033 = vmatpush.msra.mxu0 0.0
    %2034 = vmatpush.msra.mxu0 0.0
    %2035 = vmatpush.msra.mxu0 0.0
    %2036 = vmatpush.msra.mxu0 %v2020
    %2037 = vmatpush.msra.mxu0 %v2019
    %2038 = vmatpush.msra.mxu0 %v2018
    %2039 = vmatpush.msra.mxu0 %v2017
    %2040 = vmatpush.msra.mxu0 %v2016
    %2041 = vmatpush.msra.mxu0 %v2015
    %2042 = vmatpush.msra.mxu0 %v2014
    %2043 = vmatpush.msra.mxu0 %v2013
    %2044 = vmatmul.f32.gmra.mxu0 %v2023
    %v2045 = vpop.f32.mrf.mxu0
    %v2046 = vadd.f32 %v2021, %v2045
    %2047 = vmatmul.f32.gmra.mxu0 %v2026
    %v2048 = vpop.f32.mrf.mxu0
    %v2049 = vadd.f32 %v2021, %v2048
    %2050 = vdwg.mxu0
    %v2051 = vadd.f32 %v2046, %v1953
    %v2052 = vadd.f32 %v2049, %v1954
    %v2053 = vsel %vm48, %v2051, 0.0
    %2054 = vadd.xlane.f32.xlu0 %v2053
    %v2055 = vpop.xlane.xlu0 %2054
    %v2056 = vsel %vm48, %v2052, 0.0
    %2057 = vadd.xlane.f32.xlu0 %v2056
    %v2058 = vpop.xlane.xlu0 %2057
    %v2059 = vmul.f32 %v2055, %v61
    %v2060 = vmul.f32 %v2058, %v61
    %v2061 = vsub.f32 %v2051, %v2059
    %v2062 = vsub.f32 %v2052, %v2060
    %v2063 = vmul.f32 %v2061, %v2061
    %v2064 = vmul.f32 %v2062, %v2062
    %v2065 = vsel %vm48, %v2063, 0.0
    %2066 = vadd.xlane.f32.xlu0 %v2065
    %v2067 = vpop.xlane.xlu0 %2066
    %v2068 = vsel %vm48, %v2064, 0.0
    %2069 = vadd.xlane.f32.xlu0 %v2068
    %v2070 = vpop.xlane.xlu0 %2069
    %v2071 = vmul.f32 %v2067, %v61
    %v2072 = vmul.f32 %v2070, %v61
    %v2073 = vadd.f32 %v2071, 1e-12
    %v2074 = vadd.f32 %v2072, 1e-12
    %v2075 = vrsqrt.pop %v2073
    %v2076 = vmul.f32 %v2075, %v2073
    %v2077 = vmul.f32 %v2076, %v2075
    %v2078 = vmul.f32 0.5, %v2077
    %v2079 = vsub.f32 1.5, %v2078
    %v2080 = vmul.f32 %v2075, %v2079
    %vm2081 = vweird.f32 %v2073
    %vm2082 = vweird.f32 %v2075
    %vm2083 = vmor %vm2081, %vm2082
    %v2084 = vsel %vm2083, %v2075, %v2080
    %v2085 = vrsqrt.pop %v2074
    %v2086 = vmul.f32 %v2085, %v2074
    %v2087 = vmul.f32 %v2086, %v2085
    %v2088 = vmul.f32 0.5, %v2087
    %v2089 = vsub.f32 1.5, %v2088
    %v2090 = vmul.f32 %v2085, %v2089
    %vm2091 = vweird.f32 %v2074
    %vm2092 = vweird.f32 %v2085
    %vm2093 = vmor %vm2091, %vm2092
    %v2094 = vsel %vm2093, %v2085, %v2090
    %v2095 = vmul.f32 %v2061, %v2084
    %v2096 = vmul.f32 %v2062, %v2094
    %v2097 = vperm.slane %v1922, 2
    %v2098 = vmul.f32 %v2095, %v2097
    %v2099 = vmul.f32 %v2096, %v2097
    %v2100 = vperm.slane %v1922, 3
    %v2101 = vadd.f32 %v2098, %v2100
    %v2102 = vadd.f32 %v2099, %v2100
    %s2103 = scalar_lea.vmem %s2, 96
    %v2104 = vld [vmem:[%s2103] sm:$0xff]
    %v2105 = vld [vmem:[%s2103 + $0x8] sm:$0xff]
    %v2106 = vld [vmem:[%s2103 + $0x10] sm:$0xff]
    %v2107 = vld [vmem:[%s2103 + $0x18] sm:$0xff]
    %s2108 = scalar_lea.vmem %s3, 3
    %v2109 = vld [vmem:[%s2108] sm:$0x1]
    %v2111 = vperm.slane %v2109, 0
    %v2114 = vsel %vm48, %v2101, 0
    %v2117 = vsel %vm48, %v2102, 0
    %2119 = vmatpush.msra.mxu0 0.0
    %2120 = vmatpush.msra.mxu0 0.0
    %2121 = vmatpush.msra.mxu0 0.0
    %2122 = vmatpush.msra.mxu0 0.0
    %2123 = vmatpush.msra.mxu0 0.0
    %2124 = vmatpush.msra.mxu0 0.0
    %2125 = vmatpush.msra.mxu0 0.0
    %2126 = vmatpush.msra.mxu0 0.0
    %2127 = vmatpush.msra.mxu0 0.0
    %2128 = vmatpush.msra.mxu0 0.0
    %2129 = vmatpush.msra.mxu0 0.0
    %2130 = vmatpush.msra.mxu0 0.0
    %2131 = vmatpush.msra.mxu0 %v2107
    %2132 = vmatpush.msra.mxu0 %v2106
    %2133 = vmatpush.msra.mxu0 %v2105
    %2134 = vmatpush.msra.mxu0 %v2104
    %2135 = vmatmul.f32.gmra.mxu0 %v2114
    %v2136 = vpop.f32.mrf.mxu0
    %v2137 = vadd.f32 %v2111, %v2136
    %2138 = vmatmul.f32.gmra.mxu0 %v2117
    %v2139 = vpop.f32.mrf.mxu0
    %v2140 = vadd.f32 %v2111, %v2139
    %2141 = vdwg.mxu0
    %2143 = vrot.lane.b32.xlu0 %v2137, 120
    %v2144 = vpop.permute.xlu0 %2143
    %2145 = vrot.lane.b32.xlu0 %v2137, 112
    %v2146 = vpop.permute.xlu0 %2145
    %2147 = vrot.lane.b32.xlu0 %v2137, 104
    %v2148 = vpop.permute.xlu0 %2147
    %2150 = vrot.lane.b32.xlu0 %v2140, 120
    %v2151 = vpop.permute.xlu0 %2150
    %2152 = vrot.lane.b32.xlu0 %v2140, 112
    %v2153 = vpop.permute.xlu0 %2152
    %2154 = vrot.lane.b32.xlu0 %v2140, 104
    %v2155 = vpop.permute.xlu0 %2154
    %2156 = vrot.lane.b32.xlu0 %v2137, 96
    %v2157 = vpop.permute.xlu0 %2156
    %2158 = vrot.lane.b32.xlu0 %v2144, 96
    %v2159 = vpop.permute.xlu0 %2158
    %2160 = vrot.lane.b32.xlu0 %v2146, 96
    %v2161 = vpop.permute.xlu0 %2160
    %2162 = vrot.lane.b32.xlu0 %v2148, 96
    %v2163 = vpop.permute.xlu0 %2162
    %2164 = vrot.lane.b32.xlu0 %v2140, 96
    %v2165 = vpop.permute.xlu0 %2164
    %2166 = vrot.lane.b32.xlu0 %v2151, 96
    %v2167 = vpop.permute.xlu0 %2166
    %2168 = vrot.lane.b32.xlu0 %v2153, 96
    %v2169 = vpop.permute.xlu0 %2168
    %2170 = vrot.lane.b32.xlu0 %v2155, 96
    %v2171 = vpop.permute.xlu0 %2170
    %v2172 = vsel %vm213, %v2137, 0
    %v2174 = vsel %vm213, %v2144, 0
    %v2176 = vsel %vm213, %v2146, 0
    %v2178 = vsel %vm213, %v2148, 0
    %v2180 = vsel %vm213, %v2140, 0
    %v2182 = vsel %vm213, %v2151, 0
    %v2184 = vsel %vm213, %v2153, 0
    %v2186 = vsel %vm213, %v2155, 0
    %v2188 = vsel %vm213, %v2157, 0
    %v2190 = vsel %vm213, %v2159, 0
    %v2192 = vsel %vm213, %v2161, 0
    %v2194 = vsel %vm213, %v2163, 0
    %v2196 = vsel %vm213, %v2165, 0
    %v2198 = vsel %vm213, %v2167, 0
    %v2200 = vsel %vm213, %v2169, 0
    %v2202 = vsel %vm213, %v2171, 0
    %2204 = vmatpush.xpose.msra.mxu0 0.0
    %2205 = vmatpush.xpose.msra.mxu0 0.0
    %2206 = vmatpush.xpose.msra.mxu0 0.0
    %2207 = vmatpush.xpose.msra.mxu0 0.0
    %2208 = vmatpush.xpose.msra.mxu0 0.0
    %2209 = vmatpush.xpose.msra.mxu0 0.0
    %2210 = vmatpush.xpose.msra.mxu0 0.0
    %2211 = vmatpush.xpose.msra.mxu0 0.0
    %2212 = vmatpush.xpose.msra.mxu0 %v2202
    %2213 = vmatpush.xpose.msra.mxu0 %v2200
    %2214 = vmatpush.xpose.msra.mxu0 %v2198
    %2215 = vmatpush.xpose.msra.mxu0 %v2196
    %2216 = vmatpush.xpose.msra.mxu0 %v2194
    %2217 = vmatpush.xpose.msra.mxu0 %v2192
    %2218 = vmatpush.xpose.msra.mxu0 %v2190
    %2219 = vmatpush.xpose.msra.mxu0 %v2188
    %2220 = vmatmul.f32.gmra.mxu0 %v2172
    %v2221 = vpop.f32.mrf.mxu0
    %v2222 = vadd.f32 %v138, %v2221
    %2223 = vmatmul.f32.gmra.mxu0 %v2174
    %v2224 = vpop.f32.mrf.mxu0
    %v2225 = vadd.f32 %v139, %v2224
    %2226 = vmatmul.f32.gmra.mxu0 %v2176
    %v2227 = vpop.f32.mrf.mxu0
    %v2228 = vadd.f32 %v140, %v2227
    %2229 = vmatmul.f32.gmra.mxu0 %v2178
    %v2230 = vpop.f32.mrf.mxu0
    %v2231 = vadd.f32 %v141, %v2230
    %2232 = vmatmul.f32.gmra.mxu0 %v2180
    %v2233 = vpop.f32.mrf.mxu0
    %v2234 = vadd.f32 %v142, %v2233
    %2235 = vmatmul.f32.gmra.mxu0 %v2182
    %v2236 = vpop.f32.mrf.mxu0
    %v2237 = vadd.f32 %v143, %v2236
    %2238 = vmatmul.f32.gmra.mxu0 %v2184
    %v2239 = vpop.f32.mrf.mxu0
    %v2240 = vadd.f32 %v144, %v2239
    %2241 = vmatmul.f32.gmra.mxu0 %v2186
    %v2242 = vpop.f32.mrf.mxu0
    %v2243 = vadd.f32 %v145, %v2242
    %2244 = vdwg.mxu0
    %v2245 = vsel %vm287, %v2222, -inf
    %2246 = vmax.xlane.f32.xlu0 %v2245
    %v2247 = vpop.xlane.xlu0 %2246
    %v2248 = vsel %vm287, %v2225, -inf
    %2249 = vmax.xlane.f32.xlu0 %v2248
    %v2250 = vpop.xlane.xlu0 %2249
    %v2251 = vsel %vm287, %v2228, -inf
    %2252 = vmax.xlane.f32.xlu0 %v2251
    %v2253 = vpop.xlane.xlu0 %2252
    %v2254 = vsel %vm287, %v2231, -inf
    %2255 = vmax.xlane.f32.xlu0 %v2254
    %v2256 = vpop.xlane.xlu0 %2255
    %v2257 = vsel %vm287, %v2234, -inf
    %2258 = vmax.xlane.f32.xlu0 %v2257
    %v2259 = vpop.xlane.xlu0 %2258
    %v2260 = vsel %vm287, %v2237, -inf
    %2261 = vmax.xlane.f32.xlu0 %v2260
    %v2262 = vpop.xlane.xlu0 %2261
    %v2263 = vsel %vm287, %v2240, -inf
    %2264 = vmax.xlane.f32.xlu0 %v2263
    %v2265 = vpop.xlane.xlu0 %2264
    %v2266 = vsel %vm287, %v2243, -inf
    %2267 = vmax.xlane.f32.xlu0 %v2266
    %v2268 = vpop.xlane.xlu0 %2267
    %v2269 = vsub.f32 %v2222, %v2247
    %v2270 = vsub.f32 %v2225, %v2250
    %v2271 = vsub.f32 %v2228, %v2253
    %v2272 = vsub.f32 %v2231, %v2256
    %v2273 = vsub.f32 %v2234, %v2259
    %v2274 = vsub.f32 %v2237, %v2262
    %v2275 = vsub.f32 %v2240, %v2265
    %v2276 = vsub.f32 %v2243, %v2268
    %v2277 = vmul.f32 %v2269, 1.442695
    %v2278 = vpow.pop %v2277
    %v2279 = vmul.f32 %v2270, 1.442695
    %v2280 = vpow.pop %v2279
    %v2281 = vmul.f32 %v2271, 1.442695
    %v2282 = vpow.pop %v2281
    %v2283 = vmul.f32 %v2272, 1.442695
    %v2284 = vpow.pop %v2283
    %v2285 = vmul.f32 %v2273, 1.442695
    %v2286 = vpow.pop %v2285
    %v2287 = vmul.f32 %v2274, 1.442695
    %v2288 = vpow.pop %v2287
    %v2289 = vmul.f32 %v2275, 1.442695
    %v2290 = vpow.pop %v2289
    %v2291 = vmul.f32 %v2276, 1.442695
    %v2292 = vpow.pop %v2291
    %v2293 = vsel %vm287, %v2278, 0.0
    %2294 = vadd.xlane.f32.xlu0 %v2293
    %v2295 = vpop.xlane.xlu0 %2294
    %v2296 = vsel %vm287, %v2280, 0.0
    %2297 = vadd.xlane.f32.xlu0 %v2296
    %v2298 = vpop.xlane.xlu0 %2297
    %v2299 = vsel %vm287, %v2282, 0.0
    %2300 = vadd.xlane.f32.xlu0 %v2299
    %v2301 = vpop.xlane.xlu0 %2300
    %v2302 = vsel %vm287, %v2284, 0.0
    %2303 = vadd.xlane.f32.xlu0 %v2302
    %v2304 = vpop.xlane.xlu0 %2303
    %v2305 = vsel %vm287, %v2286, 0.0
    %2306 = vadd.xlane.f32.xlu0 %v2305
    %v2307 = vpop.xlane.xlu0 %2306
    %v2308 = vsel %vm287, %v2288, 0.0
    %2309 = vadd.xlane.f32.xlu0 %v2308
    %v2310 = vpop.xlane.xlu0 %2309
    %v2311 = vsel %vm287, %v2290, 0.0
    %2312 = vadd.xlane.f32.xlu0 %v2311
    %v2313 = vpop.xlane.xlu0 %2312
    %v2314 = vsel %vm287, %v2292, 0.0
    %2315 = vadd.xlane.f32.xlu0 %v2314
    %v2316 = vpop.xlane.xlu0 %2315
    %v2317 = vrcp.pop %v2295
    %v2318 = vrcp.pop %v2298
    %v2319 = vrcp.pop %v2301
    %v2320 = vrcp.pop %v2304
    %v2321 = vrcp.pop %v2307
    %v2322 = vrcp.pop %v2310
    %v2323 = vrcp.pop %v2313
    %v2324 = vrcp.pop %v2316
    %v2325 = vmul.f32 %v2295, %v2317
    %v2326 = vmul.f32 %v2298, %v2318
    %v2327 = vmul.f32 %v2301, %v2319
    %v2328 = vmul.f32 %v2304, %v2320
    %v2329 = vmul.f32 %v2307, %v2321
    %v2330 = vmul.f32 %v2310, %v2322
    %v2331 = vmul.f32 %v2313, %v2323
    %v2332 = vmul.f32 %v2316, %v2324
    %v2333 = vsub.f32 2.0, %v2325
    %v2334 = vsub.f32 2.0, %v2326
    %v2335 = vsub.f32 2.0, %v2327
    %v2336 = vsub.f32 2.0, %v2328
    %v2337 = vsub.f32 2.0, %v2329
    %v2338 = vsub.f32 2.0, %v2330
    %v2339 = vsub.f32 2.0, %v2331
    %v2340 = vsub.f32 2.0, %v2332
    %v2341 = vmul.f32 %v2317, %v2333
    %v2342 = vmul.f32 %v2318, %v2334
    %v2343 = vmul.f32 %v2319, %v2335
    %v2344 = vmul.f32 %v2320, %v2336
    %v2345 = vmul.f32 %v2321, %v2337
    %v2346 = vmul.f32 %v2322, %v2338
    %v2347 = vmul.f32 %v2323, %v2339
    %v2348 = vmul.f32 %v2324, %v2340
    %v2349 = vmul.f32 %v2278, %v2341
    %v2350 = vmul.f32 %v2280, %v2342
    %v2351 = vmul.f32 %v2282, %v2343
    %v2352 = vmul.f32 %v2284, %v2344
    %v2353 = vmul.f32 %v2286, %v2345
    %v2354 = vmul.f32 %v2288, %v2346
    %v2355 = vmul.f32 %v2290, %v2347
    %v2356 = vmul.f32 %v2292, %v2348
    %2357 = vrot.lane.b32.xlu0 %v2137, 64
    %v2358 = vpop.permute.xlu0 %2357
    %2359 = vrot.lane.b32.xlu0 %v2144, 64
    %v2360 = vpop.permute.xlu0 %2359
    %2361 = vrot.lane.b32.xlu0 %v2146, 64
    %v2362 = vpop.permute.xlu0 %2361
    %2363 = vrot.lane.b32.xlu0 %v2148, 64
    %v2364 = vpop.permute.xlu0 %2363
    %2365 = vrot.lane.b32.xlu0 %v2140, 64
    %v2366 = vpop.permute.xlu0 %2365
    %2367 = vrot.lane.b32.xlu0 %v2151, 64
    %v2368 = vpop.permute.xlu0 %2367
    %2369 = vrot.lane.b32.xlu0 %v2153, 64
    %v2370 = vpop.permute.xlu0 %2369
    %2371 = vrot.lane.b32.xlu0 %v2155, 64
    %v2372 = vpop.permute.xlu0 %2371
    %v2382 = vsel %vm287, %v2349, 0
    %v2385 = vsel %vm287, %v2350, 0
    %v2388 = vsel %vm287, %v2351, 0
    %v2391 = vsel %vm287, %v2352, 0
    %v2394 = vsel %vm287, %v2353, 0
    %v2397 = vsel %vm287, %v2354, 0
    %v2400 = vsel %vm287, %v2355, 0
    %v2403 = vsel %vm287, %v2356, 0
    %2405 = vmatpush.msra.mxu0 0.0
    %2406 = vmatpush.msra.mxu0 0.0
    %2407 = vmatpush.msra.mxu0 0.0
    %2408 = vmatpush.msra.mxu0 0.0
    %2409 = vmatpush.msra.mxu0 0.0
    %2410 = vmatpush.msra.mxu0 0.0
    %2411 = vmatpush.msra.mxu0 0.0
    %2412 = vmatpush.msra.mxu0 0.0
    %2413 = vmatpush.msra.mxu0 %v2372
    %2414 = vmatpush.msra.mxu0 %v2370
    %2415 = vmatpush.msra.mxu0 %v2368
    %2416 = vmatpush.msra.mxu0 %v2366
    %2417 = vmatpush.msra.mxu0 %v2364
    %2418 = vmatpush.msra.mxu0 %v2362
    %2419 = vmatpush.msra.mxu0 %v2360
    %2420 = vmatpush.msra.mxu0 %v2358
    %2421 = vmatmul.f32.gmra.mxu0 %v2382
    %v2422 = vpop.f32.mrf.mxu0
    %v2423 = vadd.f32 0.0, %v2422
    %2424 = vmatmul.f32.gmra.mxu0 %v2385
    %v2425 = vpop.f32.mrf.mxu0
    %v2426 = vadd.f32 0.0, %v2425
    %2427 = vmatmul.f32.gmra.mxu0 %v2388
    %v2428 = vpop.f32.mrf.mxu0
    %v2429 = vadd.f32 0.0, %v2428
    %2430 = vmatmul.f32.gmra.mxu0 %v2391
    %v2431 = vpop.f32.mrf.mxu0
    %v2432 = vadd.f32 0.0, %v2431
    %2433 = vmatmul.f32.gmra.mxu0 %v2394
    %v2434 = vpop.f32.mrf.mxu0
    %v2435 = vadd.f32 0.0, %v2434
    %2436 = vmatmul.f32.gmra.mxu0 %v2397
    %v2437 = vpop.f32.mrf.mxu0
    %v2438 = vadd.f32 0.0, %v2437
    %2439 = vmatmul.f32.gmra.mxu0 %v2400
    %v2440 = vpop.f32.mrf.mxu0
    %v2441 = vadd.f32 0.0, %v2440
    %2442 = vmatmul.f32.gmra.mxu0 %v2403
    %v2443 = vpop.f32.mrf.mxu0
    %v2444 = vadd.f32 0.0, %v2443
    %2445 = vdwg.mxu0
    %2447 = vrot.lane.b32.xlu0 %v2426, 8
    %v2448 = vpop.permute.xlu0 %2447
    %2451 = vrot.lane.b32.xlu0 %v2429, 16
    %v2452 = vpop.permute.xlu0 %2451
    %2455 = vrot.lane.b32.xlu0 %v2432, 24
    %v2456 = vpop.permute.xlu0 %2455
    %v2458 = vsel %vm213, %v2423, %v2448
    %v2459 = vsel %vm502, %v2458, %v2452
    %v2460 = vsel %vm504, %v2459, %v2456
    %2462 = vrot.lane.b32.xlu0 %v2438, 8
    %v2463 = vpop.permute.xlu0 %2462
    %2466 = vrot.lane.b32.xlu0 %v2441, 16
    %v2467 = vpop.permute.xlu0 %2466
    %2470 = vrot.lane.b32.xlu0 %v2444, 24
    %v2471 = vpop.permute.xlu0 %2470
    %v2473 = vsel %vm213, %v2435, %v2463
    %v2474 = vsel %vm502, %v2473, %v2467
    %v2475 = vsel %vm504, %v2474, %v2471
    %s2476 = scalar_lea.vmem %s4, 96
    %v2477 = vld [vmem:[%s2476] sm:$0xff]
    %v2478 = vld [vmem:[%s2476 + $0x8] sm:$0xff]
    %v2479 = vld [vmem:[%s2476 + $0x10] sm:$0xff]
    %v2480 = vld [vmem:[%s2476 + $0x18] sm:$0xff]
    %s2481 = scalar_lea.vmem %s5, 48
    %v2482 = vld [vmem:[%s2481] sm:$0xff]
    %v2483 = vld [vmem:[%s2481 + $0x8] sm:$0xff]
    %2484 = vrot.lane.b32.xlu0 %v2137, 32
    %v2485 = vpop.permute.xlu0 %2484
    %2486 = vrot.lane.b32.xlu0 %v2140, 32
    %v2487 = vpop.permute.xlu0 %2486
    %v2488 = vsel %vm502, %v2485, 0
    %v2490 = vsel %vm502, %v2487, 0
    %2492 = vmatpush.msra.mxu0 0.0
    %2493 = vmatpush.msra.mxu0 0.0
    %2494 = vmatpush.msra.mxu0 0.0
    %2495 = vmatpush.msra.mxu0 0.0
    %2496 = vmatpush.msra.mxu0 0.0
    %2497 = vmatpush.msra.mxu0 0.0
    %2498 = vmatpush.msra.mxu0 0.0
    %2499 = vmatpush.msra.mxu0 0.0
    %2500 = vmatpush.msra.mxu0 0.0
    %2501 = vmatpush.msra.mxu0 0.0
    %2502 = vmatpush.msra.mxu0 0.0
    %2503 = vmatpush.msra.mxu0 0.0
    %2504 = vmatpush.msra.mxu0 0.0
    %2505 = vmatpush.msra.mxu0 0.0
    %2506 = vmatpush.msra.mxu0 %v2483
    %2507 = vmatpush.msra.mxu0 %v2482
    %2508 = vmatmul.f32.gmra.mxu0 %v2488
    %v2509 = vpop.f32.mrf.mxu0
    %v2510 = vadd.f32 0.0, %v2509
    %2511 = vmatmul.f32.gmra.mxu0 %v2490
    %v2512 = vpop.f32.mrf.mxu0
    %v2513 = vadd.f32 0.0, %v2512
    %2514 = vdwg.mxu0
    %v2515 = vsel %vm502, %v2510, -inf
    %2516 = vmax.xlane.f32.xlu0 %v2515
    %v2517 = vpop.xlane.xlu0 %2516
    %v2518 = vsel %vm502, %v2513, -inf
    %2519 = vmax.xlane.f32.xlu0 %v2518
    %v2520 = vpop.xlane.xlu0 %2519
    %v2521 = vsub.f32 %v2510, %v2517
    %v2522 = vsub.f32 %v2513, %v2520
    %v2523 = vmul.f32 %v2521, 1.442695
    %v2524 = vpow.pop %v2523
    %v2525 = vmul.f32 %v2522, 1.442695
    %v2526 = vpow.pop %v2525
    %v2527 = vsel %vm502, %v2524, 0.0
    %2528 = vadd.xlane.f32.xlu0 %v2527
    %v2529 = vpop.xlane.xlu0 %2528
    %v2530 = vsel %vm502, %v2526, 0.0
    %2531 = vadd.xlane.f32.xlu0 %v2530
    %v2532 = vpop.xlane.xlu0 %2531
    %v2533 = vrcp.pop %v2529
    %v2534 = vrcp.pop %v2532
    %v2535 = vmul.f32 %v2529, %v2533
    %v2536 = vmul.f32 %v2532, %v2534
    %v2537 = vsub.f32 2.0, %v2535
    %v2538 = vsub.f32 2.0, %v2536
    %v2539 = vmul.f32 %v2533, %v2537
    %v2540 = vmul.f32 %v2534, %v2538
    %v2541 = vmul.f32 %v2524, %v2539
    %v2542 = vmul.f32 %v2526, %v2540
    %s2543 = scalar_lea.vmem %s6, 48
    %v2544 = vld [vmem:[%s2543] sm:$0xff]
    %v2545 = vld [vmem:[%s2543 + $0x8] sm:$0xff]
    %v2547 = vsel %vm502, %v2541, 0
    %v2550 = vsel %vm502, %v2542, 0
    %2552 = vmatpush.msra.mxu0 0.0
    %2553 = vmatpush.msra.mxu0 0.0
    %2554 = vmatpush.msra.mxu0 0.0
    %2555 = vmatpush.msra.mxu0 0.0
    %2556 = vmatpush.msra.mxu0 0.0
    %2557 = vmatpush.msra.mxu0 0.0
    %2558 = vmatpush.msra.mxu0 0.0
    %2559 = vmatpush.msra.mxu0 0.0
    %2560 = vmatpush.msra.mxu0 0.0
    %2561 = vmatpush.msra.mxu0 0.0
    %2562 = vmatpush.msra.mxu0 0.0
    %2563 = vmatpush.msra.mxu0 0.0
    %2564 = vmatpush.msra.mxu0 0.0
    %2565 = vmatpush.msra.mxu0 0.0
    %2566 = vmatpush.msra.mxu0 %v2545
    %2567 = vmatpush.msra.mxu0 %v2544
    %2568 = vmatmul.f32.gmra.mxu0 %v2547
    %v2569 = vpop.f32.mrf.mxu0
    %v2570 = vadd.f32 0.0, %v2569
    %2571 = vmatmul.f32.gmra.mxu0 %v2550
    %v2572 = vpop.f32.mrf.mxu0
    %v2573 = vadd.f32 0.0, %v2572
    %2574 = vdwg.mxu0
    %s2575 = scalar_lea.vmem %s10, 12
    %v2576 = vld [vmem:[%s2575] sm:$0xf]
    %v2578 = vsel %vm48, %v2460, 0
    %v2581 = vsel %vm48, %v2475, 0
    %2583 = vmatpush.msra.mxu0 0.0
    %2584 = vmatpush.msra.mxu0 0.0
    %2585 = vmatpush.msra.mxu0 0.0
    %2586 = vmatpush.msra.mxu0 0.0
    %2587 = vmatpush.msra.mxu0 0.0
    %2588 = vmatpush.msra.mxu0 0.0
    %2589 = vmatpush.msra.mxu0 0.0
    %2590 = vmatpush.msra.mxu0 0.0
    %2591 = vmatpush.msra.mxu0 0.0
    %2592 = vmatpush.msra.mxu0 0.0
    %2593 = vmatpush.msra.mxu0 0.0
    %2594 = vmatpush.msra.mxu0 0.0
    %2595 = vmatpush.msra.mxu0 %v2480
    %2596 = vmatpush.msra.mxu0 %v2479
    %2597 = vmatpush.msra.mxu0 %v2478
    %2598 = vmatpush.msra.mxu0 %v2477
    %2599 = vmatmul.f32.gmra.mxu0 %v2578
    %v2600 = vpop.f32.mrf.mxu0
    %v2601 = vadd.f32 %v2570, %v2600
    %2602 = vmatmul.f32.gmra.mxu0 %v2581
    %v2603 = vpop.f32.mrf.mxu0
    %v2604 = vadd.f32 %v2573, %v2603
    %2605 = vdwg.mxu0
    %v2606 = vperm.slane %v2576, 0
    %v2607 = vadd.f32 %v2601, %v2606
    %v2608 = vadd.f32 %v2604, %v2606
    %s2609 = scalar_lea.vmem %s7, 96
    %v2610 = vld [vmem:[%s2609] sm:$0xff]
    %v2611 = vld [vmem:[%s2609 + $0x8] sm:$0xff]
    %v2612 = vld [vmem:[%s2609 + $0x10] sm:$0xff]
    %v2613 = vld [vmem:[%s2609 + $0x18] sm:$0xff]
    %s2614 = scalar_lea.vmem %s8, 3
    %v2615 = vld [vmem:[%s2614] sm:$0x1]
    %v2617 = vperm.slane %v2615, 0
    %v2620 = vsel %vm48, %v2607, 0
    %v2623 = vsel %vm48, %v2608, 0
    %2625 = vmatpush.msra.mxu0 0.0
    %2626 = vmatpush.msra.mxu0 0.0
    %2627 = vmatpush.msra.mxu0 0.0
    %2628 = vmatpush.msra.mxu0 0.0
    %2629 = vmatpush.msra.mxu0 0.0
    %2630 = vmatpush.msra.mxu0 0.0
    %2631 = vmatpush.msra.mxu0 0.0
    %2632 = vmatpush.msra.mxu0 0.0
    %2633 = vmatpush.msra.mxu0 0.0
    %2634 = vmatpush.msra.mxu0 0.0
    %2635 = vmatpush.msra.mxu0 0.0
    %2636 = vmatpush.msra.mxu0 0.0
    %2637 = vmatpush.msra.mxu0 %v2613
    %2638 = vmatpush.msra.mxu0 %v2612
    %2639 = vmatpush.msra.mxu0 %v2611
    %2640 = vmatpush.msra.mxu0 %v2610
    %2641 = vmatmul.f32.gmra.mxu0 %v2620
    %v2642 = vpop.f32.mrf.mxu0
    %v2643 = vadd.f32 %v2617, %v2642
    %2644 = vmatmul.f32.gmra.mxu0 %v2623
    %v2645 = vpop.f32.mrf.mxu0
    %v2646 = vadd.f32 %v2617, %v2645
    %2647 = vdwg.mxu0
    %v2648 = vmul.f32 %v2643, %v2643
    %v2649 = vmul.f32 %v2646, %v2646
    %v2650 = vmul.f32 %v2643, %v2648
    %v2651 = vmul.f32 %v2646, %v2649
    %v2652 = vmul.f32 %v2650, 0.044715
    %v2653 = vmul.f32 %v2651, 0.044715
    %v2654 = vadd.f32 %v2643, %v2652
    %v2655 = vadd.f32 %v2646, %v2653
    %v2656 = vmul.f32 %v2654, 0.7978846
    %v2657 = vmul.f32 %v2655, 0.7978846
    %v2658 = vtanh.pop %v2656
    %v2659 = vtanh.pop %v2657
    %v2660 = vadd.f32 %v2658, 1.0
    %v2661 = vadd.f32 %v2659, 1.0
    %v2662 = vmul.f32 %v2660, 0.5
    %v2663 = vmul.f32 %v2661, 0.5
    %v2664 = vmul.f32 %v2643, %v2662
    %v2665 = vmul.f32 %v2646, %v2663
    %s2666 = scalar_lea.vmem %s9, 192
    %v2667 = vld [vmem:[%s2666] sm:$0xff]
    %v2668 = vld [vmem:[%s2666 + $0x8] sm:$0xff]
    %v2669 = vld [vmem:[%s2666 + $0x10] sm:$0xff]
    %v2670 = vld [vmem:[%s2666 + $0x18] sm:$0xff]
    %v2671 = vld [vmem:[%s2666 + $0x20] sm:$0xff]
    %v2672 = vld [vmem:[%s2666 + $0x28] sm:$0xff]
    %v2673 = vld [vmem:[%s2666 + $0x30] sm:$0xff]
    %v2674 = vld [vmem:[%s2666 + $0x38] sm:$0xff]
    %v2675 = vperm.slane %v2576, 1
    %v2677 = vsel %vm287, %v2664, 0
    %v2680 = vsel %vm287, %v2665, 0
    %2682 = vmatpush.msra.mxu0 0.0
    %2683 = vmatpush.msra.mxu0 0.0
    %2684 = vmatpush.msra.mxu0 0.0
    %2685 = vmatpush.msra.mxu0 0.0
    %2686 = vmatpush.msra.mxu0 0.0
    %2687 = vmatpush.msra.mxu0 0.0
    %2688 = vmatpush.msra.mxu0 0.0
    %2689 = vmatpush.msra.mxu0 0.0
    %2690 = vmatpush.msra.mxu0 %v2674
    %2691 = vmatpush.msra.mxu0 %v2673
    %2692 = vmatpush.msra.mxu0 %v2672
    %2693 = vmatpush.msra.mxu0 %v2671
    %2694 = vmatpush.msra.mxu0 %v2670
    %2695 = vmatpush.msra.mxu0 %v2669
    %2696 = vmatpush.msra.mxu0 %v2668
    %2697 = vmatpush.msra.mxu0 %v2667
    %2698 = vmatmul.f32.gmra.mxu0 %v2677
    %v2699 = vpop.f32.mrf.mxu0
    %v2700 = vadd.f32 %v2675, %v2699
    %2701 = vmatmul.f32.gmra.mxu0 %v2680
    %v2702 = vpop.f32.mrf.mxu0
    %v2703 = vadd.f32 %v2675, %v2702
    %2704 = vdwg.mxu0
    %v2705 = vadd.f32 %v2700, %v2607
    %v2706 = vadd.f32 %v2703, %v2608
    %v2707 = vsel %vm48, %v2705, 0.0
    %2708 = vadd.xlane.f32.xlu0 %v2707
    %v2709 = vpop.xlane.xlu0 %2708
    %v2710 = vsel %vm48, %v2706, 0.0
    %2711 = vadd.xlane.f32.xlu0 %v2710
    %v2712 = vpop.xlane.xlu0 %2711
    %v2713 = vmul.f32 %v2709, %v61
    %v2714 = vmul.f32 %v2712, %v61
    %v2715 = vsub.f32 %v2705, %v2713
    %v2716 = vsub.f32 %v2706, %v2714
    %v2717 = vmul.f32 %v2715, %v2715
    %v2718 = vmul.f32 %v2716, %v2716
    %v2719 = vsel %vm48, %v2717, 0.0
    %2720 = vadd.xlane.f32.xlu0 %v2719
    %v2721 = vpop.xlane.xlu0 %2720
    %v2722 = vsel %vm48, %v2718, 0.0
    %2723 = vadd.xlane.f32.xlu0 %v2722
    %v2724 = vpop.xlane.xlu0 %2723
    %v2725 = vmul.f32 %v2721, %v61
    %v2726 = vmul.f32 %v2724, %v61
    %v2727 = vadd.f32 %v2725, 1e-12
    %v2728 = vadd.f32 %v2726, 1e-12
    %v2729 = vrsqrt.pop %v2727
    %v2730 = vmul.f32 %v2729, %v2727
    %v2731 = vmul.f32 %v2730, %v2729
    %v2732 = vmul.f32 0.5, %v2731
    %v2733 = vsub.f32 1.5, %v2732
    %v2734 = vmul.f32 %v2729, %v2733
    %vm2735 = vweird.f32 %v2727
    %vm2736 = vweird.f32 %v2729
    %vm2737 = vmor %vm2735, %vm2736
    %v2738 = vsel %vm2737, %v2729, %v2734
    %v2739 = vrsqrt.pop %v2728
    %v2740 = vmul.f32 %v2739, %v2728
    %v2741 = vmul.f32 %v2740, %v2739
    %v2742 = vmul.f32 0.5, %v2741
    %v2743 = vsub.f32 1.5, %v2742
    %v2744 = vmul.f32 %v2739, %v2743
    %vm2745 = vweird.f32 %v2728
    %vm2746 = vweird.f32 %v2739
    %vm2747 = vmor %vm2745, %vm2746
    %v2748 = vsel %vm2747, %v2739, %v2744
    %v2749 = vmul.f32 %v2715, %v2738
    %v2750 = vmul.f32 %v2716, %v2748
    %v2751 = vperm.slane %v2576, 2
    %v2752 = vmul.f32 %v2749, %v2751
    %v2753 = vmul.f32 %v2750, %v2751
    %v2754 = vperm.slane %v2576, 3
    %v2755 = vadd.f32 %v2752, %v2754
    %v2756 = vadd.f32 %v2753, %v2754
    %v2757 = vsel %vm48, %v2755, 0.0
    %2758 = vadd.xlane.f32.xlu0 %v2757
    %v2759 = vpop.xlane.xlu0 %2758
    %v2760 = vsel %vm48, %v2756, 0.0
    %2761 = vadd.xlane.f32.xlu0 %v2760
    %v2762 = vpop.xlane.xlu0 %2761
    %v2763 = vmul.f32 %v2759, %v61
    %v2764 = vmul.f32 %v2762, %v61
    %v2765 = vsub.f32 %v2755, %v2763
    %v2766 = vsub.f32 %v2756, %v2764
    %v2767 = vmul.f32 %v2765, %v2765
    %v2768 = vmul.f32 %v2766, %v2766
    %v2769 = vsel %vm48, %v2767, 0.0
    %2770 = vadd.xlane.f32.xlu0 %v2769
    %v2771 = vpop.xlane.xlu0 %2770
    %v2772 = vsel %vm48, %v2768, 0.0
    %2773 = vadd.xlane.f32.xlu0 %v2772
    %v2774 = vpop.xlane.xlu0 %2773
    %v2775 = vmul.f32 %v2771, %v61
    %v2776 = vmul.f32 %v2774, %v61
    %v2777 = vadd.f32 %v2775, 1e-12
    %v2778 = vadd.f32 %v2776, 1e-12
    %v2779 = vrsqrt.pop %v2777
    %v2780 = vmul.f32 %v2779, %v2777
    %v2781 = vmul.f32 %v2780, %v2779
    %v2782 = vmul.f32 0.5, %v2781
    %v2783 = vsub.f32 1.5, %v2782
    %v2784 = vmul.f32 %v2779, %v2783
    %vm2785 = vweird.f32 %v2777
    %vm2786 = vweird.f32 %v2779
    %vm2787 = vmor %vm2785, %vm2786
    %v2788 = vsel %vm2787, %v2779, %v2784
    %v2789 = vrsqrt.pop %v2778
    %v2790 = vmul.f32 %v2789, %v2778
    %v2791 = vmul.f32 %v2790, %v2789
    %v2792 = vmul.f32 0.5, %v2791
    %v2793 = vsub.f32 1.5, %v2792
    %v2794 = vmul.f32 %v2789, %v2793
    %vm2795 = vweird.f32 %v2778
    %vm2796 = vweird.f32 %v2789
    %vm2797 = vmor %vm2795, %vm2796
    %v2798 = vsel %vm2797, %v2789, %v2794
    %v2799 = vmul.f32 %v2765, %v2788
    %v2800 = vmul.f32 %v2766, %v2798
    %v2801 = vperm.slane %v45, 2
    %v2802 = vmul.f32 %v2799, %v2801
    %v2803 = vmul.f32 %v2800, %v2801
    %v2804 = vperm.slane %v45, 3
    %v2805 = vadd.f32 %v2802, %v2804
    %v2806 = vadd.f32 %v2803, %v2804
    %v2807 = vld [vmem:[%s12] sm:$0xff]
    %v2808 = vld [vmem:[%s12 + $0x8] sm:$0xff]
    %v2809 = vld [vmem:[%s12 + $0x10] sm:$0xff]
    %v2810 = vld [vmem:[%s12 + $0x18] sm:$0xff]
    %v2812 = vsel %vm48, %v2805, 0
    %v2815 = vsel %vm48, %v2806, 0
    %2817 = vmatpush.msra.mxu0 0.0
    %2818 = vmatpush.msra.mxu0 0.0
    %2819 = vmatpush.msra.mxu0 0.0
    %2820 = vmatpush.msra.mxu0 0.0
    %2821 = vmatpush.msra.mxu0 0.0
    %2822 = vmatpush.msra.mxu0 0.0
    %2823 = vmatpush.msra.mxu0 0.0
    %2824 = vmatpush.msra.mxu0 0.0
    %2825 = vmatpush.msra.mxu0 0.0
    %2826 = vmatpush.msra.mxu0 0.0
    %2827 = vmatpush.msra.mxu0 0.0
    %2828 = vmatpush.msra.mxu0 0.0
    %2829 = vmatpush.msra.mxu0 %v2810
    %2830 = vmatpush.msra.mxu0 %v2809
    %2831 = vmatpush.msra.mxu0 %v2808
    %2832 = vmatpush.msra.mxu0 %v2807
    %2833 = vmatmul.f32.gmra.mxu0 %v2812
    %v2834 = vpop.f32.mrf.mxu0
    %v2835 = vadd.f32 0.0, %v2834
    %2836 = vmatmul.f32.gmra.mxu0 %v2815
    %v2837 = vpop.f32.mrf.mxu0
    %v2838 = vadd.f32 0.0, %v2837
    %2839 = vdwg.mxu0
    %2840 = vst [vmem:[#allocation2] sm:$0xff] %v2835
    %2841 = vst [vmem:[#allocation2 + $0x8] sm:$0xff] %v2838
    // Predicated region
    $region54: #{quasar_forward.1} parent=1 // pred_check
      _
    $region55: #{quasar_forward.1} parent=1 // pred_check_branch
      %2843 = sbr.rel (0) target = $region57
    $region56: #{quasar_forward.1} parent=1 // pred_region
      %2845 = vsyncadd [#allocation3], 0
      %s2846 = sshll.u32 [#allocation2], 4
      %s2847 = int_to_ptr.vmem [resolvable:$true] %s2846
      %s2848 = sshll.u32 %s13, 4
      %s2849 = int_to_ptr.hbm [resolvable:$true] %s2848
      %2854 = dma.vmem_to_hbm [thread:$0]  %s2847, 256, %s2849, [#allocation3], 128, 128, 8
    $region57: #{quasar_forward.1} parent=1 // pred_fallthru
      _
    // Predicated region
    $region58: #{quasar_forward.1} parent=1 // pred_check
      _
    $region59: #{quasar_forward.1} parent=1 // pred_check_branch
      %2856 = sbr.rel (0) target = $region61
    $region60: #{quasar_forward.1} parent=1 // pred_region
      %2858 = dma.done [#allocation3], 256
    $region61: #{quasar_forward.1} parent=1 // pred_fallthru
      _
    %2859 = vsyncpa [#allocation3], 1

</llo_original>
